<compile_context>
chip_gen: v6e
topology: v6e:2x2x1
jax: 0.10.0
libtpu: 0.0.40
codegen_flags: <defaults>
</compile_context>

<pallas_src>
import jax
import jax.numpy as jnp
from jax.experimental import pallas as pl
from jax.experimental.pallas import tpu as pltpu


# -----------------------------------------------------------------------------
# Pallas kernel: full forward pass for one batch tile (batch-first layout).
# -----------------------------------------------------------------------------
def _seq_autoenc_kernel(
    x_ref,        # (TB, T, D)   input tile, f32
    wih_e_ref,    # (D, 3H)      encoder GRU input weights (gate-fused, pre-T, bf16)
    whh_e_ref,    # (H, 3H)      encoder GRU hidden weights (bf16)
    bi_e_ref,     # (1, 3H)      encoder combined bias [b_ir+b_hr | b_iz+b_hz | b_in] (f32)
    bhn_e_ref,    # (1, H)       encoder b_hn (stays inside r * (...)) (f32)
    wenc_ref,     # (H, L)       enc_fc weight (bf16)
    benc_ref,     # (1, L)
    wih_d_ref,    # (L, 3H)      decoder GRU input weights (bf16)
    whh_d_ref,    # (H, 3H)      (bf16)
    bi_d_ref,     # (1, 3H)
    bhn_d_ref,    # (1, H)
    wdec_ref,     # (H, D)       dec_fc weight (bf16)
    bdec_ref,     # (1, D)
    out_ref,      # (TB, T, D)   output tile, f32
    gi_scratch,   # (TB, T, 3H)  precomputed encoder input projections (f32)
    hs_scratch,   # (TB, T, H)   decoder hidden states (for batched dec_fc) (f32)
):
    TB, T, D = x_ref.shape
    H = whh_e_ref.shape[0]
    f32 = jnp.float32
    bf16 = jnp.bfloat16

    # ---------------- Encoder input projection hoisted out of the time loop --
    # One big (TB*T, D) @ (D, 3H) matmul instead of 3*T tiny ones.  The reshape
    # is a leading-dim merge (no relayout).
    x_flat = x_ref[...].reshape(TB * T, D).astype(bf16)
    gi_all = (
        jnp.dot(x_flat, wih_e_ref[...], preferred_element_type=f32)
        + bi_e_ref[...]
    )
    gi_scratch[...] = gi_all.reshape(TB, T, 3 * H)

    whh_e = whh_e_ref[...]
    whh_d = whh_d_ref[...]
    # Hoist the (1,H)->(TB,H) broadcasts out of the (unrolled) time loops.
    bhn_e = jnp.broadcast_to(bhn_e_ref[...], (TB, H))
    bhn_d = jnp.broadcast_to(bhn_d_ref[...], (TB, H))

    def gru_step(gi, gh, h_prev, bhn):
        # PyTorch GRU cell, gate order (r, z, n):
        #   r = sigmoid(W_ir x + b_ir + W_hr h + b_hr)
        #   z = sigmoid(W_iz x + b_iz + W_hz h + b_hz)
        #   n = tanh   (W_in x + b_in + r * (W_hn h + b_hn))
        #   h' = (1 - z) * n + z * h
        # gi already holds the input projection + folded biases; gh = h @ W_hh
        # (no bias), so only b_hn is applied here.  r|z share one fused sigmoid
        # over the lane-aligned [:, :2H] block (H = 128 -> 128-lane boundaries).
        rz = jax.nn.sigmoid(gi[:, : 2 * H] + gh[:, : 2 * H])
        r = rz[:, :H]
        z = rz[:, H:]
        n = jnp.tanh(gi[:, 2 * H:] + r * (gh[:, 2 * H:] + bhn))
        return (1.0 - z) * n + z * h_prev

    # ---------------- Encoder GRU (only the final hidden state is needed) ----
    h = jnp.zeros((TB, H), f32)
    for t in range(T):                                   # T is static & small
        gi = gi_scratch[:, t, :]                         # static slice, (TB, 3H)
        gh = jnp.dot(h.astype(bf16), whh_e, preferred_element_type=f32)
        h = gru_step(gi, gh, h, bhn_e)

    # ---------------- enc_fc: latent code -------------------------------------
    z_lat = (
        jnp.dot(h.astype(bf16), wenc_ref[...], preferred_element_type=f32)
        + benc_ref[...]
    )  # (TB, L)

    # ---------------- Decoder: loop-invariant input projection (same latent) --
    gi_dec = (
        jnp.dot(z_lat.astype(bf16), wih_d_ref[...], preferred_element_type=f32)
        + bi_d_ref[...]
    )  # (TB, 3H), identical every decoder step

    h = jnp.zeros((TB, H), f32)
    for t in range(T):
        gh = jnp.dot(h.astype(bf16), whh_d, preferred_element_type=f32)
        h = gru_step(gi_dec, gh, h, bhn_d)
        hs_scratch[:, t, :] = h                          # static-index store

    # ---------------- dec_fc as one batched matmul + single store -------------
    hs_flat = hs_scratch[...].reshape(TB * T, H).astype(bf16)
    y = jnp.dot(hs_flat, wdec_ref[...], preferred_element_type=f32) + bdec_ref[...]
    out_ref[...] = y.reshape(TB, T, D)
    # TODO(synk): if D stays < 128 at realistic sizes, present the output block
    # as (TB, T*D) for fully lane-dense stores (needs a sublane->lane relayout).


# -----------------------------------------------------------------------------
# Wrapper: parameter repacking (bf16), batch padding/tiling, pallas_call.
# -----------------------------------------------------------------------------
def sequence_autoencoder_forward(x, params, *, batch_tile=None):
    """x: (B, T, input_size) float32, batch-first like the PyTorch module."""
    B, T, D = x.shape
    H = params["enc_w_hh"].shape[1]
    L = params["enc_fc_w"].shape[0]
    f32, bf16 = jnp.float32, jnp.bfloat16

    def _round_up(a, m):
        return (a + m - 1) // m * m

    # ---- Batch tiling: big tiles feed the MXU; cap by a per-tile VMEM budget
    # (v7x has only 64 MiB VMEM) and keep >=2 tiles when possible so both
    # TensorCores get work on multi-core chips.
    if batch_tile is None:
        TB = min(_round_up(B, 8), 256)
    else:
        TB = max(8, _round_up(batch_tile, 8))

    def _tile_vmem_bytes(tb):
        io = 2 * 2 * tb * T * D * 4            # x + out, double-buffered, f32
        scratch = tb * T * (3 * H + H) * 4     # gi + hidden-state scratches
        return io + scratch

    VMEM_TILE_BUDGET = 20 * 1024 * 1024
    while TB > 8 and _tile_vmem_bytes(TB) > VMEM_TILE_BUDGET:
        TB = max(8, _round_up(TB // 2, 8))

    B_pad = _round_up(B, TB)
    if B_pad // TB < 2 and TB >= 16:           # give the second core a tile
        TB = max(8, _round_up(TB // 2, 8))
        B_pad = _round_up(B, TB)
    nb = B_pad // TB

    # ---- Parameter repacking (gate order r|z|n, gate-fused along lanes) ------
    def pack_gru(w_ih, w_hh, b_ih, b_hh):
        # PyTorch layout: (3H, in), (3H, H), (3H,), (3H,).
        wih = w_ih.T.astype(bf16)              # (in, 3H)
        whh = w_hh.T.astype(bf16)              # (H, 3H)
        # Fold b_hr, b_hz into the input-side bias; keep b_hn separate
        # (it must stay inside r * (W_hn h + b_hn)).
        b_comb = b_ih + jnp.concatenate([b_hh[: 2 * H], jnp.zeros((H,), b_hh.dtype)])
        bi = b_comb.reshape(1, 3 * H).astype(f32)
        bhn = b_hh[2 * H:].reshape(1, H).astype(f32)
        return wih, whh, bi, bhn

    wih_e, whh_e, bi_e, bhn_e = pack_gru(
        params["enc_w_ih"], params["enc_w_hh"], params["enc_b_ih"], params["enc_b_hh"])
    wih_d, whh_d, bi_d, bhn_d = pack_gru(
        params["dec_w_ih"], params["dec_w_hh"], params["dec_b_ih"], params["dec_b_hh"])
    wenc = params["enc_fc_w"].T.astype(bf16)           # (H, L)
    benc = params["enc_fc_b"].reshape(1, L).astype(f32)
    wdec = params["dec_fc_w"].T.astype(bf16)           # (H, D)
    bdec = params["dec_fc_b"].reshape(1, D).astype(f32)

    # ---- Input stays batch-first: no HBM transposes, only zero-pad the batch.
    x_p = x.astype(f32)
    if B_pad != B:
        x_p = jnp.pad(x_p, ((0, B_pad - B), (0, 0), (0, 0)))

    def _batch_map(i):
        return (i, 0, 0)

    def _const2(i):
        return (0, 0)

    in_specs = [
        pl.BlockSpec((TB, T, D), _batch_map),    # x (batch-tiled)
        pl.BlockSpec((D, 3 * H), _const2),       # wih_e
        pl.BlockSpec((H, 3 * H), _const2),       # whh_e
        pl.BlockSpec((1, 3 * H), _const2),       # bi_e
        pl.BlockSpec((1, H), _const2),           # bhn_e
        pl.BlockSpec((H, L), _const2),           # wenc
        pl.BlockSpec((1, L), _const2),           # benc
        pl.BlockSpec((L, 3 * H), _const2),       # wih_d
        pl.BlockSpec((H, 3 * H), _const2),       # whh_d
        pl.BlockSpec((1, 3 * H), _const2),       # bi_d
        pl.BlockSpec((1, H), _const2),           # bhn_d
        pl.BlockSpec((H, D), _const2),           # wdec
        pl.BlockSpec((1, D), _const2),           # bdec
    ]

    # Advisory cost hint for XLA scheduling around the custom call.
    flops = (
        2 * T * B_pad * D * 3 * H        # encoder input projection (hoisted)
        + 2 * T * B_pad * H * 3 * H      # encoder hidden projections
        + 2 * B_pad * H * L              # enc_fc
        + 2 * B_pad * L * 3 * H          # decoder input projection (once)
        + 2 * T * B_pad * H * 3 * H      # decoder hidden projections
        + 2 * T * B_pad * H * D          # dec_fc
    )
    transcendentals = 2 * 3 * T * B_pad * H
    weight_elems = (wih_e.size + whh_e.size + wih_d.size + whh_d.size
                    + wenc.size + wdec.size)
    bias_elems = (bi_e.size + bhn_e.size + bi_d.size + bhn_d.size
                  + benc.size + bdec.size)
    bytes_accessed = 4 * (2 * T * B_pad * D) + 2 * weight_elems + 4 * bias_elems

    vmem_limit = int(min(64 * 2**20,
                         max(32 * 2**20, 2 * _tile_vmem_bytes(TB) + (4 << 20))))

    out = pl.pallas_call(
        _seq_autoenc_kernel,
        out_shape=jax.ShapeDtypeStruct((B_pad, T, D), f32),
        grid_spec=pltpu.PrefetchScalarGridSpec(
            num_scalar_prefetch=0,
            grid=(nb,),
            in_specs=in_specs,
            out_specs=pl.BlockSpec((TB, T, D), _batch_map),
            scratch_shapes=[
                pltpu.VMEM((TB, T, 3 * H), f32),   # encoder input projections
                pltpu.VMEM((TB, T, H), f32),       # decoder hidden states
            ],
        ),
        compiler_params=pltpu.CompilerParams(
            dimension_semantics=("parallel",),
            vmem_limit_bytes=vmem_limit,
        ),
        cost_estimate=pl.CostEstimate(
            flops=flops,
            transcendentals=transcendentals,
            bytes_accessed=bytes_accessed,
        ),
    )(
        x_p,
        wih_e, whh_e, bi_e, bhn_e,
        wenc, benc,
        wih_d, whh_d, bi_d, bhn_d,
        wdec, bdec,
    )

    return out[:B]   # drop padded batch rows; already (B, T, D), no transpose


# -----------------------------------------------------------------------------
# Pure-JAX f32 reference (mirrors PyTorch semantics) for validation.
# -----------------------------------------------------------------------------
def _gru_ref(x, h0, w_ih, w_hh, b_ih, b_hh):
    B, T, _ = x.shape
    H = w_hh.shape[1]
    h = h0
    outs = []
    for t in range(T):
        xt = x[:, t, :]
        gi = xt @ w_ih.T + b_ih
        gh = h @ w_hh.T + b_hh
        i_r, i_z, i_n = gi[:, :H], gi[:, H:2 * H], gi[:, 2 * H:]
        h_r, h_z, h_n = gh[:, :H], gh[:, H:2 * H], gh[:, 2 * H:]
        r = jax.nn.sigmoid(i_r + h_r)
        z = jax.nn.sigmoid(i_z + h_z)
        n = jnp.tanh(i_n + r * h_n)
        h = (1.0 - z) * n + z * h
        outs.append(h)
    return jnp.stack(outs, axis=1), h


def _reference_forward(x, p):
    B, T, D = x.shape
    H = p["enc_w_hh"].shape[1]
    h0 = jnp.zeros((B, H), jnp.float32)
    _, h_enc = _gru_ref(x, h0, p["enc_w_ih"], p["enc_w_hh"], p["enc_b_ih"], p["enc_b_hh"])
    z = h_enc @ p["enc_fc_w"].T + p["enc_fc_b"]
    z_rep = jnp.repeat(z[:, None, :], T, axis=1)
    outs, _ = _gru_ref(z_rep, h0, p["dec_w_ih"], p["dec_w_hh"], p["dec_b_ih"], p["dec_b_hh"])
    return outs @ p["dec_fc_w"].T + p["dec_fc_b"]


# -----------------------------------------------------------------------------
# Deterministic parameter init + demo.
# -----------------------------------------------------------------------------
def _init_params(key, input_size, hidden_size, latent_size):
    keys = jax.random.split(key, 12)
    u = lambda k, shape: jax.random.uniform(k, shape, jnp.float32, -0.1, 0.1)
    H, D, L = hidden_size, input_size, latent_size
    return {
        "enc_w_ih": u(keys[0], (3 * H, D)),
        "enc_w_hh": u(keys[1], (3 * H, H)),
        "enc_b_ih": u(keys[2], (3 * H,)),
        "enc_b_hh": u(keys[3], (3 * H,)),
        "enc_fc_w": u(keys[4], (L, H)),
        "enc_fc_b": u(keys[5], (L,)),
        "dec_w_ih": u(keys[6], (3 * H, L)),
        "dec_w_hh": u(keys[7], (3 * H, H)),
        "dec_b_ih": u(keys[8], (3 * H,)),
        "dec_b_hh": u(keys[9], (3 * H,)),
        "dec_fc_w": u(keys[10], (D, H)),
        "dec_fc_b": u(keys[11], (D,)),
    }


if __name__ == "__main__":
    # Module defaults (MXU/lane-aligned): input=64, hidden=128, latent=32.
    B, T = 4, 8
    input_size, hidden_size, latent_size = 64, 128, 32

    key = jax.random.PRNGKey(0)
    k_x, k_p = jax.random.split(key)
    x = jax.random.normal(k_x, (B, T, input_size), jnp.float32)
    params = _init_params(k_p, input_size, hidden_size, latent_size)

    fwd = jax.jit(sequence_autoencoder_forward)
    out = jax.block_until_ready(fwd(x, params))

    ref = _reference_forward(x, params)
    assert out.shape == (B, T, input_size)
    max_diff = float(jnp.max(jnp.abs(out - ref)))
    # bf16 MXU operands with f32 accumulation over T recurrent steps: use a
    # tolerance looser than pure-f32 (observed error is ~1e-3 at these sizes).
    assert max_diff < 2e-2, f"max abs diff {max_diff}"
    print("KERNEL_OK")
</pallas_src>

<mosaic_0001>
module attributes {stable_mosaic.version = 11 : i64} {
  func.func @_seq_autoenc_kernel(%arg0: i32, %arg1: memref<8x8x64xf32, #tpu.memory_space<vmem>>, %arg2: memref<64x384xbf16, #tpu.memory_space<vmem>>, %arg3: memref<128x384xbf16, #tpu.memory_space<vmem>>, %arg4: memref<1x384xf32, #tpu.memory_space<vmem>>, %arg5: memref<1x128xf32, #tpu.memory_space<vmem>>, %arg6: memref<128x32xbf16, #tpu.memory_space<vmem>>, %arg7: memref<1x32xf32, #tpu.memory_space<vmem>>, %arg8: memref<32x384xbf16, #tpu.memory_space<vmem>>, %arg9: memref<128x384xbf16, #tpu.memory_space<vmem>>, %arg10: memref<1x384xf32, #tpu.memory_space<vmem>>, %arg11: memref<1x128xf32, #tpu.memory_space<vmem>>, %arg12: memref<128x64xbf16, #tpu.memory_space<vmem>>, %arg13: memref<1x64xf32, #tpu.memory_space<vmem>>, %arg14: memref<8x8x64xf32, #tpu.memory_space<vmem>>, %arg15: memref<8x8x384xf32, #tpu.memory_space<vmem>>, %arg16: memref<8x8x128xf32, #tpu.memory_space<vmem>>) attributes {dimension_semantics = [#tpu.dimension_semantics<parallel>], iteration_bounds = array<i64: 1>, scalar_prefetch = 0 : i64, scratch_operands = 2 : i64, tpu.core_type = #tpu.core_type<tc>, window_params = [{transform_indices = @transform_0, window_bounds = array<i64: 8, 8, 64>}, {pipeline_mode = #tpu.pipeline_mode<synchronous>, transform_indices = @transform_1, window_bounds = array<i64: 64, 384>}, {pipeline_mode = #tpu.pipeline_mode<synchronous>, transform_indices = @transform_2, window_bounds = array<i64: 128, 384>}, {pipeline_mode = #tpu.pipeline_mode<synchronous>, transform_indices = @transform_3, window_bounds = array<i64: 1, 384>}, {pipeline_mode = #tpu.pipeline_mode<synchronous>, transform_indices = @transform_4, window_bounds = array<i64: 1, 128>}, {pipeline_mode = #tpu.pipeline_mode<synchronous>, transform_indices = @transform_5, window_bounds = array<i64: 128, 32>}, {pipeline_mode = #tpu.pipeline_mode<synchronous>, transform_indices = @transform_6, window_bounds = array<i64: 1, 32>}, {pipeline_mode = #tpu.pipeline_mode<synchronous>, transform_indices = @transform_7, window_bounds = array<i64: 32, 384>}, {pipeline_mode = #tpu.pipeline_mode<synchronous>, transform_indices = @transform_8, window_bounds = array<i64: 128, 384>}, {pipeline_mode = #tpu.pipeline_mode<synchronous>, transform_indices = @transform_9, window_bounds = array<i64: 1, 384>}, {pipeline_mode = #tpu.pipeline_mode<synchronous>, transform_indices = @transform_10, window_bounds = array<i64: 1, 128>}, {pipeline_mode = #tpu.pipeline_mode<synchronous>, transform_indices = @transform_11, window_bounds = array<i64: 128, 64>}, {pipeline_mode = #tpu.pipeline_mode<synchronous>, transform_indices = @transform_12, window_bounds = array<i64: 1, 64>}, {transform_indices = @transform_13, window_bounds = array<i64: 8, 8, 64>}]} {
    %c0 = arith.constant 0 : index
    %c0_0 = arith.constant 0 : index
    %c0_1 = arith.constant 0 : index
    %0 = vector.load %arg1[%c0, %c0_0, %c0_1] : memref<8x8x64xf32, #tpu.memory_space<vmem>>, vector<8x8x64xf32>
    %1 = vector.shape_cast %0 : vector<8x8x64xf32> to vector<64x64xf32>
    %2 = arith.truncf %1 : vector<64x64xf32> to vector<64x64xbf16>
    %c0_2 = arith.constant 0 : index
    %c0_3 = arith.constant 0 : index
    %3 = vector.load %arg2[%c0_2, %c0_3] : memref<64x384xbf16, #tpu.memory_space<vmem>>, vector<64x384xbf16>
    %cst = arith.constant dense<0.000000e+00> : vector<64x384xf32>
    %4 = tpu.matmul %2, %3, %cst {dimension_numbers = #tpu.dot_dimension_numbers<[1], [0], [0], [1], [0, 0, 1, 1], [], []>} : vector<64x64xbf16>, vector<64x384xbf16>, vector<64x384xf32> -> vector<64x384xf32>
    %c0_4 = arith.constant 0 : index
    %c0_5 = arith.constant 0 : index
    %5 = vector.load %arg4[%c0_4, %c0_5] : memref<1x384xf32, #tpu.memory_space<vmem>>, vector<1x384xf32>
    %6 = vector.broadcast %5 : vector<1x384xf32> to vector<64x384xf32>
    %7 = arith.addf %4, %6 : vector<64x384xf32>
    %8 = vector.shape_cast %7 : vector<64x384xf32> to vector<8x8x384xf32>
    %c0_6 = arith.constant 0 : index
    %c0_7 = arith.constant 0 : index
    %c0_8 = arith.constant 0 : index
    %9 = vector.load %arg15[%c0_6, %c0_7, %c0_8] : memref<8x8x384xf32, #tpu.memory_space<vmem>>, vector<8x8x384xf32>
    tpu.vector_store %arg15[%c0_6, %c0_7, %c0_8], %8 {strides = array<i32>} : memref<8x8x384xf32, #tpu.memory_space<vmem>>, vector<8x8x384xf32>,
    %c0_9 = arith.constant 0 : index
    %c0_10 = arith.constant 0 : index
    %10 = vector.load %arg3[%c0_9, %c0_10] : memref<128x384xbf16, #tpu.memory_space<vmem>>, vector<128x384xbf16>
    %c0_11 = arith.constant 0 : index
    %c0_12 = arith.constant 0 : index
    %11 = vector.load %arg9[%c0_11, %c0_12] : memref<128x384xbf16, #tpu.memory_space<vmem>>, vector<128x384xbf16>
    %c0_13 = arith.constant 0 : index
    %c0_14 = arith.constant 0 : index
    %12 = vector.load %arg5[%c0_13, %c0_14] : memref<1x128xf32, #tpu.memory_space<vmem>>, vector<1x128xf32>
    %13 = vector.shape_cast %12 : vector<1x128xf32> to vector<1x128xf32>
    %14 = vector.broadcast %13 : vector<1x128xf32> to vector<8x128xf32>
    %c0_15 = arith.constant 0 : index
    %c0_16 = arith.constant 0 : index
    %15 = vector.load %arg11[%c0_15, %c0_16] : memref<1x128xf32, #tpu.memory_space<vmem>>, vector<1x128xf32>
    %16 = vector.shape_cast %15 : vector<1x128xf32> to vector<1x128xf32>
    %17 = vector.broadcast %16 : vector<1x128xf32> to vector<8x128xf32>
    %cst_17 = arith.constant 0.000000e+00 : f32
    %18 = vector.broadcast %cst_17 : f32 to vector<8x128xf32>
    %c0_18 = arith.constant 0 : index
    %c0_19 = arith.constant 0 : index
    %c0_20 = arith.constant 0 : index
    %19 = vector.load %arg15[%c0_18, %c0_19, %c0_20] : memref<8x8x384xf32, #tpu.memory_space<vmem>>, vector<8x1x384xf32>
    %20 = vector.shape_cast %19 : vector<8x1x384xf32> to vector<8x384xf32>
    %21 = arith.truncf %18 : vector<8x128xf32> to vector<8x128xbf16>
    %cst_21 = arith.constant dense<0.000000e+00> : vector<8x384xf32>
    %22 = tpu.matmul %21, %10, %cst_21 {dimension_numbers = #tpu.dot_dimension_numbers<[1], [0], [0], [1], [0, 0, 1, 1], [], []>} : vector<8x128xbf16>, vector<128x384xbf16>, vector<8x384xf32> -> vector<8x384xf32>
    %23 = vector.extract_strided_slice %20 {offsets = [0, 0], sizes = [8, 256], strides = [1, 1]} : vector<8x384xf32> to vector<8x256xf32>
    %24 = vector.extract_strided_slice %22 {offsets = [0, 0], sizes = [8, 256], strides = [1, 1]} : vector<8x384xf32> to vector<8x256xf32>
    %25 = arith.addf %23, %24 : vector<8x256xf32>
    %26 = arith.negf %25 : vector<8x256xf32>
    %27 = math.exp %26 : vector<8x256xf32>
    %cst_22 = arith.constant 1.000000e+00 : f32
    %28 = vector.broadcast %cst_22 : f32 to vector<8x256xf32>
    %29 = arith.addf %28, %27 : vector<8x256xf32>
    %30 = arith.divf %28, %29 : vector<8x256xf32>
    %31 = vector.extract_strided_slice %30 {offsets = [0, 0], sizes = [8, 128], strides = [1, 1]} : vector<8x256xf32> to vector<8x128xf32>
    %32 = vector.extract_strided_slice %30 {offsets = [0, 128], sizes = [8, 128], strides = [1, 1]} : vector<8x256xf32> to vector<8x128xf32>
    %33 = vector.extract_strided_slice %20 {offsets = [0, 256], sizes = [8, 128], strides = [1, 1]} : vector<8x384xf32> to vector<8x128xf32>
    %34 = vector.extract_strided_slice %22 {offsets = [0, 256], sizes = [8, 128], strides = [1, 1]} : vector<8x384xf32> to vector<8x128xf32>
    %35 = arith.addf %34, %14 : vector<8x128xf32>
    %36 = arith.mulf %31, %35 : vector<8x128xf32>
    %37 = arith.addf %33, %36 : vector<8x128xf32>
    %38 = math.tanh %37 : vector<8x128xf32>
    %cst_23 = arith.constant 1.000000e+00 : f32
    %39 = vector.broadcast %cst_23 : f32 to vector<8x128xf32>
    %40 = arith.subf %39, %32 : vector<8x128xf32>
    %41 = arith.mulf %40, %38 : vector<8x128xf32>
    %42 = arith.mulf %32, %18 : vector<8x128xf32>
    %43 = arith.addf %41, %42 : vector<8x128xf32>
    %c0_24 = arith.constant 0 : index
    %c1 = arith.constant 1 : index
    %c0_25 = arith.constant 0 : index
    %44 = vector.load %arg15[%c0_24, %c1, %c0_25] : memref<8x8x384xf32, #tpu.memory_space<vmem>>, vector<8x1x384xf32>
    %45 = vector.shape_cast %44 : vector<8x1x384xf32> to vector<8x384xf32>
    %46 = arith.truncf %43 : vector<8x128xf32> to vector<8x128xbf16>
    %cst_26 = arith.constant dense<0.000000e+00> : vector<8x384xf32>
    %47 = tpu.matmul %46, %10, %cst_26 {dimension_numbers = #tpu.dot_dimension_numbers<[1], [0], [0], [1], [0, 0, 1, 1], [], []>} : vector<8x128xbf16>, vector<128x384xbf16>, vector<8x384xf32> -> vector<8x384xf32>
    %48 = vector.extract_strided_slice %45 {offsets = [0, 0], sizes = [8, 256], strides = [1, 1]} : vector<8x384xf32> to vector<8x256xf32>
    %49 = vector.extract_strided_slice %47 {offsets = [0, 0], sizes = [8, 256], strides = [1, 1]} : vector<8x384xf32> to vector<8x256xf32>
    %50 = arith.addf %48, %49 : vector<8x256xf32>
    %51 = arith.negf %50 : vector<8x256xf32>
    %52 = math.exp %51 : vector<8x256xf32>
    %cst_27 = arith.constant 1.000000e+00 : f32
    %53 = vector.broadcast %cst_27 : f32 to vector<8x256xf32>
    %54 = arith.addf %53, %52 : vector<8x256xf32>
    %55 = arith.divf %53, %54 : vector<8x256xf32>
    %56 = vector.extract_strided_slice %55 {offsets = [0, 0], sizes = [8, 128], strides = [1, 1]} : vector<8x256xf32> to vector<8x128xf32>
    %57 = vector.extract_strided_slice %55 {offsets = [0, 128], sizes = [8, 128], strides = [1, 1]} : vector<8x256xf32> to vector<8x128xf32>
    %58 = vector.extract_strided_slice %45 {offsets = [0, 256], sizes = [8, 128], strides = [1, 1]} : vector<8x384xf32> to vector<8x128xf32>
    %59 = vector.extract_strided_slice %47 {offsets = [0, 256], sizes = [8, 128], strides = [1, 1]} : vector<8x384xf32> to vector<8x128xf32>
    %60 = arith.addf %59, %14 : vector<8x128xf32>
    %61 = arith.mulf %56, %60 : vector<8x128xf32>
    %62 = arith.addf %58, %61 : vector<8x128xf32>
    %63 = math.tanh %62 : vector<8x128xf32>
    %cst_28 = arith.constant 1.000000e+00 : f32
    %64 = vector.broadcast %cst_28 : f32 to vector<8x128xf32>
    %65 = arith.subf %64, %57 : vector<8x128xf32>
    %66 = arith.mulf %65, %63 : vector<8x128xf32>
    %67 = arith.mulf %57, %43 : vector<8x128xf32>
    %68 = arith.addf %66, %67 : vector<8x128xf32>
    %c0_29 = arith.constant 0 : index
    %c2 = arith.constant 2 : index
    %c0_30 = arith.constant 0 : index
    %69 = vector.load %arg15[%c0_29, %c2, %c0_30] : memref<8x8x384xf32, #tpu.memory_space<vmem>>, vector<8x1x384xf32>
    %70 = vector.shape_cast %69 : vector<8x1x384xf32> to vector<8x384xf32>
    %71 = arith.truncf %68 : vector<8x128xf32> to vector<8x128xbf16>
    %cst_31 = arith.constant dense<0.000000e+00> : vector<8x384xf32>
    %72 = tpu.matmul %71, %10, %cst_31 {dimension_numbers = #tpu.dot_dimension_numbers<[1], [0], [0], [1], [0, 0, 1, 1], [], []>} : vector<8x128xbf16>, vector<128x384xbf16>, vector<8x384xf32> -> vector<8x384xf32>
    %73 = vector.extract_strided_slice %70 {offsets = [0, 0], sizes = [8, 256], strides = [1, 1]} : vector<8x384xf32> to vector<8x256xf32>
    %74 = vector.extract_strided_slice %72 {offsets = [0, 0], sizes = [8, 256], strides = [1, 1]} : vector<8x384xf32> to vector<8x256xf32>
    %75 = arith.addf %73, %74 : vector<8x256xf32>
    %76 = arith.negf %75 : vector<8x256xf32>
    %77 = math.exp %76 : vector<8x256xf32>
    %cst_32 = arith.constant 1.000000e+00 : f32
    %78 = vector.broadcast %cst_32 : f32 to vector<8x256xf32>
    %79 = arith.addf %78, %77 : vector<8x256xf32>
    %80 = arith.divf %78, %79 : vector<8x256xf32>
    %81 = vector.extract_strided_slice %80 {offsets = [0, 0], sizes = [8, 128], strides = [1, 1]} : vector<8x256xf32> to vector<8x128xf32>
    %82 = vector.extract_strided_slice %80 {offsets = [0, 128], sizes = [8, 128], strides = [1, 1]} : vector<8x256xf32> to vector<8x128xf32>
    %83 = vector.extract_strided_slice %70 {offsets = [0, 256], sizes = [8, 128], strides = [1, 1]} : vector<8x384xf32> to vector<8x128xf32>
    %84 = vector.extract_strided_slice %72 {offsets = [0, 256], sizes = [8, 128], strides = [1, 1]} : vector<8x384xf32> to vector<8x128xf32>
    %85 = arith.addf %84, %14 : vector<8x128xf32>
    %86 = arith.mulf %81, %85 : vector<8x128xf32>
    %87 = arith.addf %83, %86 : vector<8x128xf32>
    %88 = math.tanh %87 : vector<8x128xf32>
    %cst_33 = arith.constant 1.000000e+00 : f32
    %89 = vector.broadcast %cst_33 : f32 to vector<8x128xf32>
    %90 = arith.subf %89, %82 : vector<8x128xf32>
    %91 = arith.mulf %90, %88 : vector<8x128xf32>
    %92 = arith.mulf %82, %68 : vector<8x128xf32>
    %93 = arith.addf %91, %92 : vector<8x128xf32>
    %c0_34 = arith.constant 0 : index
    %c3 = arith.constant 3 : index
    %c0_35 = arith.constant 0 : index
    %94 = vector.load %arg15[%c0_34, %c3, %c0_35] : memref<8x8x384xf32, #tpu.memory_space<vmem>>, vector<8x1x384xf32>
    %95 = vector.shape_cast %94 : vector<8x1x384xf32> to vector<8x384xf32>
    %96 = arith.truncf %93 : vector<8x128xf32> to vector<8x128xbf16>
    %cst_36 = arith.constant dense<0.000000e+00> : vector<8x384xf32>
    %97 = tpu.matmul %96, %10, %cst_36 {dimension_numbers = #tpu.dot_dimension_numbers<[1], [0], [0], [1], [0, 0, 1, 1], [], []>} : vector<8x128xbf16>, vector<128x384xbf16>, vector<8x384xf32> -> vector<8x384xf32>
    %98 = vector.extract_strided_slice %95 {offsets = [0, 0], sizes = [8, 256], strides = [1, 1]} : vector<8x384xf32> to vector<8x256xf32>
    %99 = vector.extract_strided_slice %97 {offsets = [0, 0], sizes = [8, 256], strides = [1, 1]} : vector<8x384xf32> to vector<8x256xf32>
    %100 = arith.addf %98, %99 : vector<8x256xf32>
    %101 = arith.negf %100 : vector<8x256xf32>
    %102 = math.exp %101 : vector<8x256xf32>
    %cst_37 = arith.constant 1.000000e+00 : f32
    %103 = vector.broadcast %cst_37 : f32 to vector<8x256xf32>
    %104 = arith.addf %103, %102 : vector<8x256xf32>
    %105 = arith.divf %103, %104 : vector<8x256xf32>
    %106 = vector.extract_strided_slice %105 {offsets = [0, 0], sizes = [8, 128], strides = [1, 1]} : vector<8x256xf32> to vector<8x128xf32>
    %107 = vector.extract_strided_slice %105 {offsets = [0, 128], sizes = [8, 128], strides = [1, 1]} : vector<8x256xf32> to vector<8x128xf32>
    %108 = vector.extract_strided_slice %95 {offsets = [0, 256], sizes = [8, 128], strides = [1, 1]} : vector<8x384xf32> to vector<8x128xf32>
    %109 = vector.extract_strided_slice %97 {offsets = [0, 256], sizes = [8, 128], strides = [1, 1]} : vector<8x384xf32> to vector<8x128xf32>
    %110 = arith.addf %109, %14 : vector<8x128xf32>
    %111 = arith.mulf %106, %110 : vector<8x128xf32>
    %112 = arith.addf %108, %111 : vector<8x128xf32>
    %113 = math.tanh %112 : vector<8x128xf32>
    %cst_38 = arith.constant 1.000000e+00 : f32
    %114 = vector.broadcast %cst_38 : f32 to vector<8x128xf32>
    %115 = arith.subf %114, %107 : vector<8x128xf32>
    %116 = arith.mulf %115, %113 : vector<8x128xf32>
    %117 = arith.mulf %107, %93 : vector<8x128xf32>
    %118 = arith.addf %116, %117 : vector<8x128xf32>
    %c0_39 = arith.constant 0 : index
    %c4 = arith.constant 4 : index
    %c0_40 = arith.constant 0 : index
    %119 = vector.load %arg15[%c0_39, %c4, %c0_40] : memref<8x8x384xf32, #tpu.memory_space<vmem>>, vector<8x1x384xf32>
    %120 = vector.shape_cast %119 : vector<8x1x384xf32> to vector<8x384xf32>
    %121 = arith.truncf %118 : vector<8x128xf32> to vector<8x128xbf16>
    %cst_41 = arith.constant dense<0.000000e+00> : vector<8x384xf32>
    %122 = tpu.matmul %121, %10, %cst_41 {dimension_numbers = #tpu.dot_dimension_numbers<[1], [0], [0], [1], [0, 0, 1, 1], [], []>} : vector<8x128xbf16>, vector<128x384xbf16>, vector<8x384xf32> -> vector<8x384xf32>
    %123 = vector.extract_strided_slice %120 {offsets = [0, 0], sizes = [8, 256], strides = [1, 1]} : vector<8x384xf32> to vector<8x256xf32>
    %124 = vector.extract_strided_slice %122 {offsets = [0, 0], sizes = [8, 256], strides = [1, 1]} : vector<8x384xf32> to vector<8x256xf32>
    %125 = arith.addf %123, %124 : vector<8x256xf32>
    %126 = arith.negf %125 : vector<8x256xf32>
    %127 = math.exp %126 : vector<8x256xf32>
    %cst_42 = arith.constant 1.000000e+00 : f32
    %128 = vector.broadcast %cst_42 : f32 to vector<8x256xf32>
    %129 = arith.addf %128, %127 : vector<8x256xf32>
    %130 = arith.divf %128, %129 : vector<8x256xf32>
    %131 = vector.extract_strided_slice %130 {offsets = [0, 0], sizes = [8, 128], strides = [1, 1]} : vector<8x256xf32> to vector<8x128xf32>
    %132 = vector.extract_strided_slice %130 {offsets = [0, 128], sizes = [8, 128], strides = [1, 1]} : vector<8x256xf32> to vector<8x128xf32>
    %133 = vector.extract_strided_slice %120 {offsets = [0, 256], sizes = [8, 128], strides = [1, 1]} : vector<8x384xf32> to vector<8x128xf32>
    %134 = vector.extract_strided_slice %122 {offsets = [0, 256], sizes = [8, 128], strides = [1, 1]} : vector<8x384xf32> to vector<8x128xf32>
    %135 = arith.addf %134, %14 : vector<8x128xf32>
    %136 = arith.mulf %131, %135 : vector<8x128xf32>
    %137 = arith.addf %133, %136 : vector<8x128xf32>
    %138 = math.tanh %137 : vector<8x128xf32>
    %cst_43 = arith.constant 1.000000e+00 : f32
    %139 = vector.broadcast %cst_43 : f32 to vector<8x128xf32>
    %140 = arith.subf %139, %132 : vector<8x128xf32>
    %141 = arith.mulf %140, %138 : vector<8x128xf32>
    %142 = arith.mulf %132, %118 : vector<8x128xf32>
    %143 = arith.addf %141, %142 : vector<8x128xf32>
    %c0_44 = arith.constant 0 : index
    %c5 = arith.constant 5 : index
    %c0_45 = arith.constant 0 : index
    %144 = vector.load %arg15[%c0_44, %c5, %c0_45] : memref<8x8x384xf32, #tpu.memory_space<vmem>>, vector<8x1x384xf32>
    %145 = vector.shape_cast %144 : vector<8x1x384xf32> to vector<8x384xf32>
    %146 = arith.truncf %143 : vector<8x128xf32> to vector<8x128xbf16>
    %cst_46 = arith.constant dense<0.000000e+00> : vector<8x384xf32>
    %147 = tpu.matmul %146, %10, %cst_46 {dimension_numbers = #tpu.dot_dimension_numbers<[1], [0], [0], [1], [0, 0, 1, 1], [], []>} : vector<8x128xbf16>, vector<128x384xbf16>, vector<8x384xf32> -> vector<8x384xf32>
    %148 = vector.extract_strided_slice %145 {offsets = [0, 0], sizes = [8, 256], strides = [1, 1]} : vector<8x384xf32> to vector<8x256xf32>
    %149 = vector.extract_strided_slice %147 {offsets = [0, 0], sizes = [8, 256], strides = [1, 1]} : vector<8x384xf32> to vector<8x256xf32>
    %150 = arith.addf %148, %149 : vector<8x256xf32>
    %151 = arith.negf %150 : vector<8x256xf32>
    %152 = math.exp %151 : vector<8x256xf32>
    %cst_47 = arith.constant 1.000000e+00 : f32
    %153 = vector.broadcast %cst_47 : f32 to vector<8x256xf32>
    %154 = arith.addf %153, %152 : vector<8x256xf32>
    %155 = arith.divf %153, %154 : vector<8x256xf32>
    %156 = vector.extract_strided_slice %155 {offsets = [0, 0], sizes = [8, 128], strides = [1, 1]} : vector<8x256xf32> to vector<8x128xf32>
    %157 = vector.extract_strided_slice %155 {offsets = [0, 128], sizes = [8, 128], strides = [1, 1]} : vector<8x256xf32> to vector<8x128xf32>
    %158 = vector.extract_strided_slice %145 {offsets = [0, 256], sizes = [8, 128], strides = [1, 1]} : vector<8x384xf32> to vector<8x128xf32>
    %159 = vector.extract_strided_slice %147 {offsets = [0, 256], sizes = [8, 128], strides = [1, 1]} : vector<8x384xf32> to vector<8x128xf32>
    %160 = arith.addf %159, %14 : vector<8x128xf32>
    %161 = arith.mulf %156, %160 : vector<8x128xf32>
    %162 = arith.addf %158, %161 : vector<8x128xf32>
    %163 = math.tanh %162 : vector<8x128xf32>
    %cst_48 = arith.constant 1.000000e+00 : f32
    %164 = vector.broadcast %cst_48 : f32 to vector<8x128xf32>
    %165 = arith.subf %164, %157 : vector<8x128xf32>
    %166 = arith.mulf %165, %163 : vector<8x128xf32>
    %167 = arith.mulf %157, %143 : vector<8x128xf32>
    %168 = arith.addf %166, %167 : vector<8x128xf32>
    %c0_49 = arith.constant 0 : index
    %c6 = arith.constant 6 : index
    %c0_50 = arith.constant 0 : index
    %169 = vector.load %arg15[%c0_49, %c6, %c0_50] : memref<8x8x384xf32, #tpu.memory_space<vmem>>, vector<8x1x384xf32>
    %170 = vector.shape_cast %169 : vector<8x1x384xf32> to vector<8x384xf32>
    %171 = arith.truncf %168 : vector<8x128xf32> to vector<8x128xbf16>
    %cst_51 = arith.constant dense<0.000000e+00> : vector<8x384xf32>
    %172 = tpu.matmul %171, %10, %cst_51 {dimension_numbers = #tpu.dot_dimension_numbers<[1], [0], [0], [1], [0, 0, 1, 1], [], []>} : vector<8x128xbf16>, vector<128x384xbf16>, vector<8x384xf32> -> vector<8x384xf32>
    %173 = vector.extract_strided_slice %170 {offsets = [0, 0], sizes = [8, 256], strides = [1, 1]} : vector<8x384xf32> to vector<8x256xf32>
    %174 = vector.extract_strided_slice %172 {offsets = [0, 0], sizes = [8, 256], strides = [1, 1]} : vector<8x384xf32> to vector<8x256xf32>
    %175 = arith.addf %173, %174 : vector<8x256xf32>
    %176 = arith.negf %175 : vector<8x256xf32>
    %177 = math.exp %176 : vector<8x256xf32>
    %cst_52 = arith.constant 1.000000e+00 : f32
    %178 = vector.broadcast %cst_52 : f32 to vector<8x256xf32>
    %179 = arith.addf %178, %177 : vector<8x256xf32>
    %180 = arith.divf %178, %179 : vector<8x256xf32>
    %181 = vector.extract_strided_slice %180 {offsets = [0, 0], sizes = [8, 128], strides = [1, 1]} : vector<8x256xf32> to vector<8x128xf32>
    %182 = vector.extract_strided_slice %180 {offsets = [0, 128], sizes = [8, 128], strides = [1, 1]} : vector<8x256xf32> to vector<8x128xf32>
    %183 = vector.extract_strided_slice %170 {offsets = [0, 256], sizes = [8, 128], strides = [1, 1]} : vector<8x384xf32> to vector<8x128xf32>
    %184 = vector.extract_strided_slice %172 {offsets = [0, 256], sizes = [8, 128], strides = [1, 1]} : vector<8x384xf32> to vector<8x128xf32>
    %185 = arith.addf %184, %14 : vector<8x128xf32>
    %186 = arith.mulf %181, %185 : vector<8x128xf32>
    %187 = arith.addf %183, %186 : vector<8x128xf32>
    %188 = math.tanh %187 : vector<8x128xf32>
    %cst_53 = arith.constant 1.000000e+00 : f32
    %189 = vector.broadcast %cst_53 : f32 to vector<8x128xf32>
    %190 = arith.subf %189, %182 : vector<8x128xf32>
    %191 = arith.mulf %190, %188 : vector<8x128xf32>
    %192 = arith.mulf %182, %168 : vector<8x128xf32>
    %193 = arith.addf %191, %192 : vector<8x128xf32>
    %c0_54 = arith.constant 0 : index
    %c7 = arith.constant 7 : index
    %c0_55 = arith.constant 0 : index
    %194 = vector.load %arg15[%c0_54, %c7, %c0_55] : memref<8x8x384xf32, #tpu.memory_space<vmem>>, vector<8x1x384xf32>
    %195 = vector.shape_cast %194 : vector<8x1x384xf32> to vector<8x384xf32>
    %196 = arith.truncf %193 : vector<8x128xf32> to vector<8x128xbf16>
    %cst_56 = arith.constant dense<0.000000e+00> : vector<8x384xf32>
    %197 = tpu.matmul %196, %10, %cst_56 {dimension_numbers = #tpu.dot_dimension_numbers<[1], [0], [0], [1], [0, 0, 1, 1], [], []>} : vector<8x128xbf16>, vector<128x384xbf16>, vector<8x384xf32> -> vector<8x384xf32>
    %198 = vector.extract_strided_slice %195 {offsets = [0, 0], sizes = [8, 256], strides = [1, 1]} : vector<8x384xf32> to vector<8x256xf32>
    %199 = vector.extract_strided_slice %197 {offsets = [0, 0], sizes = [8, 256], strides = [1, 1]} : vector<8x384xf32> to vector<8x256xf32>
    %200 = arith.addf %198, %199 : vector<8x256xf32>
    %201 = arith.negf %200 : vector<8x256xf32>
    %202 = math.exp %201 : vector<8x256xf32>
    %cst_57 = arith.constant 1.000000e+00 : f32
    %203 = vector.broadcast %cst_57 : f32 to vector<8x256xf32>
    %204 = arith.addf %203, %202 : vector<8x256xf32>
    %205 = arith.divf %203, %204 : vector<8x256xf32>
    %206 = vector.extract_strided_slice %205 {offsets = [0, 0], sizes = [8, 128], strides = [1, 1]} : vector<8x256xf32> to vector<8x128xf32>
    %207 = vector.extract_strided_slice %205 {offsets = [0, 128], sizes = [8, 128], strides = [1, 1]} : vector<8x256xf32> to vector<8x128xf32>
    %208 = vector.extract_strided_slice %195 {offsets = [0, 256], sizes = [8, 128], strides = [1, 1]} : vector<8x384xf32> to vector<8x128xf32>
    %209 = vector.extract_strided_slice %197 {offsets = [0, 256], sizes = [8, 128], strides = [1, 1]} : vector<8x384xf32> to vector<8x128xf32>
    %210 = arith.addf %209, %14 : vector<8x128xf32>
    %211 = arith.mulf %206, %210 : vector<8x128xf32>
    %212 = arith.addf %208, %211 : vector<8x128xf32>
    %213 = math.tanh %212 : vector<8x128xf32>
    %cst_58 = arith.constant 1.000000e+00 : f32
    %214 = vector.broadcast %cst_58 : f32 to vector<8x128xf32>
    %215 = arith.subf %214, %207 : vector<8x128xf32>
    %216 = arith.mulf %215, %213 : vector<8x128xf32>
    %217 = arith.mulf %207, %193 : vector<8x128xf32>
    %218 = arith.addf %216, %217 : vector<8x128xf32>
    %219 = arith.truncf %218 : vector<8x128xf32> to vector<8x128xbf16>
    %c0_59 = arith.constant 0 : index
    %c0_60 = arith.constant 0 : index
    %220 = vector.load %arg6[%c0_59, %c0_60] : memref<128x32xbf16, #tpu.memory_space<vmem>>, vector<128x32xbf16>
    %cst_61 = arith.constant dense<0.000000e+00> : vector<8x32xf32>
    %221 = tpu.matmul %219, %220, %cst_61 {dimension_numbers = #tpu.dot_dimension_numbers<[1], [0], [0], [1], [0, 0, 1, 1], [], []>} : vector<8x128xbf16>, vector<128x32xbf16>, vector<8x32xf32> -> vector<8x32xf32>
    %c0_62 = arith.constant 0 : index
    %c0_63 = arith.constant 0 : index
    %222 = vector.load %arg7[%c0_62, %c0_63] : memref<1x32xf32, #tpu.memory_space<vmem>>, vector<1x32xf32>
    %223 = vector.broadcast %222 : vector<1x32xf32> to vector<8x32xf32>
    %224 = arith.addf %221, %223 : vector<8x32xf32>
    %225 = arith.truncf %224 : vector<8x32xf32> to vector<8x32xbf16>
    %c0_64 = arith.constant 0 : index
    %c0_65 = arith.constant 0 : index
    %226 = vector.load %arg8[%c0_64, %c0_65] : memref<32x384xbf16, #tpu.memory_space<vmem>>, vector<32x384xbf16>
    %cst_66 = arith.constant dense<0.000000e+00> : vector<8x384xf32>
    %227 = tpu.matmul %225, %226, %cst_66 {dimension_numbers = #tpu.dot_dimension_numbers<[1], [0], [0], [1], [0, 0, 1, 1], [], []>} : vector<8x32xbf16>, vector<32x384xbf16>, vector<8x384xf32> -> vector<8x384xf32>
    %c0_67 = arith.constant 0 : index
    %c0_68 = arith.constant 0 : index
    %228 = vector.load %arg10[%c0_67, %c0_68] : memref<1x384xf32, #tpu.memory_space<vmem>>, vector<1x384xf32>
    %229 = vector.broadcast %228 : vector<1x384xf32> to vector<8x384xf32>
    %230 = arith.addf %227, %229 : vector<8x384xf32>
    %cst_69 = arith.constant 0.000000e+00 : f32
    %231 = vector.broadcast %cst_69 : f32 to vector<8x128xf32>
    %232 = arith.truncf %231 : vector<8x128xf32> to vector<8x128xbf16>
    %cst_70 = arith.constant dense<0.000000e+00> : vector<8x384xf32>
    %233 = tpu.matmul %232, %11, %cst_70 {dimension_numbers = #tpu.dot_dimension_numbers<[1], [0], [0], [1], [0, 0, 1, 1], [], []>} : vector<8x128xbf16>, vector<128x384xbf16>, vector<8x384xf32> -> vector<8x384xf32>
    %234 = vector.extract_strided_slice %230 {offsets = [0, 0], sizes = [8, 256], strides = [1, 1]} : vector<8x384xf32> to vector<8x256xf32>
    %235 = vector.extract_strided_slice %233 {offsets = [0, 0], sizes = [8, 256], strides = [1, 1]} : vector<8x384xf32> to vector<8x256xf32>
    %236 = arith.addf %234, %235 : vector<8x256xf32>
    %237 = arith.negf %236 : vector<8x256xf32>
    %238 = math.exp %237 : vector<8x256xf32>
    %cst_71 = arith.constant 1.000000e+00 : f32
    %239 = vector.broadcast %cst_71 : f32 to vector<8x256xf32>
    %240 = arith.addf %239, %238 : vector<8x256xf32>
    %241 = arith.divf %239, %240 : vector<8x256xf32>
    %242 = vector.extract_strided_slice %241 {offsets = [0, 0], sizes = [8, 128], strides = [1, 1]} : vector<8x256xf32> to vector<8x128xf32>
    %243 = vector.extract_strided_slice %241 {offsets = [0, 128], sizes = [8, 128], strides = [1, 1]} : vector<8x256xf32> to vector<8x128xf32>
    %244 = vector.extract_strided_slice %230 {offsets = [0, 256], sizes = [8, 128], strides = [1, 1]} : vector<8x384xf32> to vector<8x128xf32>
    %245 = vector.extract_strided_slice %233 {offsets = [0, 256], sizes = [8, 128], strides = [1, 1]} : vector<8x384xf32> to vector<8x128xf32>
    %246 = arith.addf %245, %17 : vector<8x128xf32>
    %247 = arith.mulf %242, %246 : vector<8x128xf32>
    %248 = arith.addf %244, %247 : vector<8x128xf32>
    %249 = math.tanh %248 : vector<8x128xf32>
    %cst_72 = arith.constant 1.000000e+00 : f32
    %250 = vector.broadcast %cst_72 : f32 to vector<8x128xf32>
    %251 = arith.subf %250, %243 : vector<8x128xf32>
    %252 = arith.mulf %251, %249 : vector<8x128xf32>
    %253 = arith.mulf %243, %231 : vector<8x128xf32>
    %254 = arith.addf %252, %253 : vector<8x128xf32>
    %c0_73 = arith.constant 0 : index
    %c0_74 = arith.constant 0 : index
    %c0_75 = arith.constant 0 : index
    %255 = vector.load %arg16[%c0_73, %c0_74, %c0_75] : memref<8x8x128xf32, #tpu.memory_space<vmem>>, vector<8x1x128xf32>
    %256 = vector.shape_cast %255 : vector<8x1x128xf32> to vector<8x128xf32>
    %257 = vector.shape_cast %254 : vector<8x128xf32> to vector<8x1x128xf32>
    tpu.vector_store %arg16[%c0_73, %c0_74, %c0_75], %257 {strides = array<i32>} : memref<8x8x128xf32, #tpu.memory_space<vmem>>, vector<8x1x128xf32>,
    %258 = arith.truncf %254 : vector<8x128xf32> to vector<8x128xbf16>
    %cst_76 = arith.constant dense<0.000000e+00> : vector<8x384xf32>
    %259 = tpu.matmul %258, %11, %cst_76 {dimension_numbers = #tpu.dot_dimension_numbers<[1], [0], [0], [1], [0, 0, 1, 1], [], []>} : vector<8x128xbf16>, vector<128x384xbf16>, vector<8x384xf32> -> vector<8x384xf32>
    %260 = vector.extract_strided_slice %230 {offsets = [0, 0], sizes = [8, 256], strides = [1, 1]} : vector<8x384xf32> to vector<8x256xf32>
    %261 = vector.extract_strided_slice %259 {offsets = [0, 0], sizes = [8, 256], strides = [1, 1]} : vector<8x384xf32> to vector<8x256xf32>
    %262 = arith.addf %260, %261 : vector<8x256xf32>
    %263 = arith.negf %262 : vector<8x256xf32>
    %264 = math.exp %263 : vector<8x256xf32>
    %cst_77 = arith.constant 1.000000e+00 : f32
    %265 = vector.broadcast %cst_77 : f32 to vector<8x256xf32>
    %266 = arith.addf %265, %264 : vector<8x256xf32>
    %267 = arith.divf %265, %266 : vector<8x256xf32>
    %268 = vector.extract_strided_slice %267 {offsets = [0, 0], sizes = [8, 128], strides = [1, 1]} : vector<8x256xf32> to vector<8x128xf32>
    %269 = vector.extract_strided_slice %267 {offsets = [0, 128], sizes = [8, 128], strides = [1, 1]} : vector<8x256xf32> to vector<8x128xf32>
    %270 = vector.extract_strided_slice %230 {offsets = [0, 256], sizes = [8, 128], strides = [1, 1]} : vector<8x384xf32> to vector<8x128xf32>
    %271 = vector.extract_strided_slice %259 {offsets = [0, 256], sizes = [8, 128], strides = [1, 1]} : vector<8x384xf32> to vector<8x128xf32>
    %272 = arith.addf %271, %17 : vector<8x128xf32>
    %273 = arith.mulf %268, %272 : vector<8x128xf32>
    %274 = arith.addf %270, %273 : vector<8x128xf32>
    %275 = math.tanh %274 : vector<8x128xf32>
    %cst_78 = arith.constant 1.000000e+00 : f32
    %276 = vector.broadcast %cst_78 : f32 to vector<8x128xf32>
    %277 = arith.subf %276, %269 : vector<8x128xf32>
    %278 = arith.mulf %277, %275 : vector<8x128xf32>
    %279 = arith.mulf %269, %254 : vector<8x128xf32>
    %280 = arith.addf %278, %279 : vector<8x128xf32>
    %c0_79 = arith.constant 0 : index
    %c1_80 = arith.constant 1 : index
    %c0_81 = arith.constant 0 : index
    %281 = vector.load %arg16[%c0_79, %c1_80, %c0_81] : memref<8x8x128xf32, #tpu.memory_space<vmem>>, vector<8x1x128xf32>
    %282 = vector.shape_cast %281 : vector<8x1x128xf32> to vector<8x128xf32>
    %283 = vector.shape_cast %280 : vector<8x128xf32> to vector<8x1x128xf32>
    tpu.vector_store %arg16[%c0_79, %c1_80, %c0_81], %283 {strides = array<i32>} : memref<8x8x128xf32, #tpu.memory_space<vmem>>, vector<8x1x128xf32>,
    %284 = arith.truncf %280 : vector<8x128xf32> to vector<8x128xbf16>
    %cst_82 = arith.constant dense<0.000000e+00> : vector<8x384xf32>
    %285 = tpu.matmul %284, %11, %cst_82 {dimension_numbers = #tpu.dot_dimension_numbers<[1], [0], [0], [1], [0, 0, 1, 1], [], []>} : vector<8x128xbf16>, vector<128x384xbf16>, vector<8x384xf32> -> vector<8x384xf32>
    %286 = vector.extract_strided_slice %230 {offsets = [0, 0], sizes = [8, 256], strides = [1, 1]} : vector<8x384xf32> to vector<8x256xf32>
    %287 = vector.extract_strided_slice %285 {offsets = [0, 0], sizes = [8, 256], strides = [1, 1]} : vector<8x384xf32> to vector<8x256xf32>
    %288 = arith.addf %286, %287 : vector<8x256xf32>
    %289 = arith.negf %288 : vector<8x256xf32>
    %290 = math.exp %289 : vector<8x256xf32>
    %cst_83 = arith.constant 1.000000e+00 : f32
    %291 = vector.broadcast %cst_83 : f32 to vector<8x256xf32>
    %292 = arith.addf %291, %290 : vector<8x256xf32>
    %293 = arith.divf %291, %292 : vector<8x256xf32>
    %294 = vector.extract_strided_slice %293 {offsets = [0, 0], sizes = [8, 128], strides = [1, 1]} : vector<8x256xf32> to vector<8x128xf32>
    %295 = vector.extract_strided_slice %293 {offsets = [0, 128], sizes = [8, 128], strides = [1, 1]} : vector<8x256xf32> to vector<8x128xf32>
    %296 = vector.extract_strided_slice %230 {offsets = [0, 256], sizes = [8, 128], strides = [1, 1]} : vector<8x384xf32> to vector<8x128xf32>
    %297 = vector.extract_strided_slice %285 {offsets = [0, 256], sizes = [8, 128], strides = [1, 1]} : vector<8x384xf32> to vector<8x128xf32>
    %298 = arith.addf %297, %17 : vector<8x128xf32>
    %299 = arith.mulf %294, %298 : vector<8x128xf32>
    %300 = arith.addf %296, %299 : vector<8x128xf32>
    %301 = math.tanh %300 : vector<8x128xf32>
    %cst_84 = arith.constant 1.000000e+00 : f32
    %302 = vector.broadcast %cst_84 : f32 to vector<8x128xf32>
    %303 = arith.subf %302, %295 : vector<8x128xf32>
    %304 = arith.mulf %303, %301 : vector<8x128xf32>
    %305 = arith.mulf %295, %280 : vector<8x128xf32>
    %306 = arith.addf %304, %305 : vector<8x128xf32>
    %c0_85 = arith.constant 0 : index
    %c2_86 = arith.constant 2 : index
    %c0_87 = arith.constant 0 : index
    %307 = vector.load %arg16[%c0_85, %c2_86, %c0_87] : memref<8x8x128xf32, #tpu.memory_space<vmem>>, vector<8x1x128xf32>
    %308 = vector.shape_cast %307 : vector<8x1x128xf32> to vector<8x128xf32>
    %309 = vector.shape_cast %306 : vector<8x128xf32> to vector<8x1x128xf32>
    tpu.vector_store %arg16[%c0_85, %c2_86, %c0_87], %309 {strides = array<i32>} : memref<8x8x128xf32, #tpu.memory_space<vmem>>, vector<8x1x128xf32>,
    %310 = arith.truncf %306 : vector<8x128xf32> to vector<8x128xbf16>
    %cst_88 = arith.constant dense<0.000000e+00> : vector<8x384xf32>
    %311 = tpu.matmul %310, %11, %cst_88 {dimension_numbers = #tpu.dot_dimension_numbers<[1], [0], [0], [1], [0, 0, 1, 1], [], []>} : vector<8x128xbf16>, vector<128x384xbf16>, vector<8x384xf32> -> vector<8x384xf32>
    %312 = vector.extract_strided_slice %230 {offsets = [0, 0], sizes = [8, 256], strides = [1, 1]} : vector<8x384xf32> to vector<8x256xf32>
    %313 = vector.extract_strided_slice %311 {offsets = [0, 0], sizes = [8, 256], strides = [1, 1]} : vector<8x384xf32> to vector<8x256xf32>
    %314 = arith.addf %312, %313 : vector<8x256xf32>
    %315 = arith.negf %314 : vector<8x256xf32>
    %316 = math.exp %315 : vector<8x256xf32>
    %cst_89 = arith.constant 1.000000e+00 : f32
    %317 = vector.broadcast %cst_89 : f32 to vector<8x256xf32>
    %318 = arith.addf %317, %316 : vector<8x256xf32>
    %319 = arith.divf %317, %318 : vector<8x256xf32>
    %320 = vector.extract_strided_slice %319 {offsets = [0, 0], sizes = [8, 128], strides = [1, 1]} : vector<8x256xf32> to vector<8x128xf32>
    %321 = vector.extract_strided_slice %319 {offsets = [0, 128], sizes = [8, 128], strides = [1, 1]} : vector<8x256xf32> to vector<8x128xf32>
    %322 = vector.extract_strided_slice %230 {offsets = [0, 256], sizes = [8, 128], strides = [1, 1]} : vector<8x384xf32> to vector<8x128xf32>
    %323 = vector.extract_strided_slice %311 {offsets = [0, 256], sizes = [8, 128], strides = [1, 1]} : vector<8x384xf32> to vector<8x128xf32>
    %324 = arith.addf %323, %17 : vector<8x128xf32>
    %325 = arith.mulf %320, %324 : vector<8x128xf32>
    %326 = arith.addf %322, %325 : vector<8x128xf32>
    %327 = math.tanh %326 : vector<8x128xf32>
    %cst_90 = arith.constant 1.000000e+00 : f32
    %328 = vector.broadcast %cst_90 : f32 to vector<8x128xf32>
    %329 = arith.subf %328, %321 : vector<8x128xf32>
    %330 = arith.mulf %329, %327 : vector<8x128xf32>
    %331 = arith.mulf %321, %306 : vector<8x128xf32>
    %332 = arith.addf %330, %331 : vector<8x128xf32>
    %c0_91 = arith.constant 0 : index
    %c3_92 = arith.constant 3 : index
    %c0_93 = arith.constant 0 : index
    %333 = vector.load %arg16[%c0_91, %c3_92, %c0_93] : memref<8x8x128xf32, #tpu.memory_space<vmem>>, vector<8x1x128xf32>
    %334 = vector.shape_cast %333 : vector<8x1x128xf32> to vector<8x128xf32>
    %335 = vector.shape_cast %332 : vector<8x128xf32> to vector<8x1x128xf32>
    tpu.vector_store %arg16[%c0_91, %c3_92, %c0_93], %335 {strides = array<i32>} : memref<8x8x128xf32, #tpu.memory_space<vmem>>, vector<8x1x128xf32>,
    %336 = arith.truncf %332 : vector<8x128xf32> to vector<8x128xbf16>
    %cst_94 = arith.constant dense<0.000000e+00> : vector<8x384xf32>
    %337 = tpu.matmul %336, %11, %cst_94 {dimension_numbers = #tpu.dot_dimension_numbers<[1], [0], [0], [1], [0, 0, 1, 1], [], []>} : vector<8x128xbf16>, vector<128x384xbf16>, vector<8x384xf32> -> vector<8x384xf32>
    %338 = vector.extract_strided_slice %230 {offsets = [0, 0], sizes = [8, 256], strides = [1, 1]} : vector<8x384xf32> to vector<8x256xf32>
    %339 = vector.extract_strided_slice %337 {offsets = [0, 0], sizes = [8, 256], strides = [1, 1]} : vector<8x384xf32> to vector<8x256xf32>
    %340 = arith.addf %338, %339 : vector<8x256xf32>
    %341 = arith.negf %340 : vector<8x256xf32>
    %342 = math.exp %341 : vector<8x256xf32>
    %cst_95 = arith.constant 1.000000e+00 : f32
    %343 = vector.broadcast %cst_95 : f32 to vector<8x256xf32>
    %344 = arith.addf %343, %342 : vector<8x256xf32>
    %345 = arith.divf %343, %344 : vector<8x256xf32>
    %346 = vector.extract_strided_slice %345 {offsets = [0, 0], sizes = [8, 128], strides = [1, 1]} : vector<8x256xf32> to vector<8x128xf32>
    %347 = vector.extract_strided_slice %345 {offsets = [0, 128], sizes = [8, 128], strides = [1, 1]} : vector<8x256xf32> to vector<8x128xf32>
    %348 = vector.extract_strided_slice %230 {offsets = [0, 256], sizes = [8, 128], strides = [1, 1]} : vector<8x384xf32> to vector<8x128xf32>
    %349 = vector.extract_strided_slice %337 {offsets = [0, 256], sizes = [8, 128], strides = [1, 1]} : vector<8x384xf32> to vector<8x128xf32>
    %350 = arith.addf %349, %17 : vector<8x128xf32>
    %351 = arith.mulf %346, %350 : vector<8x128xf32>
    %352 = arith.addf %348, %351 : vector<8x128xf32>
    %353 = math.tanh %352 : vector<8x128xf32>
    %cst_96 = arith.constant 1.000000e+00 : f32
    %354 = vector.broadcast %cst_96 : f32 to vector<8x128xf32>
    %355 = arith.subf %354, %347 : vector<8x128xf32>
    %356 = arith.mulf %355, %353 : vector<8x128xf32>
    %357 = arith.mulf %347, %332 : vector<8x128xf32>
    %358 = arith.addf %356, %357 : vector<8x128xf32>
    %c0_97 = arith.constant 0 : index
    %c4_98 = arith.constant 4 : index
    %c0_99 = arith.constant 0 : index
    %359 = vector.load %arg16[%c0_97, %c4_98, %c0_99] : memref<8x8x128xf32, #tpu.memory_space<vmem>>, vector<8x1x128xf32>
    %360 = vector.shape_cast %359 : vector<8x1x128xf32> to vector<8x128xf32>
    %361 = vector.shape_cast %358 : vector<8x128xf32> to vector<8x1x128xf32>
    tpu.vector_store %arg16[%c0_97, %c4_98, %c0_99], %361 {strides = array<i32>} : memref<8x8x128xf32, #tpu.memory_space<vmem>>, vector<8x1x128xf32>,
    %362 = arith.truncf %358 : vector<8x128xf32> to vector<8x128xbf16>
    %cst_100 = arith.constant dense<0.000000e+00> : vector<8x384xf32>
    %363 = tpu.matmul %362, %11, %cst_100 {dimension_numbers = #tpu.dot_dimension_numbers<[1], [0], [0], [1], [0, 0, 1, 1], [], []>} : vector<8x128xbf16>, vector<128x384xbf16>, vector<8x384xf32> -> vector<8x384xf32>
    %364 = vector.extract_strided_slice %230 {offsets = [0, 0], sizes = [8, 256], strides = [1, 1]} : vector<8x384xf32> to vector<8x256xf32>
    %365 = vector.extract_strided_slice %363 {offsets = [0, 0], sizes = [8, 256], strides = [1, 1]} : vector<8x384xf32> to vector<8x256xf32>
    %366 = arith.addf %364, %365 : vector<8x256xf32>
    %367 = arith.negf %366 : vector<8x256xf32>
    %368 = math.exp %367 : vector<8x256xf32>
    %cst_101 = arith.constant 1.000000e+00 : f32
    %369 = vector.broadcast %cst_101 : f32 to vector<8x256xf32>
    %370 = arith.addf %369, %368 : vector<8x256xf32>
    %371 = arith.divf %369, %370 : vector<8x256xf32>
    %372 = vector.extract_strided_slice %371 {offsets = [0, 0], sizes = [8, 128], strides = [1, 1]} : vector<8x256xf32> to vector<8x128xf32>
    %373 = vector.extract_strided_slice %371 {offsets = [0, 128], sizes = [8, 128], strides = [1, 1]} : vector<8x256xf32> to vector<8x128xf32>
    %374 = vector.extract_strided_slice %230 {offsets = [0, 256], sizes = [8, 128], strides = [1, 1]} : vector<8x384xf32> to vector<8x128xf32>
    %375 = vector.extract_strided_slice %363 {offsets = [0, 256], sizes = [8, 128], strides = [1, 1]} : vector<8x384xf32> to vector<8x128xf32>
    %376 = arith.addf %375, %17 : vector<8x128xf32>
    %377 = arith.mulf %372, %376 : vector<8x128xf32>
    %378 = arith.addf %374, %377 : vector<8x128xf32>
    %379 = math.tanh %378 : vector<8x128xf32>
    %cst_102 = arith.constant 1.000000e+00 : f32
    %380 = vector.broadcast %cst_102 : f32 to vector<8x128xf32>
    %381 = arith.subf %380, %373 : vector<8x128xf32>
    %382 = arith.mulf %381, %379 : vector<8x128xf32>
    %383 = arith.mulf %373, %358 : vector<8x128xf32>
    %384 = arith.addf %382, %383 : vector<8x128xf32>
    %c0_103 = arith.constant 0 : index
    %c5_104 = arith.constant 5 : index
    %c0_105 = arith.constant 0 : index
    %385 = vector.load %arg16[%c0_103, %c5_104, %c0_105] : memref<8x8x128xf32, #tpu.memory_space<vmem>>, vector<8x1x128xf32>
    %386 = vector.shape_cast %385 : vector<8x1x128xf32> to vector<8x128xf32>
    %387 = vector.shape_cast %384 : vector<8x128xf32> to vector<8x1x128xf32>
    tpu.vector_store %arg16[%c0_103, %c5_104, %c0_105], %387 {strides = array<i32>} : memref<8x8x128xf32, #tpu.memory_space<vmem>>, vector<8x1x128xf32>,
    %388 = arith.truncf %384 : vector<8x128xf32> to vector<8x128xbf16>
    %cst_106 = arith.constant dense<0.000000e+00> : vector<8x384xf32>
    %389 = tpu.matmul %388, %11, %cst_106 {dimension_numbers = #tpu.dot_dimension_numbers<[1], [0], [0], [1], [0, 0, 1, 1], [], []>} : vector<8x128xbf16>, vector<128x384xbf16>, vector<8x384xf32> -> vector<8x384xf32>
    %390 = vector.extract_strided_slice %230 {offsets = [0, 0], sizes = [8, 256], strides = [1, 1]} : vector<8x384xf32> to vector<8x256xf32>
    %391 = vector.extract_strided_slice %389 {offsets = [0, 0], sizes = [8, 256], strides = [1, 1]} : vector<8x384xf32> to vector<8x256xf32>
    %392 = arith.addf %390, %391 : vector<8x256xf32>
    %393 = arith.negf %392 : vector<8x256xf32>
    %394 = math.exp %393 : vector<8x256xf32>
    %cst_107 = arith.constant 1.000000e+00 : f32
    %395 = vector.broadcast %cst_107 : f32 to vector<8x256xf32>
    %396 = arith.addf %395, %394 : vector<8x256xf32>
    %397 = arith.divf %395, %396 : vector<8x256xf32>
    %398 = vector.extract_strided_slice %397 {offsets = [0, 0], sizes = [8, 128], strides = [1, 1]} : vector<8x256xf32> to vector<8x128xf32>
    %399 = vector.extract_strided_slice %397 {offsets = [0, 128], sizes = [8, 128], strides = [1, 1]} : vector<8x256xf32> to vector<8x128xf32>
    %400 = vector.extract_strided_slice %230 {offsets = [0, 256], sizes = [8, 128], strides = [1, 1]} : vector<8x384xf32> to vector<8x128xf32>
    %401 = vector.extract_strided_slice %389 {offsets = [0, 256], sizes = [8, 128], strides = [1, 1]} : vector<8x384xf32> to vector<8x128xf32>
    %402 = arith.addf %401, %17 : vector<8x128xf32>
    %403 = arith.mulf %398, %402 : vector<8x128xf32>
    %404 = arith.addf %400, %403 : vector<8x128xf32>
    %405 = math.tanh %404 : vector<8x128xf32>
    %cst_108 = arith.constant 1.000000e+00 : f32
    %406 = vector.broadcast %cst_108 : f32 to vector<8x128xf32>
    %407 = arith.subf %406, %399 : vector<8x128xf32>
    %408 = arith.mulf %407, %405 : vector<8x128xf32>
    %409 = arith.mulf %399, %384 : vector<8x128xf32>
    %410 = arith.addf %408, %409 : vector<8x128xf32>
    %c0_109 = arith.constant 0 : index
    %c6_110 = arith.constant 6 : index
    %c0_111 = arith.constant 0 : index
    %411 = vector.load %arg16[%c0_109, %c6_110, %c0_111] : memref<8x8x128xf32, #tpu.memory_space<vmem>>, vector<8x1x128xf32>
    %412 = vector.shape_cast %411 : vector<8x1x128xf32> to vector<8x128xf32>
    %413 = vector.shape_cast %410 : vector<8x128xf32> to vector<8x1x128xf32>
    tpu.vector_store %arg16[%c0_109, %c6_110, %c0_111], %413 {strides = array<i32>} : memref<8x8x128xf32, #tpu.memory_space<vmem>>, vector<8x1x128xf32>,
    %414 = arith.truncf %410 : vector<8x128xf32> to vector<8x128xbf16>
    %cst_112 = arith.constant dense<0.000000e+00> : vector<8x384xf32>
    %415 = tpu.matmul %414, %11, %cst_112 {dimension_numbers = #tpu.dot_dimension_numbers<[1], [0], [0], [1], [0, 0, 1, 1], [], []>} : vector<8x128xbf16>, vector<128x384xbf16>, vector<8x384xf32> -> vector<8x384xf32>
    %416 = vector.extract_strided_slice %230 {offsets = [0, 0], sizes = [8, 256], strides = [1, 1]} : vector<8x384xf32> to vector<8x256xf32>
    %417 = vector.extract_strided_slice %415 {offsets = [0, 0], sizes = [8, 256], strides = [1, 1]} : vector<8x384xf32> to vector<8x256xf32>
    %418 = arith.addf %416, %417 : vector<8x256xf32>
    %419 = arith.negf %418 : vector<8x256xf32>
    %420 = math.exp %419 : vector<8x256xf32>
    %cst_113 = arith.constant 1.000000e+00 : f32
    %421 = vector.broadcast %cst_113 : f32 to vector<8x256xf32>
    %422 = arith.addf %421, %420 : vector<8x256xf32>
    %423 = arith.divf %421, %422 : vector<8x256xf32>
    %424 = vector.extract_strided_slice %423 {offsets = [0, 0], sizes = [8, 128], strides = [1, 1]} : vector<8x256xf32> to vector<8x128xf32>
    %425 = vector.extract_strided_slice %423 {offsets = [0, 128], sizes = [8, 128], strides = [1, 1]} : vector<8x256xf32> to vector<8x128xf32>
    %426 = vector.extract_strided_slice %230 {offsets = [0, 256], sizes = [8, 128], strides = [1, 1]} : vector<8x384xf32> to vector<8x128xf32>
    %427 = vector.extract_strided_slice %415 {offsets = [0, 256], sizes = [8, 128], strides = [1, 1]} : vector<8x384xf32> to vector<8x128xf32>
    %428 = arith.addf %427, %17 : vector<8x128xf32>
    %429 = arith.mulf %424, %428 : vector<8x128xf32>
    %430 = arith.addf %426, %429 : vector<8x128xf32>
    %431 = math.tanh %430 : vector<8x128xf32>
    %cst_114 = arith.constant 1.000000e+00 : f32
    %432 = vector.broadcast %cst_114 : f32 to vector<8x128xf32>
    %433 = arith.subf %432, %425 : vector<8x128xf32>
    %434 = arith.mulf %433, %431 : vector<8x128xf32>
    %435 = arith.mulf %425, %410 : vector<8x128xf32>
    %436 = arith.addf %434, %435 : vector<8x128xf32>
    %c0_115 = arith.constant 0 : index
    %c7_116 = arith.constant 7 : index
    %c0_117 = arith.constant 0 : index
    %437 = vector.load %arg16[%c0_115, %c7_116, %c0_117] : memref<8x8x128xf32, #tpu.memory_space<vmem>>, vector<8x1x128xf32>
    %438 = vector.shape_cast %437 : vector<8x1x128xf32> to vector<8x128xf32>
    %439 = vector.shape_cast %436 : vector<8x128xf32> to vector<8x1x128xf32>
    tpu.vector_store %arg16[%c0_115, %c7_116, %c0_117], %439 {strides = array<i32>} : memref<8x8x128xf32, #tpu.memory_space<vmem>>, vector<8x1x128xf32>,
    %c0_118 = arith.constant 0 : index
    %c0_119 = arith.constant 0 : index
    %c0_120 = arith.constant 0 : index
    %440 = vector.load %arg16[%c0_118, %c0_119, %c0_120] : memref<8x8x128xf32, #tpu.memory_space<vmem>>, vector<8x8x128xf32>
    %441 = vector.shape_cast %440 : vector<8x8x128xf32> to vector<64x128xf32>
    %442 = arith.truncf %441 : vector<64x128xf32> to vector<64x128xbf16>
    %c0_121 = arith.constant 0 : index
    %c0_122 = arith.constant 0 : index
    %443 = vector.load %arg12[%c0_121, %c0_122] : memref<128x64xbf16, #tpu.memory_space<vmem>>, vector<128x64xbf16>
    %cst_123 = arith.constant dense<0.000000e+00> : vector<64x64xf32>
    %444 = tpu.matmul %442, %443, %cst_123 {dimension_numbers = #tpu.dot_dimension_numbers<[1], [0], [0], [1], [0, 0, 1, 1], [], []>} : vector<64x128xbf16>, vector<128x64xbf16>, vector<64x64xf32> -> vector<64x64xf32>
    %c0_124 = arith.constant 0 : index
    %c0_125 = arith.constant 0 : index
    %445 = vector.load %arg13[%c0_124, %c0_125] : memref<1x64xf32, #tpu.memory_space<vmem>>, vector<1x64xf32>
    %446 = vector.broadcast %445 : vector<1x64xf32> to vector<64x64xf32>
    %447 = arith.addf %444, %446 : vector<64x64xf32>
    %448 = vector.shape_cast %447 : vector<64x64xf32> to vector<8x8x64xf32>
    %c0_126 = arith.constant 0 : index
    %c0_127 = arith.constant 0 : index
    %c0_128 = arith.constant 0 : index
    %449 = vector.load %arg14[%c0_126, %c0_127, %c0_128] : memref<8x8x64xf32, #tpu.memory_space<vmem>>, vector<8x8x64xf32>
    tpu.vector_store %arg14[%c0_126, %c0_127, %c0_128], %448 {strides = array<i32>} : memref<8x8x64xf32, #tpu.memory_space<vmem>>, vector<8x8x64xf32>,
    return
  }
  func.func @transform_0(%arg0: i32) -> (i32, i32, i32) {
    %c0_i32 = arith.constant 0 : i32
    %c0_i32_0 = arith.constant 0 : i32
    %c0_i32_1 = arith.constant 0 : i32
    return %arg0, %c0_i32, %c0_i32_0 : i32, i32, i32
  }
  func.func @transform_1(%arg0: i32) -> (i32, i32) {
    %c0_i32 = arith.constant 0 : i32
    %c0_i32_0 = arith.constant 0 : i32
    %c0_i32_1 = arith.constant 0 : i32
    return %c0_i32, %c0_i32_0 : i32, i32
  }
  func.func @transform_2(%arg0: i32) -> (i32, i32) {
    %c0_i32 = arith.constant 0 : i32
    %c0_i32_0 = arith.constant 0 : i32
    %c0_i32_1 = arith.constant 0 : i32
    return %c0_i32, %c0_i32_0 : i32, i32
  }
  func.func @transform_3(%arg0: i32) -> (i32, i32) {
    %c0_i32 = arith.constant 0 : i32
    %c0_i32_0 = arith.constant 0 : i32
    %c0_i32_1 = arith.constant 0 : i32
    return %c0_i32, %c0_i32_0 : i32, i32
  }
  func.func @transform_4(%arg0: i32) -> (i32, i32) {
    %c0_i32 = arith.constant 0 : i32
    %c0_i32_0 = arith.constant 0 : i32
    %c0_i32_1 = arith.constant 0 : i32
    return %c0_i32, %c0_i32_0 : i32, i32
  }
  func.func @transform_5(%arg0: i32) -> (i32, i32) {
    %c0_i32 = arith.constant 0 : i32
    %c0_i32_0 = arith.constant 0 : i32
    %c0_i32_1 = arith.constant 0 : i32
    return %c0_i32, %c0_i32_0 : i32, i32
  }
  func.func @transform_6(%arg0: i32) -> (i32, i32) {
    %c0_i32 = arith.constant 0 : i32
    %c0_i32_0 = arith.constant 0 : i32
    %c0_i32_1 = arith.constant 0 : i32
    return %c0_i32, %c0_i32_0 : i32, i32
  }
  func.func @transform_7(%arg0: i32) -> (i32, i32) {
    %c0_i32 = arith.constant 0 : i32
    %c0_i32_0 = arith.constant 0 : i32
    %c0_i32_1 = arith.constant 0 : i32
    return %c0_i32, %c0_i32_0 : i32, i32
  }
  func.func @transform_8(%arg0: i32) -> (i32, i32) {
    %c0_i32 = arith.constant 0 : i32
    %c0_i32_0 = arith.constant 0 : i32
    %c0_i32_1 = arith.constant 0 : i32
    return %c0_i32, %c0_i32_0 : i32, i32
  }
  func.func @transform_9(%arg0: i32) -> (i32, i32) {
    %c0_i32 = arith.constant 0 : i32
    %c0_i32_0 = arith.constant 0 : i32
    %c0_i32_1 = arith.constant 0 : i32
    return %c0_i32, %c0_i32_0 : i32, i32
  }
  func.func @transform_10(%arg0: i32) -> (i32, i32) {
    %c0_i32 = arith.constant 0 : i32
    %c0_i32_0 = arith.constant 0 : i32
    %c0_i32_1 = arith.constant 0 : i32
    return %c0_i32, %c0_i32_0 : i32, i32
  }
  func.func @transform_11(%arg0: i32) -> (i32, i32) {
    %c0_i32 = arith.constant 0 : i32
    %c0_i32_0 = arith.constant 0 : i32
    %c0_i32_1 = arith.constant 0 : i32
    return %c0_i32, %c0_i32_0 : i32, i32
  }
  func.func @transform_12(%arg0: i32) -> (i32, i32) {
    %c0_i32 = arith.constant 0 : i32
    %c0_i32_0 = arith.constant 0 : i32
    %c0_i32_1 = arith.constant 0 : i32
    return %c0_i32, %c0_i32_0 : i32, i32
  }
  func.func @transform_13(%arg0: i32) -> (i32, i32, i32) {
    %c0_i32 = arith.constant 0 : i32
    %c0_i32_0 = arith.constant 0 : i32
    %c0_i32_1 = arith.constant 0 : i32
    return %arg0, %c0_i32, %c0_i32_0 : i32, i32, i32
  }
}

</mosaic_0001>

<llo_original>
// kernel: sequence_autoencoder_forward.1
$region0: #{sequence_autoencoder_forward.1}
  #allocation0 [shape = 'u32[]', space=smem, size = 0x4, offset = 0x4, fixed_abs, tag = 'smem constant byte address 0x4 - core index']
  #allocation1 [shape = 'u32[144,128]{1,0:T(1,128)}', space=vmem, size = 0x12000, scoped, tag = 'internal scratch']
  #allocation2 [shape = 'f32[8,8,384]{2,1,0:T(8,128)}', space=vmem, size = 0x18000, scoped, tag = 'scratch operand']
  #allocation3 [shape = 'f32[8,8,128]{2,1,0:T(8,128)}', space=vmem, size = 0x8000, scoped, tag = 'scratch operand']
  %s0 = inlined_call_operand.vmem [shape: f32[8,8,64], index: 0, kind: input, shape index: {}]
  %s1 = inlined_call_operand.vmem [shape: bf16[64,384], index: 1, kind: input, shape index: {}]
  %s2 = inlined_call_operand.vmem [shape: bf16[128,384], index: 2, kind: input, shape index: {}]
  %s3 = inlined_call_operand.vmem [shape: f32[1,384], index: 3, kind: input, shape index: {}]
  %s4 = inlined_call_operand.vmem [shape: f32[1,128], index: 4, kind: input, shape index: {}]
  %s5 = inlined_call_operand.vmem [shape: bf16[128,32], index: 5, kind: input, shape index: {}]
  %s6 = inlined_call_operand.vmem [shape: f32[1,32], index: 6, kind: input, shape index: {}]
  %s7 = inlined_call_operand.vmem [shape: bf16[32,384], index: 7, kind: input, shape index: {}]
  %s8 = inlined_call_operand.vmem [shape: bf16[128,384], index: 8, kind: input, shape index: {}]
  %s9 = inlined_call_operand.vmem [shape: f32[1,384], index: 9, kind: input, shape index: {}]
  %s10 = inlined_call_operand.vmem [shape: f32[1,128], index: 10, kind: input, shape index: {}]
  %s11 = inlined_call_operand.vmem [shape: bf16[128,64], index: 11, kind: input, shape index: {}]
  %s12 = inlined_call_operand.vmem [shape: f32[1,64], index: 12, kind: input, shape index: {}]
  %s13 = inlined_call_operand.vmem [shape: f32[8,8,64], index: 13, kind: output, shape index: {}]
  %s14 = sld [smem:[#allocation0]]
  $region62: #{sequence_autoencoder_forward.1} parent=0
    _
  %s16 = ssub.s32 1, %s14
  %s17 = scalar_select 0, %s16, %s14
  // Predicated region
  $region2: #{sequence_autoencoder_forward.1} parent=0 // pred_check
    _
  $region3: #{sequence_autoencoder_forward.1} parent=0 // pred_check_branch
    %19 = sbr.rel (0) target = $region5
  $region4: #{sequence_autoencoder_forward.1} parent=0 // pred_region
    _
  $region5: #{sequence_autoencoder_forward.1} parent=0 // pred_fallthru
    _
  // Predicated region
  $region6: #{sequence_autoencoder_forward.1} parent=0 // pred_check
    _
  $region7: #{sequence_autoencoder_forward.1} parent=0 // pred_check_branch
    %21 = sbr.rel (0) target = $region9
  $region8: #{sequence_autoencoder_forward.1} parent=0 // pred_region
    _
  $region9: #{sequence_autoencoder_forward.1} parent=0 // pred_fallthru
    _
  // Predicated region
  $region10: #{sequence_autoencoder_forward.1} parent=0 // pred_check
    _
  $region11: #{sequence_autoencoder_forward.1} parent=0 // pred_check_branch
    %23 = sbr.rel (0) target = $region13
  $region12: #{sequence_autoencoder_forward.1} parent=0 // pred_region
    _
  $region13: #{sequence_autoencoder_forward.1} parent=0 // pred_fallthru
    _
  // Predicated region
  $region14: #{sequence_autoencoder_forward.1} parent=0 // pred_check
    _
  $region15: #{sequence_autoencoder_forward.1} parent=0 // pred_check_branch
    %25 = sbr.rel (0) target = $region17
  $region16: #{sequence_autoencoder_forward.1} parent=0 // pred_region
    _
  $region17: #{sequence_autoencoder_forward.1} parent=0 // pred_fallthru
    _
  // Predicated region
  $region18: #{sequence_autoencoder_forward.1} parent=0 // pred_check
    _
  $region19: #{sequence_autoencoder_forward.1} parent=0 // pred_check_branch
    %27 = sbr.rel (0) target = $region21
  $region20: #{sequence_autoencoder_forward.1} parent=0 // pred_region
    _
  $region21: #{sequence_autoencoder_forward.1} parent=0 // pred_fallthru
    _
  // Predicated region
  $region22: #{sequence_autoencoder_forward.1} parent=0 // pred_check
    _
  $region23: #{sequence_autoencoder_forward.1} parent=0 // pred_check_branch
    %29 = sbr.rel (0) target = $region25
  $region24: #{sequence_autoencoder_forward.1} parent=0 // pred_region
    _
  $region25: #{sequence_autoencoder_forward.1} parent=0 // pred_fallthru
    _
  // Predicated region
  $region26: #{sequence_autoencoder_forward.1} parent=0 // pred_check
    _
  $region27: #{sequence_autoencoder_forward.1} parent=0 // pred_check_branch
    %31 = sbr.rel (0) target = $region29
  $region28: #{sequence_autoencoder_forward.1} parent=0 // pred_region
    _
  $region29: #{sequence_autoencoder_forward.1} parent=0 // pred_fallthru
    _
  // Predicated region
  $region30: #{sequence_autoencoder_forward.1} parent=0 // pred_check
    _
  $region31: #{sequence_autoencoder_forward.1} parent=0 // pred_check_branch
    %33 = sbr.rel (0) target = $region33
  $region32: #{sequence_autoencoder_forward.1} parent=0 // pred_region
    _
  $region33: #{sequence_autoencoder_forward.1} parent=0 // pred_fallthru
    _
  // Predicated region
  $region34: #{sequence_autoencoder_forward.1} parent=0 // pred_check
    _
  $region35: #{sequence_autoencoder_forward.1} parent=0 // pred_check_branch
    %35 = sbr.rel (0) target = $region37
  $region36: #{sequence_autoencoder_forward.1} parent=0 // pred_region
    _
  $region37: #{sequence_autoencoder_forward.1} parent=0 // pred_fallthru
    _
  // Predicated region
  $region38: #{sequence_autoencoder_forward.1} parent=0 // pred_check
    _
  $region39: #{sequence_autoencoder_forward.1} parent=0 // pred_check_branch
    %37 = sbr.rel (0) target = $region41
  $region40: #{sequence_autoencoder_forward.1} parent=0 // pred_region
    _
  $region41: #{sequence_autoencoder_forward.1} parent=0 // pred_fallthru
    _
  // Predicated region
  $region42: #{sequence_autoencoder_forward.1} parent=0 // pred_check
    _
  $region43: #{sequence_autoencoder_forward.1} parent=0 // pred_check_branch
    %39 = sbr.rel (0) target = $region45
  $region44: #{sequence_autoencoder_forward.1} parent=0 // pred_region
    _
  $region45: #{sequence_autoencoder_forward.1} parent=0 // pred_fallthru
    _
  // Predicated region
  $region46: #{sequence_autoencoder_forward.1} parent=0 // pred_check
    _
  $region47: #{sequence_autoencoder_forward.1} parent=0 // pred_check_branch
    %41 = sbr.rel (0) target = $region49
  $region48: #{sequence_autoencoder_forward.1} parent=0 // pred_region
    _
  $region49: #{sequence_autoencoder_forward.1} parent=0 // pred_fallthru
    _
  // Predicated region
  $region50: #{sequence_autoencoder_forward.1} parent=0 // pred_check
    _
  $region51: #{sequence_autoencoder_forward.1} parent=0 // pred_check_branch
    %43 = sbr.rel (0) target = $region53
  $region52: #{sequence_autoencoder_forward.1} parent=0 // pred_region
    _
  $region53: #{sequence_autoencoder_forward.1} parent=0 // pred_fallthru
    _
  %v45 = vld [vmem:[%s0] sm:$0xff]
  %v46 = vld [vmem:[%s0 + $0x8] sm:$0xff]
  %v47 = vld [vmem:[%s0 + $0x10] sm:$0xff]
  %v48 = vld [vmem:[%s0 + $0x18] sm:$0xff]
  %v49 = vld [vmem:[%s0 + $0x20] sm:$0xff]
  %v50 = vld [vmem:[%s0 + $0x28] sm:$0xff]
  %v51 = vld [vmem:[%s0 + $0x30] sm:$0xff]
  %v52 = vld [vmem:[%s0 + $0x38] sm:$0xff]
  %v53 = vpack.c.bf16 %v46, %v45
  %v54 = vpack.c.bf16 %v48, %v47
  %v55 = vpack.c.bf16 %v50, %v49
  %v56 = vpack.c.bf16 %v52, %v51
  %v57 = vld [vmem:[%s1] sm:$0xff]
  %v58 = vld [vmem:[%s1 + $0x8] sm:$0xf]
  %v59 = vld [vmem:[%s1 + $0xc] sm:$0xff]
  %v60 = vld [vmem:[%s1 + $0x14] sm:$0xf]
  %v61 = vld [vmem:[%s1 + $0x18] sm:$0xff]
  %v62 = vld [vmem:[%s1 + $0x20] sm:$0xf]
  %v63 = vld [vmem:[%s1 + $0x24] sm:$0xff]
  %v64 = vld [vmem:[%s1 + $0x2c] sm:$0xf]
  %v65 = vld [vmem:[%s1 + $0x30] sm:$0xff]
  %v66 = vld [vmem:[%s1 + $0x38] sm:$0xf]
  %v67 = vld [vmem:[%s1 + $0x3c] sm:$0xff]
  %v68 = vld [vmem:[%s1 + $0x44] sm:$0xf]
  %v69 = vld [vmem:[%s1 + $0x48] sm:$0xff]
  %v70 = vld [vmem:[%s1 + $0x50] sm:$0xf]
  %v71 = vld [vmem:[%s1 + $0x54] sm:$0xff]
  %v72 = vld [vmem:[%s1 + $0x5c] sm:$0xf]
  %v73 = vld [vmem:[%s3] sm:$0x7]
  %v75 = vlaneseq
  %v76 = vshrl.u32 %v75, 7
  %v77 = vsub.s32 0, %v76
  %v78 = vrot.slane %v73, %v77
  %v79 = vlaneseq
  %v80 = vshrl.u32 %v79, 7
  %v81 = vsub.s32 1, %v80
  %v82 = vrot.slane %v73, %v81
  %v83 = vlaneseq
  %v84 = vshrl.u32 %v83, 7
  %v85 = vsub.s32 2, %v84
  %v86 = vrot.slane %v73, %v85
  %v106 = vunpack.c.l.b16 %v57
  %v107 = vunpack.c.h.b16 %v57
  %v108 = vunpack.c.l.b16 %v58
  %v109 = vunpack.c.l.b16 %v59
  %v110 = vunpack.c.h.b16 %v59
  %v111 = vunpack.c.l.b16 %v60
  %v112 = vunpack.c.l.b16 %v61
  %v113 = vunpack.c.h.b16 %v61
  %v114 = vunpack.c.l.b16 %v62
  %v115 = vunpack.c.l.b16 %v63
  %v116 = vunpack.c.h.b16 %v63
  %v117 = vunpack.c.l.b16 %v64
  %v118 = vunpack.c.l.b16 %v65
  %v119 = vunpack.c.h.b16 %v65
  %v120 = vunpack.c.l.b16 %v66
  %v121 = vunpack.c.l.b16 %v67
  %v122 = vunpack.c.h.b16 %v67
  %v123 = vunpack.c.l.b16 %v68
  %v124 = vunpack.c.l.b16 %v69
  %v125 = vunpack.c.h.b16 %v69
  %v126 = vunpack.c.l.b16 %v70
  %v127 = vunpack.c.l.b16 %v71
  %v128 = vunpack.c.h.b16 %v71
  %v129 = vunpack.c.l.b16 %v72
  %v130 = vpack.c.b16 %v109, %v106
  %v131 = vpack.c.b16 %v110, %v107
  %v132 = vpack.c.b16 %v111, %v108
  %v133 = vpack.c.b16 %v115, %v112
  %v134 = vpack.c.b16 %v116, %v113
  %v135 = vpack.c.b16 %v117, %v114
  %v136 = vpack.c.b16 %v121, %v118
  %v137 = vpack.c.b16 %v122, %v119
  %v138 = vpack.c.b16 %v123, %v120
  %v139 = vpack.c.b16 %v127, %v124
  %v140 = vpack.c.b16 %v128, %v125
  %v141 = vpack.c.b16 %v129, %v126
  %vm154 = vcmask 523264
  %v156 = vsel %vm154, %v53, 0
  %v159 = vsel %vm154, %v54, 0
  %v162 = vsel %vm154, %v55, 0
  %v165 = vsel %vm154, %v56, 0
  %167 = vmatprep.subr.bf16.mxu0 0
  %168 = vmatpush1.bf16.msra.mxu0 0
  %169 = vmatprep.subr.bf16.mxu0 0
  %170 = vmatpush1.bf16.msra.mxu0 0
  %171 = vmatprep.subr.bf16.mxu0 0
  %172 = vmatpush1.bf16.msra.mxu0 0
  %173 = vmatprep.subr.bf16.mxu0 0
  %174 = vmatpush1.bf16.msra.mxu0 0
  %175 = vmatprep.subr.bf16.mxu0 %v140
  %176 = vmatpush1.bf16.msra.mxu0 %v139
  %177 = vmatprep.subr.bf16.mxu0 %v137
  %178 = vmatpush1.bf16.msra.mxu0 %v136
  %179 = vmatprep.subr.bf16.mxu0 %v134
  %180 = vmatpush1.bf16.msra.mxu0 %v133
  %181 = vmatprep.subr.bf16.mxu0 %v131
  %182 = vmatpush1.bf16.msra.mxu0 %v130
  %183 = vmatprep.subr.bf16.mxu0 0
  %184 = vmatpush2.bf16.msra.mxu0 0
  %185 = vmatprep.subr.bf16.mxu0 0
  %186 = vmatpush2.bf16.msra.mxu0 0
  %187 = vmatprep.subr.bf16.mxu0 0
  %188 = vmatpush2.bf16.msra.mxu0 0
  %189 = vmatprep.subr.bf16.mxu0 0
  %190 = vmatpush2.bf16.msra.mxu0 0
  %191 = vmatprep.subr.bf16.mxu0 0
  %192 = vmatpush2.bf16.msra.mxu0 0
  %193 = vmatprep.subr.bf16.mxu0 0
  %194 = vmatpush2.bf16.msra.mxu0 0
  %195 = vmatprep.subr.bf16.mxu0 0
  %196 = vmatpush2.bf16.msra.mxu0 0
  %197 = vmatprep.subr.bf16.mxu0 0
  %198 = vmatpush2.bf16.msra.mxu0 0
  %199 = vmatprep.mubr.bf16.mxu0 0
  %200 = vmatmul.mubr.bf16.gmra.mxu0 %v156
  %v201 = vpop.f32.mrf.mxu0
  %v202 = vadd.f32 %v78, %v201
  %v203 = vpop.f32.mrf.mxu0
  %v204 = vadd.f32 %v82, %v203
  %v205 = vpop.f32.mrf.mxu0
  %v206 = vadd.f32 %v78, %v205
  %v207 = vpop.f32.mrf.mxu0
  %v208 = vadd.f32 %v82, %v207
  %209 = vmatprep.mubr.bf16.mxu0 0
  %210 = vmatmul.mubr.bf16.gmra.mxu0 %v159
  %v211 = vpop.f32.mrf.mxu0
  %v212 = vadd.f32 %v78, %v211
  %v213 = vpop.f32.mrf.mxu0
  %v214 = vadd.f32 %v82, %v213
  %v215 = vpop.f32.mrf.mxu0
  %v216 = vadd.f32 %v78, %v215
  %v217 = vpop.f32.mrf.mxu0
  %v218 = vadd.f32 %v82, %v217
  %219 = vmatprep.mubr.bf16.mxu0 0
  %220 = vmatmul.mubr.bf16.gmra.mxu0 %v162
  %v221 = vpop.f32.mrf.mxu0
  %v222 = vadd.f32 %v78, %v221
  %v223 = vpop.f32.mrf.mxu0
  %v224 = vadd.f32 %v82, %v223
  %v225 = vpop.f32.mrf.mxu0
  %v226 = vadd.f32 %v78, %v225
  %v227 = vpop.f32.mrf.mxu0
  %v228 = vadd.f32 %v82, %v227
  %229 = vmatprep.mubr.bf16.mxu0 0
  %230 = vmatmul.mubr.bf16.gmra.mxu0 %v165
  %v231 = vpop.f32.mrf.mxu0
  %v232 = vadd.f32 %v78, %v231
  %v233 = vpop.f32.mrf.mxu0
  %v234 = vadd.f32 %v82, %v233
  %v235 = vpop.f32.mrf.mxu0
  %v236 = vadd.f32 %v78, %v235
  %v237 = vpop.f32.mrf.mxu0
  %v238 = vadd.f32 %v82, %v237
  %239 = vdwg.mxu0
  %240 = vmatprep.subr.bf16.mxu0 0
  %241 = vmatpush1.bf16.msra.mxu0 0
  %242 = vmatprep.subr.bf16.mxu0 0
  %243 = vmatpush1.bf16.msra.mxu0 0
  %244 = vmatprep.subr.bf16.mxu0 0
  %245 = vmatpush1.bf16.msra.mxu0 0
  %246 = vmatprep.subr.bf16.mxu0 0
  %247 = vmatpush1.bf16.msra.mxu0 0
  %248 = vmatprep.subr.bf16.mxu0 0
  %249 = vmatpush1.bf16.msra.mxu0 %v141
  %250 = vmatprep.subr.bf16.mxu0 0
  %251 = vmatpush1.bf16.msra.mxu0 %v138
  %252 = vmatprep.subr.bf16.mxu0 0
  %253 = vmatpush1.bf16.msra.mxu0 %v135
  %254 = vmatprep.subr.bf16.mxu0 0
  %255 = vmatpush1.bf16.msra.mxu0 %v132
  %256 = vmatprep.subr.bf16.mxu0 0
  %257 = vmatpush2.bf16.msra.mxu0 0
  %258 = vmatprep.subr.bf16.mxu0 0
  %259 = vmatpush2.bf16.msra.mxu0 0
  %260 = vmatprep.subr.bf16.mxu0 0
  %261 = vmatpush2.bf16.msra.mxu0 0
  %262 = vmatprep.subr.bf16.mxu0 0
  %263 = vmatpush2.bf16.msra.mxu0 0
  %264 = vmatprep.subr.bf16.mxu0 0
  %265 = vmatpush2.bf16.msra.mxu0 0
  %266 = vmatprep.subr.bf16.mxu0 0
  %267 = vmatpush2.bf16.msra.mxu0 0
  %268 = vmatprep.subr.bf16.mxu0 0
  %269 = vmatpush2.bf16.msra.mxu0 0
  %270 = vmatprep.subr.bf16.mxu0 0
  %271 = vmatpush2.bf16.msra.mxu0 0
  %272 = vmatprep.mubr.bf16.mxu0 0
  %273 = vmatmul.mubr.bf16.gmra.mxu0 %v156
  %v274 = vpop.f32.mrf.mxu0
  %v275 = vadd.f32 %v86, %v274
  %v276 = vpop.f32.mrf.mxu0
  %v277 = vpop.f32.mrf.mxu0
  %v278 = vadd.f32 %v86, %v277
  %v279 = vpop.f32.mrf.mxu0
  %280 = vmatprep.mubr.bf16.mxu0 0
  %281 = vmatmul.mubr.bf16.gmra.mxu0 %v159
  %v282 = vpop.f32.mrf.mxu0
  %v283 = vadd.f32 %v86, %v282
  %v284 = vpop.f32.mrf.mxu0
  %v285 = vpop.f32.mrf.mxu0
  %v286 = vadd.f32 %v86, %v285
  %v287 = vpop.f32.mrf.mxu0
  %288 = vmatprep.mubr.bf16.mxu0 0
  %289 = vmatmul.mubr.bf16.gmra.mxu0 %v162
  %v290 = vpop.f32.mrf.mxu0
  %v291 = vadd.f32 %v86, %v290
  %v292 = vpop.f32.mrf.mxu0
  %v293 = vpop.f32.mrf.mxu0
  %v294 = vadd.f32 %v86, %v293
  %v295 = vpop.f32.mrf.mxu0
  %296 = vmatprep.mubr.bf16.mxu0 0
  %297 = vmatmul.mubr.bf16.gmra.mxu0 %v165
  %v298 = vpop.f32.mrf.mxu0
  %v299 = vadd.f32 %v86, %v298
  %v300 = vpop.f32.mrf.mxu0
  %v301 = vpop.f32.mrf.mxu0
  %v302 = vadd.f32 %v86, %v301
  %v303 = vpop.f32.mrf.mxu0
  %304 = vdwg.mxu0
  %305 = vst [vmem:[#allocation2] sm:$0xff] %v202
  %306 = vst [vmem:[#allocation2 + $0x8] sm:$0xff] %v204
  %307 = vst [vmem:[#allocation2 + $0x10] sm:$0xff] %v275
  %308 = vst [vmem:[#allocation2 + $0x18] sm:$0xff] %v206
  %309 = vst [vmem:[#allocation2 + $0x20] sm:$0xff] %v208
  %310 = vst [vmem:[#allocation2 + $0x28] sm:$0xff] %v278
  %311 = vst [vmem:[#allocation2 + $0x30] sm:$0xff] %v212
  %312 = vst [vmem:[#allocation2 + $0x38] sm:$0xff] %v214
  %313 = vst [vmem:[#allocation2 + $0x40] sm:$0xff] %v283
  %314 = vst [vmem:[#allocation2 + $0x48] sm:$0xff] %v216
  %315 = vst [vmem:[#allocation2 + $0x50] sm:$0xff] %v218
  %316 = vst [vmem:[#allocation2 + $0x58] sm:$0xff] %v286
  %317 = vst [vmem:[#allocation2 + $0x60] sm:$0xff] %v222
  %318 = vst [vmem:[#allocation2 + $0x68] sm:$0xff] %v224
  %319 = vst [vmem:[#allocation2 + $0x70] sm:$0xff] %v291
  %320 = vst [vmem:[#allocation2 + $0x78] sm:$0xff] %v226
  %321 = vst [vmem:[#allocation2 + $0x80] sm:$0xff] %v228
  %322 = vst [vmem:[#allocation2 + $0x88] sm:$0xff] %v294
  %323 = vst [vmem:[#allocation2 + $0x90] sm:$0xff] %v232
  %324 = vst [vmem:[#allocation2 + $0x98] sm:$0xff] %v234
  %325 = vst [vmem:[#allocation2 + $0xa0] sm:$0xff] %v299
  %326 = vst [vmem:[#allocation2 + $0xa8] sm:$0xff] %v236
  %327 = vst [vmem:[#allocation2 + $0xb0] sm:$0xff] %v238
  %328 = vst [vmem:[#allocation2 + $0xb8] sm:$0xff] %v302
  %v329 = vld [vmem:[%s2] sm:$0xff]
  %v330 = vld [vmem:[%s2 + $0x8] sm:$0xf]
  %v331 = vld [vmem:[%s2 + $0xc] sm:$0xff]
  %v332 = vld [vmem:[%s2 + $0x14] sm:$0xf]
  %v333 = vld [vmem:[%s2 + $0x18] sm:$0xff]
  %v334 = vld [vmem:[%s2 + $0x20] sm:$0xf]
  %v335 = vld [vmem:[%s2 + $0x24] sm:$0xff]
  %v336 = vld [vmem:[%s2 + $0x2c] sm:$0xf]
  %v337 = vld [vmem:[%s2 + $0x30] sm:$0xff]
  %v338 = vld [vmem:[%s2 + $0x38] sm:$0xf]
  %v339 = vld [vmem:[%s2 + $0x3c] sm:$0xff]
  %v340 = vld [vmem:[%s2 + $0x44] sm:$0xf]
  %v341 = vld [vmem:[%s2 + $0x48] sm:$0xff]
  %v342 = vld [vmem:[%s2 + $0x50] sm:$0xf]
  %v343 = vld [vmem:[%s2 + $0x54] sm:$0xff]
  %v344 = vld [vmem:[%s2 + $0x5c] sm:$0xf]
  %v345 = vld [vmem:[%s2 + $0x60] sm:$0xff]
  %v346 = vld [vmem:[%s2 + $0x68] sm:$0xf]
  %v347 = vld [vmem:[%s2 + $0x6c] sm:$0xff]
  %v348 = vld [vmem:[%s2 + $0x74] sm:$0xf]
  %v349 = vld [vmem:[%s2 + $0x78] sm:$0xff]
  %v350 = vld [vmem:[%s2 + $0x80] sm:$0xf]
  %v351 = vld [vmem:[%s2 + $0x84] sm:$0xff]
  %v352 = vld [vmem:[%s2 + $0x8c] sm:$0xf]
  %v353 = vld [vmem:[%s2 + $0x90] sm:$0xff]
  %v354 = vld [vmem:[%s2 + $0x98] sm:$0xf]
  %v355 = vld [vmem:[%s2 + $0x9c] sm:$0xff]
  %v356 = vld [vmem:[%s2 + $0xa4] sm:$0xf]
  %v357 = vld [vmem:[%s2 + $0xa8] sm:$0xff]
  %v358 = vld [vmem:[%s2 + $0xb0] sm:$0xf]
  %v359 = vld [vmem:[%s2 + $0xb4] sm:$0xff]
  %v360 = vld [vmem:[%s2 + $0xbc] sm:$0xf]
  %v361 = vld [vmem:[%s8] sm:$0xff]
  %v362 = vld [vmem:[%s8 + $0x8] sm:$0xf]
  %v363 = vld [vmem:[%s8 + $0xc] sm:$0xff]
  %v364 = vld [vmem:[%s8 + $0x14] sm:$0xf]
  %v365 = vld [vmem:[%s8 + $0x18] sm:$0xff]
  %v366 = vld [vmem:[%s8 + $0x20] sm:$0xf]
  %v367 = vld [vmem:[%s8 + $0x24] sm:$0xff]
  %v368 = vld [vmem:[%s8 + $0x2c] sm:$0xf]
  %v369 = vld [vmem:[%s8 + $0x30] sm:$0xff]
  %v370 = vld [vmem:[%s8 + $0x38] sm:$0xf]
  %v371 = vld [vmem:[%s8 + $0x3c] sm:$0xff]
  %v372 = vld [vmem:[%s8 + $0x44] sm:$0xf]
  %v373 = vld [vmem:[%s8 + $0x48] sm:$0xff]
  %v374 = vld [vmem:[%s8 + $0x50] sm:$0xf]
  %v375 = vld [vmem:[%s8 + $0x54] sm:$0xff]
  %v376 = vld [vmem:[%s8 + $0x5c] sm:$0xf]
  %v377 = vld [vmem:[%s8 + $0x60] sm:$0xff]
  %v378 = vld [vmem:[%s8 + $0x68] sm:$0xf]
  %v379 = vld [vmem:[%s8 + $0x6c] sm:$0xff]
  %v380 = vld [vmem:[%s8 + $0x74] sm:$0xf]
  %v381 = vld [vmem:[%s8 + $0x78] sm:$0xff]
  %v382 = vld [vmem:[%s8 + $0x80] sm:$0xf]
  %v383 = vld [vmem:[%s8 + $0x84] sm:$0xff]
  %v384 = vld [vmem:[%s8 + $0x8c] sm:$0xf]
  %v385 = vld [vmem:[%s8 + $0x90] sm:$0xff]
  %v386 = vld [vmem:[%s8 + $0x98] sm:$0xf]
  %v387 = vld [vmem:[%s8 + $0x9c] sm:$0xff]
  %v388 = vld [vmem:[%s8 + $0xa4] sm:$0xf]
  %v389 = vld [vmem:[%s8 + $0xa8] sm:$0xff]
  %v390 = vld [vmem:[%s8 + $0xb0] sm:$0xf]
  %v391 = vld [vmem:[%s8 + $0xb4] sm:$0xff]
  %v392 = vld [vmem:[%s8 + $0xbc] sm:$0xf]
  %v393 = vld [vmem:[%s4] sm:$0x1]
  %v395 = vlaneseq
  %v396 = vshrl.u32 %v395, 7
  %v397 = vsub.s32 0, %v396
  %v398 = vrot.slane %v393, %v397
  %v400 = vld [vmem:[%s10] sm:$0x1]
  %v402 = vlaneseq
  %v403 = vshrl.u32 %v402, 7
  %v404 = vsub.s32 0, %v403
  %v405 = vrot.slane %v400, %v404
  %v407 = vld [vmem:[#allocation2] ss:$8 sm:$0x7]
  %s408 = scalar_lea.vmem [#allocation2], 24
  %v409 = vld [vmem:[%s408] ss:$8 sm:$0x7]
  %s410 = scalar_lea.vmem [#allocation2], 48
  %v411 = vld [vmem:[%s410] ss:$8 sm:$0x7]
  %s412 = scalar_lea.vmem [#allocation2], 72
  %v413 = vld [vmem:[%s412] ss:$8 sm:$0x7]
  %s414 = scalar_lea.vmem [#allocation2], 96
  %v415 = vld [vmem:[%s414] ss:$8 sm:$0x7]
  %s416 = scalar_lea.vmem [#allocation2], 120
  %v417 = vld [vmem:[%s416] ss:$8 sm:$0x7]
  %s418 = scalar_lea.vmem [#allocation2], 144
  %v419 = vld [vmem:[%s418] ss:$8 sm:$0x7]
  %s420 = scalar_lea.vmem [#allocation2], 168
  %v421 = vld [vmem:[%s420] ss:$8 sm:$0x7]
  %v454 = vunpack.c.l.b16 %v329
  %v455 = vunpack.c.h.b16 %v329
  %v456 = vunpack.c.l.b16 %v330
  %v457 = vunpack.c.l.b16 %v331
  %v458 = vunpack.c.h.b16 %v331
  %v459 = vunpack.c.l.b16 %v332
  %v460 = vunpack.c.l.b16 %v333
  %v461 = vunpack.c.h.b16 %v333
  %v462 = vunpack.c.l.b16 %v334
  %v463 = vunpack.c.l.b16 %v335
  %v464 = vunpack.c.h.b16 %v335
  %v465 = vunpack.c.l.b16 %v336
  %v466 = vunpack.c.l.b16 %v337
  %v467 = vunpack.c.h.b16 %v337
  %v468 = vunpack.c.l.b16 %v338
  %v469 = vunpack.c.l.b16 %v339
  %v470 = vunpack.c.h.b16 %v339
  %v471 = vunpack.c.l.b16 %v340
  %v472 = vunpack.c.l.b16 %v341
  %v473 = vunpack.c.h.b16 %v341
  %v474 = vunpack.c.l.b16 %v342
  %v475 = vunpack.c.l.b16 %v343
  %v476 = vunpack.c.h.b16 %v343
  %v477 = vunpack.c.l.b16 %v344
  %v478 = vunpack.c.l.b16 %v345
  %v479 = vunpack.c.h.b16 %v345
  %v480 = vunpack.c.l.b16 %v346
  %v481 = vunpack.c.l.b16 %v347
  %v482 = vunpack.c.h.b16 %v347
  %v483 = vunpack.c.l.b16 %v348
  %v484 = vunpack.c.l.b16 %v349
  %v485 = vunpack.c.h.b16 %v349
  %v486 = vunpack.c.l.b16 %v350
  %v487 = vunpack.c.l.b16 %v351
  %v488 = vunpack.c.h.b16 %v351
  %v489 = vunpack.c.l.b16 %v352
  %v490 = vunpack.c.l.b16 %v353
  %v491 = vunpack.c.h.b16 %v353
  %v492 = vunpack.c.l.b16 %v354
  %v493 = vunpack.c.l.b16 %v355
  %v494 = vunpack.c.h.b16 %v355
  %v495 = vunpack.c.l.b16 %v356
  %v496 = vunpack.c.l.b16 %v357
  %v497 = vunpack.c.h.b16 %v357
  %v498 = vunpack.c.l.b16 %v358
  %v499 = vunpack.c.l.b16 %v359
  %v500 = vunpack.c.h.b16 %v359
  %v501 = vunpack.c.l.b16 %v360
  %v502 = vpack.c.b16 %v457, %v454
  %v503 = vpack.c.b16 %v458, %v455
  %v504 = vpack.c.b16 %v459, %v456
  %v505 = vpack.c.b16 %v463, %v460
  %v506 = vpack.c.b16 %v464, %v461
  %v507 = vpack.c.b16 %v465, %v462
  %v508 = vpack.c.b16 %v469, %v466
  %v509 = vpack.c.b16 %v470, %v467
  %v510 = vpack.c.b16 %v471, %v468
  %v511 = vpack.c.b16 %v475, %v472
  %v512 = vpack.c.b16 %v476, %v473
  %v513 = vpack.c.b16 %v477, %v474
  %v514 = vpack.c.b16 %v481, %v478
  %v515 = vpack.c.b16 %v482, %v479
  %v516 = vpack.c.b16 %v483, %v480
  %v517 = vpack.c.b16 %v487, %v484
  %v518 = vpack.c.b16 %v488, %v485
  %v519 = vpack.c.b16 %v489, %v486
  %v520 = vpack.c.b16 %v493, %v490
  %v521 = vpack.c.b16 %v494, %v491
  %v522 = vpack.c.b16 %v495, %v492
  %v523 = vpack.c.b16 %v499, %v496
  %v524 = vpack.c.b16 %v500, %v497
  %v525 = vpack.c.b16 %v501, %v498
  %550 = vmatprep.subr.bf16.mxu0 %v524
  %551 = vmatpush1.bf16.msra.mxu0 %v523
  %552 = vmatprep.subr.bf16.mxu0 %v521
  %553 = vmatpush1.bf16.msra.mxu0 %v520
  %554 = vmatprep.subr.bf16.mxu0 %v518
  %555 = vmatpush1.bf16.msra.mxu0 %v517
  %556 = vmatprep.subr.bf16.mxu0 %v515
  %557 = vmatpush1.bf16.msra.mxu0 %v514
  %558 = vmatprep.subr.bf16.mxu0 %v512
  %559 = vmatpush1.bf16.msra.mxu0 %v511
  %560 = vmatprep.subr.bf16.mxu0 %v509
  %561 = vmatpush1.bf16.msra.mxu0 %v508
  %562 = vmatprep.subr.bf16.mxu0 %v506
  %563 = vmatpush1.bf16.msra.mxu0 %v505
  %564 = vmatprep.subr.bf16.mxu0 %v503
  %565 = vmatpush1.bf16.msra.mxu0 %v502
  %566 = vmatprep.subr.bf16.mxu0 0
  %567 = vmatpush2.bf16.msra.mxu0 0
  %568 = vmatprep.subr.bf16.mxu0 0
  %569 = vmatpush2.bf16.msra.mxu0 0
  %570 = vmatprep.subr.bf16.mxu0 0
  %571 = vmatpush2.bf16.msra.mxu0 0
  %572 = vmatprep.subr.bf16.mxu0 0
  %573 = vmatpush2.bf16.msra.mxu0 0
  %574 = vmatprep.subr.bf16.mxu0 0
  %575 = vmatpush2.bf16.msra.mxu0 0
  %576 = vmatprep.subr.bf16.mxu0 0
  %577 = vmatpush2.bf16.msra.mxu0 0
  %578 = vmatprep.subr.bf16.mxu0 0
  %579 = vmatpush2.bf16.msra.mxu0 0
  %580 = vmatprep.subr.bf16.mxu0 0
  %581 = vmatpush2.bf16.msra.mxu0 0
  %582 = vmatprep.mubr.bf16.mxu0 0
  %583 = vmatmul.mubr.bf16.gmra.mxu0 0
  %v584 = vpop.f32.mrf.mxu0
  %v585 = vadd.f32 0.0, %v584
  %v586 = vpop.f32.mrf.mxu0
  %v587 = vadd.f32 0.0, %v586
  %v588 = vpop.f32.mrf.mxu0
  %v589 = vpop.f32.mrf.mxu0
  %590 = vdwg.mxu0
  %591 = vmatprep.subr.bf16.mxu0 0
  %592 = vmatpush1.bf16.msra.mxu0 %v525
  %593 = vmatprep.subr.bf16.mxu0 0
  %594 = vmatpush1.bf16.msra.mxu0 %v522
  %595 = vmatprep.subr.bf16.mxu0 0
  %596 = vmatpush1.bf16.msra.mxu0 %v519
  %597 = vmatprep.subr.bf16.mxu0 0
  %598 = vmatpush1.bf16.msra.mxu0 %v516
  %599 = vmatprep.subr.bf16.mxu0 0
  %600 = vmatpush1.bf16.msra.mxu0 %v513
  %601 = vmatprep.subr.bf16.mxu0 0
  %602 = vmatpush1.bf16.msra.mxu0 %v510
  %603 = vmatprep.subr.bf16.mxu0 0
  %604 = vmatpush1.bf16.msra.mxu0 %v507
  %605 = vmatprep.subr.bf16.mxu0 0
  %606 = vmatpush1.bf16.msra.mxu0 %v504
  %607 = vmatprep.subr.bf16.mxu0 0
  %608 = vmatpush2.bf16.msra.mxu0 0
  %609 = vmatprep.subr.bf16.mxu0 0
  %610 = vmatpush2.bf16.msra.mxu0 0
  %611 = vmatprep.subr.bf16.mxu0 0
  %612 = vmatpush2.bf16.msra.mxu0 0
  %613 = vmatprep.subr.bf16.mxu0 0
  %614 = vmatpush2.bf16.msra.mxu0 0
  %615 = vmatprep.subr.bf16.mxu0 0
  %616 = vmatpush2.bf16.msra.mxu0 0
  %617 = vmatprep.subr.bf16.mxu0 0
  %618 = vmatpush2.bf16.msra.mxu0 0
  %619 = vmatprep.subr.bf16.mxu0 0
  %620 = vmatpush2.bf16.msra.mxu0 0
  %621 = vmatprep.subr.bf16.mxu0 0
  %622 = vmatpush2.bf16.msra.mxu0 0
  %623 = vmatprep.mubr.bf16.mxu0 0
  %624 = vmatmul.mubr.bf16.gmra.mxu0 0
  %v625 = vpop.f32.mrf.mxu0
  %v626 = vadd.f32 0.0, %v625
  %v627 = vpop.f32.mrf.mxu0
  %v628 = vpop.f32.mrf.mxu0
  %v629 = vpop.f32.mrf.mxu0
  %630 = vdwg.mxu0
  %v633 = vcombine.low %v585, %v587
  %v634 = vcombine.high %v585, %v587
  %v636 = vunpack.c.l.s4 1966171168
  %v637 = vunpack.c.0.s8 %v636
  %v638 = vlaneseq
  %v639 = vshrl.u32 %v638, 7
  %v640 = vsub.s32 %v637, %v639
  %v641 = vrot.slane %v633, %v640
  %v643 = vunpack.c.l.s4 1966171168
  %v644 = vunpack.c.0.s8 %v643
  %v645 = vlaneseq
  %v646 = vshrl.u32 %v645, 7
  %v647 = vsub.s32 %v644, %v646
  %v648 = vrot.slane %v634, %v647
  %v649 = vcombine.high %v641, %v641
  %v650 = vcombine.high %v648, %v648
  %v652 = vunpack.c.l.s4 1966171168
  %v653 = vunpack.c.0.s8 %v652
  %v654 = vlaneseq
  %v655 = vshrl.u32 %v654, 7
  %v656 = vsub.s32 %v653, %v655
  %v657 = vrot.slane %v641, %v656
  %v659 = vunpack.c.l.s4 1966171168
  %v660 = vunpack.c.0.s8 %v659
  %v661 = vlaneseq
  %v662 = vshrl.u32 %v661, 7
  %v663 = vsub.s32 %v660, %v662
  %v664 = vrot.slane %v648, %v663
  %v666 = vunpack.c.l.s4 1966171168
  %v667 = vunpack.c.0.s8 %v666
  %v668 = vlaneseq
  %v669 = vshrl.u32 %v668, 7
  %v670 = vsub.s32 %v667, %v669
  %v671 = vrot.slane %v649, %v670
  %v673 = vunpack.c.l.s4 1966171168
  %v674 = vunpack.c.0.s8 %v673
  %v675 = vlaneseq
  %v676 = vshrl.u32 %v675, 7
  %v677 = vsub.s32 %v674, %v676
  %v678 = vrot.slane %v650, %v677
  %v679 = vcombine.high %v657, %v657
  %v680 = vcombine.high %v664, %v664
  %v681 = vcombine.high %v671, %v671
  %v682 = vcombine.high %v678, %v678
  %v691 = vadd.f32 %v407, %v657
  %v692 = vadd.f32 %v409, %v671
  %v693 = vadd.f32 %v411, %v679
  %v694 = vadd.f32 %v413, %v681
  %v695 = vadd.f32 %v415, %v664
  %v696 = vadd.f32 %v417, %v678
  %v697 = vadd.f32 %v419, %v680
  %v698 = vadd.f32 %v421, %v682
  %v699 = vxor.u32 %v691, 2147483648
  %v700 = vxor.u32 %v692, 2147483648
  %v701 = vxor.u32 %v693, 2147483648
  %v702 = vxor.u32 %v694, 2147483648
  %v703 = vxor.u32 %v695, 2147483648
  %v704 = vxor.u32 %v696, 2147483648
  %v705 = vxor.u32 %v697, 2147483648
  %v706 = vxor.u32 %v698, 2147483648
  %v707 = vmul.f32 %v699, 1.442695
  %v708 = vpow.pop %v707
  %v709 = vmul.f32 %v700, 1.442695
  %v710 = vpow.pop %v709
  %v711 = vmul.f32 %v701, 1.442695
  %v712 = vpow.pop %v711
  %v713 = vmul.f32 %v702, 1.442695
  %v714 = vpow.pop %v713
  %v715 = vmul.f32 %v703, 1.442695
  %v716 = vpow.pop %v715
  %v717 = vmul.f32 %v704, 1.442695
  %v718 = vpow.pop %v717
  %v719 = vmul.f32 %v705, 1.442695
  %v720 = vpow.pop %v719
  %v721 = vmul.f32 %v706, 1.442695
  %v722 = vpow.pop %v721
  %v723 = vadd.f32 %v708, 1.0
  %v724 = vadd.f32 %v710, 1.0
  %v725 = vadd.f32 %v712, 1.0
  %v726 = vadd.f32 %v714, 1.0
  %v727 = vadd.f32 %v716, 1.0
  %v728 = vadd.f32 %v718, 1.0
  %v729 = vadd.f32 %v720, 1.0
  %v730 = vadd.f32 %v722, 1.0
  %v731 = vrcp.pop %v723
  %v732 = vmul.f32 1.0, %v731
  %v733 = vrcp.pop %v724
  %v734 = vmul.f32 1.0, %v733
  %v735 = vrcp.pop %v725
  %v736 = vmul.f32 1.0, %v735
  %v737 = vrcp.pop %v726
  %v738 = vmul.f32 1.0, %v737
  %v739 = vrcp.pop %v727
  %v740 = vmul.f32 1.0, %v739
  %v741 = vrcp.pop %v728
  %v742 = vmul.f32 1.0, %v741
  %v743 = vrcp.pop %v729
  %v744 = vmul.f32 1.0, %v743
  %v745 = vrcp.pop %v730
  %v746 = vmul.f32 1.0, %v745
  %v747 = vadd.f32 %v626, %v398
  %v749 = vcombine.high %v747, %v747
  %v751 = vunpack.c.l.s4 1966171168
  %v752 = vunpack.c.0.s8 %v751
  %v753 = vlaneseq
  %v754 = vshrl.u32 %v753, 7
  %v755 = vsub.s32 %v752, %v754
  %v756 = vrot.slane %v747, %v755
  %v758 = vunpack.c.l.s4 1966171168
  %v759 = vunpack.c.0.s8 %v758
  %v760 = vlaneseq
  %v761 = vshrl.u32 %v760, 7
  %v762 = vsub.s32 %v759, %v761
  %v763 = vrot.slane %v749, %v762
  %v764 = vcombine.high %v756, %v756
  %v765 = vcombine.high %v763, %v763
  %v767 = vunpack.c.l.s4 1966171168
  %v768 = vunpack.c.0.s8 %v767
  %v769 = vlaneseq
  %v770 = vshrl.u32 %v769, 7
  %v771 = vsub.s32 %v768, %v770
  %v772 = vrot.slane %v756, %v771
  %v774 = vunpack.c.l.s4 1966171168
  %v775 = vunpack.c.0.s8 %v774
  %v776 = vlaneseq
  %v777 = vshrl.u32 %v776, 7
  %v778 = vsub.s32 %v775, %v777
  %v779 = vrot.slane %v763, %v778
  %v781 = vunpack.c.l.s4 1966171168
  %v782 = vunpack.c.0.s8 %v781
  %v783 = vlaneseq
  %v784 = vshrl.u32 %v783, 7
  %v785 = vsub.s32 %v782, %v784
  %v786 = vrot.slane %v764, %v785
  %v788 = vunpack.c.l.s4 1966171168
  %v789 = vunpack.c.0.s8 %v788
  %v790 = vlaneseq
  %v791 = vshrl.u32 %v790, 7
  %v792 = vsub.s32 %v789, %v791
  %v793 = vrot.slane %v765, %v792
  %v794 = vcombine.high %v772, %v772
  %v795 = vcombine.high %v779, %v779
  %v796 = vcombine.high %v786, %v786
  %v797 = vcombine.high %v793, %v793
  %v806 = vmul.f32 %v732, %v772
  %v807 = vmul.f32 %v734, %v786
  %v808 = vmul.f32 %v736, %v794
  %v809 = vmul.f32 %v738, %v796
  %v810 = vmul.f32 %v740, %v779
  %v811 = vmul.f32 %v742, %v793
  %v812 = vmul.f32 %v744, %v795
  %v813 = vmul.f32 %v746, %v797
  %v822 = vrot.slane %v407, 2
  %v823 = vrot.slane %v409, 2
  %v824 = vrot.slane %v411, 2
  %v825 = vrot.slane %v413, 2
  %v826 = vrot.slane %v415, 2
  %v827 = vrot.slane %v417, 2
  %v828 = vrot.slane %v419, 2
  %v829 = vrot.slane %v421, 2
  %v838 = vadd.f32 %v822, %v806
  %v839 = vadd.f32 %v823, %v807
  %v840 = vadd.f32 %v824, %v808
  %v841 = vadd.f32 %v825, %v809
  %v842 = vadd.f32 %v826, %v810
  %v843 = vadd.f32 %v827, %v811
  %v844 = vadd.f32 %v828, %v812
  %v845 = vadd.f32 %v829, %v813
  %v846 = vtanh.pop %v838
  %v847 = vtanh.pop %v839
  %v848 = vtanh.pop %v840
  %v849 = vtanh.pop %v841
  %v850 = vtanh.pop %v842
  %v851 = vtanh.pop %v843
  %v852 = vtanh.pop %v844
  %v853 = vtanh.pop %v845
  %v862 = vrot.slane %v732, 1
  %v863 = vrot.slane %v734, 1
  %v864 = vrot.slane %v736, 1
  %v865 = vrot.slane %v738, 1
  %v866 = vrot.slane %v740, 1
  %v867 = vrot.slane %v742, 1
  %v868 = vrot.slane %v744, 1
  %v869 = vrot.slane %v746, 1
  %v878 = vsub.f32 1.0, %v862
  %v879 = vsub.f32 1.0, %v863
  %v880 = vsub.f32 1.0, %v864
  %v881 = vsub.f32 1.0, %v865
  %v882 = vsub.f32 1.0, %v866
  %v883 = vsub.f32 1.0, %v867
  %v884 = vsub.f32 1.0, %v868
  %v885 = vsub.f32 1.0, %v869
  %v886 = vmul.f32 %v878, %v846
  %v887 = vmul.f32 %v879, %v847
  %v888 = vmul.f32 %v880, %v848
  %v889 = vmul.f32 %v881, %v849
  %v890 = vmul.f32 %v882, %v850
  %v891 = vmul.f32 %v883, %v851
  %v892 = vmul.f32 %v884, %v852
  %v893 = vmul.f32 %v885, %v853
  %v894 = vmul.f32 %v862, 0.0
  %v895 = vmul.f32 %v863, 0.0
  %v896 = vmul.f32 %v864, 0.0
  %v897 = vmul.f32 %v865, 0.0
  %v898 = vmul.f32 %v866, 0.0
  %v899 = vmul.f32 %v867, 0.0
  %v900 = vmul.f32 %v868, 0.0
  %v901 = vmul.f32 %v869, 0.0
  %v902 = vadd.f32 %v886, %v894
  %v903 = vadd.f32 %v887, %v895
  %v904 = vadd.f32 %v888, %v896
  %v905 = vadd.f32 %v889, %v897
  %v906 = vadd.f32 %v890, %v898
  %v907 = vadd.f32 %v891, %v899
  %v908 = vadd.f32 %v892, %v900
  %v909 = vadd.f32 %v893, %v901
  %s910 = scalar_lea.vmem [#allocation2], 1
  %v911 = vld [vmem:[%s910] ss:$8 sm:$0x7]
  %s912 = scalar_lea.vmem [#allocation2], 25
  %v913 = vld [vmem:[%s912] ss:$8 sm:$0x7]
  %s914 = scalar_lea.vmem [#allocation2], 49
  %v915 = vld [vmem:[%s914] ss:$8 sm:$0x7]
  %s916 = scalar_lea.vmem [#allocation2], 73
  %v917 = vld [vmem:[%s916] ss:$8 sm:$0x7]
  %s918 = scalar_lea.vmem [#allocation2], 97
  %v919 = vld [vmem:[%s918] ss:$8 sm:$0x7]
  %s920 = scalar_lea.vmem [#allocation2], 121
  %v921 = vld [vmem:[%s920] ss:$8 sm:$0x7]
  %s922 = scalar_lea.vmem [#allocation2], 145
  %v923 = vld [vmem:[%s922] ss:$8 sm:$0x7]
  %s924 = scalar_lea.vmem [#allocation2], 169
  %v925 = vld [vmem:[%s924] ss:$8 sm:$0x7]
  %v926 = vpack.c.bf16 %v902, %v902
  %v927 = vpack.c.bf16 %v903, %v903
  %v928 = vpack.c.bf16 %v904, %v904
  %v929 = vpack.c.bf16 %v905, %v905
  %v930 = vpack.c.bf16 %v906, %v906
  %v931 = vpack.c.bf16 %v907, %v907
  %v932 = vpack.c.bf16 %v908, %v908
  %v933 = vpack.c.bf16 %v909, %v909
  %v942 = vunpack.c.l.b16 %v926
  %v943 = vunpack.c.l.b16 %v927
  %v944 = vunpack.c.l.b16 %v928
  %v945 = vunpack.c.l.b16 %v929
  %v946 = vunpack.c.l.b16 %v930
  %v947 = vunpack.c.l.b16 %v931
  %v948 = vunpack.c.l.b16 %v932
  %v949 = vunpack.c.l.b16 %v933
  %v950 = vrot.slane %v943, 7
  %vm951 = vcmask 1041409
  %v952 = vsel %vm951, %v950, %v942
  %v953 = vrot.slane %v944, 6
  %vm954 = vcmask 1042434
  %v955 = vsel %vm954, %v953, %v952
  %v956 = vrot.slane %v945, 5
  %vm957 = vcmask 1043459
  %v958 = vsel %vm957, %v956, %v955
  %v959 = vrot.slane %v946, 4
  %vm960 = vcmask 1044484
  %v961 = vsel %vm960, %v959, %v958
  %v962 = vrot.slane %v947, 3
  %vm963 = vcmask 1045509
  %v964 = vsel %vm963, %v962, %v961
  %v965 = vrot.slane %v948, 2
  %vm966 = vcmask 1046534
  %v967 = vsel %vm966, %v965, %v964
  %v968 = vrot.slane %v949, 1
  %vm969 = vcmask 1047559
  %v970 = vsel %vm969, %v968, %v967
  %v971 = vpack.c.b16 %v970, %v970
  %973 = vmatprep.subr.bf16.mxu0 %v524
  %974 = vmatpush1.bf16.msra.mxu0 %v523
  %975 = vmatprep.subr.bf16.mxu0 %v521
  %976 = vmatpush1.bf16.msra.mxu0 %v520
  %977 = vmatprep.subr.bf16.mxu0 %v518
  %978 = vmatpush1.bf16.msra.mxu0 %v517
  %979 = vmatprep.subr.bf16.mxu0 %v515
  %980 = vmatpush1.bf16.msra.mxu0 %v514
  %981 = vmatprep.subr.bf16.mxu0 %v512
  %982 = vmatpush1.bf16.msra.mxu0 %v511
  %983 = vmatprep.subr.bf16.mxu0 %v509
  %984 = vmatpush1.bf16.msra.mxu0 %v508
  %985 = vmatprep.subr.bf16.mxu0 %v506
  %986 = vmatpush1.bf16.msra.mxu0 %v505
  %987 = vmatprep.subr.bf16.mxu0 %v503
  %988 = vmatpush1.bf16.msra.mxu0 %v502
  %989 = vmatprep.subr.bf16.mxu0 0
  %990 = vmatpush2.bf16.msra.mxu0 0
  %991 = vmatprep.subr.bf16.mxu0 0
  %992 = vmatpush2.bf16.msra.mxu0 0
  %993 = vmatprep.subr.bf16.mxu0 0
  %994 = vmatpush2.bf16.msra.mxu0 0
  %995 = vmatprep.subr.bf16.mxu0 0
  %996 = vmatpush2.bf16.msra.mxu0 0
  %997 = vmatprep.subr.bf16.mxu0 0
  %998 = vmatpush2.bf16.msra.mxu0 0
  %999 = vmatprep.subr.bf16.mxu0 0
  %1000 = vmatpush2.bf16.msra.mxu0 0
  %1001 = vmatprep.subr.bf16.mxu0 0
  %1002 = vmatpush2.bf16.msra.mxu0 0
  %1003 = vmatprep.subr.bf16.mxu0 0
  %1004 = vmatpush2.bf16.msra.mxu0 0
  %1005 = vmatprep.mubr.bf16.mxu0 0
  %1006 = vmatmul.mubr.bf16.gmra.mxu0 %v971
  %v1007 = vpop.f32.mrf.mxu0
  %v1008 = vadd.f32 0.0, %v1007
  %v1009 = vpop.f32.mrf.mxu0
  %v1010 = vadd.f32 0.0, %v1009
  %v1011 = vpop.f32.mrf.mxu0
  %v1012 = vpop.f32.mrf.mxu0
  %1013 = vdwg.mxu0
  %1014 = vmatprep.subr.bf16.mxu0 0
  %1015 = vmatpush1.bf16.msra.mxu0 %v525
  %1016 = vmatprep.subr.bf16.mxu0 0
  %1017 = vmatpush1.bf16.msra.mxu0 %v522
  %1018 = vmatprep.subr.bf16.mxu0 0
  %1019 = vmatpush1.bf16.msra.mxu0 %v519
  %1020 = vmatprep.subr.bf16.mxu0 0
  %1021 = vmatpush1.bf16.msra.mxu0 %v516
  %1022 = vmatprep.subr.bf16.mxu0 0
  %1023 = vmatpush1.bf16.msra.mxu0 %v513
  %1024 = vmatprep.subr.bf16.mxu0 0
  %1025 = vmatpush1.bf16.msra.mxu0 %v510
  %1026 = vmatprep.subr.bf16.mxu0 0
  %1027 = vmatpush1.bf16.msra.mxu0 %v507
  %1028 = vmatprep.subr.bf16.mxu0 0
  %1029 = vmatpush1.bf16.msra.mxu0 %v504
  %1030 = vmatprep.subr.bf16.mxu0 0
  %1031 = vmatpush2.bf16.msra.mxu0 0
  %1032 = vmatprep.subr.bf16.mxu0 0
  %1033 = vmatpush2.bf16.msra.mxu0 0
  %1034 = vmatprep.subr.bf16.mxu0 0
  %1035 = vmatpush2.bf16.msra.mxu0 0
  %1036 = vmatprep.subr.bf16.mxu0 0
  %1037 = vmatpush2.bf16.msra.mxu0 0
  %1038 = vmatprep.subr.bf16.mxu0 0
  %1039 = vmatpush2.bf16.msra.mxu0 0
  %1040 = vmatprep.subr.bf16.mxu0 0
  %1041 = vmatpush2.bf16.msra.mxu0 0
  %1042 = vmatprep.subr.bf16.mxu0 0
  %1043 = vmatpush2.bf16.msra.mxu0 0
  %1044 = vmatprep.subr.bf16.mxu0 0
  %1045 = vmatpush2.bf16.msra.mxu0 0
  %1046 = vmatprep.mubr.bf16.mxu0 0
  %1047 = vmatmul.mubr.bf16.gmra.mxu0 %v971
  %v1048 = vpop.f32.mrf.mxu0
  %v1049 = vadd.f32 0.0, %v1048
  %v1050 = vpop.f32.mrf.mxu0
  %v1051 = vpop.f32.mrf.mxu0
  %v1052 = vpop.f32.mrf.mxu0
  %1053 = vdwg.mxu0
  %v1056 = vcombine.low %v1008, %v1010
  %v1057 = vcombine.high %v1008, %v1010
  %v1059 = vunpack.c.l.s4 1966171168
  %v1060 = vunpack.c.0.s8 %v1059
  %v1061 = vlaneseq
  %v1062 = vshrl.u32 %v1061, 7
  %v1063 = vsub.s32 %v1060, %v1062
  %v1064 = vrot.slane %v1056, %v1063
  %v1066 = vunpack.c.l.s4 1966171168
  %v1067 = vunpack.c.0.s8 %v1066
  %v1068 = vlaneseq
  %v1069 = vshrl.u32 %v1068, 7
  %v1070 = vsub.s32 %v1067, %v1069
  %v1071 = vrot.slane %v1057, %v1070
  %v1072 = vcombine.high %v1064, %v1064
  %v1073 = vcombine.high %v1071, %v1071
  %v1075 = vunpack.c.l.s4 1966171168
  %v1076 = vunpack.c.0.s8 %v1075
  %v1077 = vlaneseq
  %v1078 = vshrl.u32 %v1077, 7
  %v1079 = vsub.s32 %v1076, %v1078
  %v1080 = vrot.slane %v1064, %v1079
  %v1082 = vunpack.c.l.s4 1966171168
  %v1083 = vunpack.c.0.s8 %v1082
  %v1084 = vlaneseq
  %v1085 = vshrl.u32 %v1084, 7
  %v1086 = vsub.s32 %v1083, %v1085
  %v1087 = vrot.slane %v1071, %v1086
  %v1089 = vunpack.c.l.s4 1966171168
  %v1090 = vunpack.c.0.s8 %v1089
  %v1091 = vlaneseq
  %v1092 = vshrl.u32 %v1091, 7
  %v1093 = vsub.s32 %v1090, %v1092
  %v1094 = vrot.slane %v1072, %v1093
  %v1096 = vunpack.c.l.s4 1966171168
  %v1097 = vunpack.c.0.s8 %v1096
  %v1098 = vlaneseq
  %v1099 = vshrl.u32 %v1098, 7
  %v1100 = vsub.s32 %v1097, %v1099
  %v1101 = vrot.slane %v1073, %v1100
  %v1102 = vcombine.high %v1080, %v1080
  %v1103 = vcombine.high %v1087, %v1087
  %v1104 = vcombine.high %v1094, %v1094
  %v1105 = vcombine.high %v1101, %v1101
  %v1114 = vadd.f32 %v911, %v1080
  %v1115 = vadd.f32 %v913, %v1094
  %v1116 = vadd.f32 %v915, %v1102
  %v1117 = vadd.f32 %v917, %v1104
  %v1118 = vadd.f32 %v919, %v1087
  %v1119 = vadd.f32 %v921, %v1101
  %v1120 = vadd.f32 %v923, %v1103
  %v1121 = vadd.f32 %v925, %v1105
  %v1122 = vxor.u32 %v1114, 2147483648
  %v1123 = vxor.u32 %v1115, 2147483648
  %v1124 = vxor.u32 %v1116, 2147483648
  %v1125 = vxor.u32 %v1117, 2147483648
  %v1126 = vxor.u32 %v1118, 2147483648
  %v1127 = vxor.u32 %v1119, 2147483648
  %v1128 = vxor.u32 %v1120, 2147483648
  %v1129 = vxor.u32 %v1121, 2147483648
  %v1130 = vmul.f32 %v1122, 1.442695
  %v1131 = vpow.pop %v1130
  %v1132 = vmul.f32 %v1123, 1.442695
  %v1133 = vpow.pop %v1132
  %v1134 = vmul.f32 %v1124, 1.442695
  %v1135 = vpow.pop %v1134
  %v1136 = vmul.f32 %v1125, 1.442695
  %v1137 = vpow.pop %v1136
  %v1138 = vmul.f32 %v1126, 1.442695
  %v1139 = vpow.pop %v1138
  %v1140 = vmul.f32 %v1127, 1.442695
  %v1141 = vpow.pop %v1140
  %v1142 = vmul.f32 %v1128, 1.442695
  %v1143 = vpow.pop %v1142
  %v1144 = vmul.f32 %v1129, 1.442695
  %v1145 = vpow.pop %v1144
  %v1146 = vadd.f32 %v1131, 1.0
  %v1147 = vadd.f32 %v1133, 1.0
  %v1148 = vadd.f32 %v1135, 1.0
  %v1149 = vadd.f32 %v1137, 1.0
  %v1150 = vadd.f32 %v1139, 1.0
  %v1151 = vadd.f32 %v1141, 1.0
  %v1152 = vadd.f32 %v1143, 1.0
  %v1153 = vadd.f32 %v1145, 1.0
  %v1154 = vrcp.pop %v1146
  %v1155 = vmul.f32 1.0, %v1154
  %v1156 = vrcp.pop %v1147
  %v1157 = vmul.f32 1.0, %v1156
  %v1158 = vrcp.pop %v1148
  %v1159 = vmul.f32 1.0, %v1158
  %v1160 = vrcp.pop %v1149
  %v1161 = vmul.f32 1.0, %v1160
  %v1162 = vrcp.pop %v1150
  %v1163 = vmul.f32 1.0, %v1162
  %v1164 = vrcp.pop %v1151
  %v1165 = vmul.f32 1.0, %v1164
  %v1166 = vrcp.pop %v1152
  %v1167 = vmul.f32 1.0, %v1166
  %v1168 = vrcp.pop %v1153
  %v1169 = vmul.f32 1.0, %v1168
  %v1170 = vadd.f32 %v1049, %v398
  %v1172 = vcombine.high %v1170, %v1170
  %v1174 = vunpack.c.l.s4 1966171168
  %v1175 = vunpack.c.0.s8 %v1174
  %v1176 = vlaneseq
  %v1177 = vshrl.u32 %v1176, 7
  %v1178 = vsub.s32 %v1175, %v1177
  %v1179 = vrot.slane %v1170, %v1178
  %v1181 = vunpack.c.l.s4 1966171168
  %v1182 = vunpack.c.0.s8 %v1181
  %v1183 = vlaneseq
  %v1184 = vshrl.u32 %v1183, 7
  %v1185 = vsub.s32 %v1182, %v1184
  %v1186 = vrot.slane %v1172, %v1185
  %v1187 = vcombine.high %v1179, %v1179
  %v1188 = vcombine.high %v1186, %v1186
  %v1190 = vunpack.c.l.s4 1966171168
  %v1191 = vunpack.c.0.s8 %v1190
  %v1192 = vlaneseq
  %v1193 = vshrl.u32 %v1192, 7
  %v1194 = vsub.s32 %v1191, %v1193
  %v1195 = vrot.slane %v1179, %v1194
  %v1197 = vunpack.c.l.s4 1966171168
  %v1198 = vunpack.c.0.s8 %v1197
  %v1199 = vlaneseq
  %v1200 = vshrl.u32 %v1199, 7
  %v1201 = vsub.s32 %v1198, %v1200
  %v1202 = vrot.slane %v1186, %v1201
  %v1204 = vunpack.c.l.s4 1966171168
  %v1205 = vunpack.c.0.s8 %v1204
  %v1206 = vlaneseq
  %v1207 = vshrl.u32 %v1206, 7
  %v1208 = vsub.s32 %v1205, %v1207
  %v1209 = vrot.slane %v1187, %v1208
  %v1211 = vunpack.c.l.s4 1966171168
  %v1212 = vunpack.c.0.s8 %v1211
  %v1213 = vlaneseq
  %v1214 = vshrl.u32 %v1213, 7
  %v1215 = vsub.s32 %v1212, %v1214
  %v1216 = vrot.slane %v1188, %v1215
  %v1217 = vcombine.high %v1195, %v1195
  %v1218 = vcombine.high %v1202, %v1202
  %v1219 = vcombine.high %v1209, %v1209
  %v1220 = vcombine.high %v1216, %v1216
  %v1229 = vmul.f32 %v1155, %v1195
  %v1230 = vmul.f32 %v1157, %v1209
  %v1231 = vmul.f32 %v1159, %v1217
  %v1232 = vmul.f32 %v1161, %v1219
  %v1233 = vmul.f32 %v1163, %v1202
  %v1234 = vmul.f32 %v1165, %v1216
  %v1235 = vmul.f32 %v1167, %v1218
  %v1236 = vmul.f32 %v1169, %v1220
  %v1245 = vrot.slane %v911, 2
  %v1246 = vrot.slane %v913, 2
  %v1247 = vrot.slane %v915, 2
  %v1248 = vrot.slane %v917, 2
  %v1249 = vrot.slane %v919, 2
  %v1250 = vrot.slane %v921, 2
  %v1251 = vrot.slane %v923, 2
  %v1252 = vrot.slane %v925, 2
  %v1261 = vadd.f32 %v1245, %v1229
  %v1262 = vadd.f32 %v1246, %v1230
  %v1263 = vadd.f32 %v1247, %v1231
  %v1264 = vadd.f32 %v1248, %v1232
  %v1265 = vadd.f32 %v1249, %v1233
  %v1266 = vadd.f32 %v1250, %v1234
  %v1267 = vadd.f32 %v1251, %v1235
  %v1268 = vadd.f32 %v1252, %v1236
  %v1269 = vtanh.pop %v1261
  %v1270 = vtanh.pop %v1262
  %v1271 = vtanh.pop %v1263
  %v1272 = vtanh.pop %v1264
  %v1273 = vtanh.pop %v1265
  %v1274 = vtanh.pop %v1266
  %v1275 = vtanh.pop %v1267
  %v1276 = vtanh.pop %v1268
  %v1285 = vrot.slane %v1155, 1
  %v1286 = vrot.slane %v1157, 1
  %v1287 = vrot.slane %v1159, 1
  %v1288 = vrot.slane %v1161, 1
  %v1289 = vrot.slane %v1163, 1
  %v1290 = vrot.slane %v1165, 1
  %v1291 = vrot.slane %v1167, 1
  %v1292 = vrot.slane %v1169, 1
  %v1301 = vsub.f32 1.0, %v1285
  %v1302 = vsub.f32 1.0, %v1286
  %v1303 = vsub.f32 1.0, %v1287
  %v1304 = vsub.f32 1.0, %v1288
  %v1305 = vsub.f32 1.0, %v1289
  %v1306 = vsub.f32 1.0, %v1290
  %v1307 = vsub.f32 1.0, %v1291
  %v1308 = vsub.f32 1.0, %v1292
  %v1309 = vmul.f32 %v1301, %v1269
  %v1310 = vmul.f32 %v1302, %v1270
  %v1311 = vmul.f32 %v1303, %v1271
  %v1312 = vmul.f32 %v1304, %v1272
  %v1313 = vmul.f32 %v1305, %v1273
  %v1314 = vmul.f32 %v1306, %v1274
  %v1315 = vmul.f32 %v1307, %v1275
  %v1316 = vmul.f32 %v1308, %v1276
  %v1317 = vmul.f32 %v1285, %v902
  %v1318 = vmul.f32 %v1286, %v903
  %v1319 = vmul.f32 %v1287, %v904
  %v1320 = vmul.f32 %v1288, %v905
  %v1321 = vmul.f32 %v1289, %v906
  %v1322 = vmul.f32 %v1290, %v907
  %v1323 = vmul.f32 %v1291, %v908
  %v1324 = vmul.f32 %v1292, %v909
  %v1325 = vadd.f32 %v1309, %v1317
  %v1326 = vadd.f32 %v1310, %v1318
  %v1327 = vadd.f32 %v1311, %v1319
  %v1328 = vadd.f32 %v1312, %v1320
  %v1329 = vadd.f32 %v1313, %v1321
  %v1330 = vadd.f32 %v1314, %v1322
  %v1331 = vadd.f32 %v1315, %v1323
  %v1332 = vadd.f32 %v1316, %v1324
  %s1333 = scalar_lea.vmem [#allocation2], 2
  %v1334 = vld [vmem:[%s1333] ss:$8 sm:$0x7]
  %s1335 = scalar_lea.vmem [#allocation2], 26
  %v1336 = vld [vmem:[%s1335] ss:$8 sm:$0x7]
  %s1337 = scalar_lea.vmem [#allocation2], 50
  %v1338 = vld [vmem:[%s1337] ss:$8 sm:$0x7]
  %s1339 = scalar_lea.vmem [#allocation2], 74
  %v1340 = vld [vmem:[%s1339] ss:$8 sm:$0x7]
  %s1341 = scalar_lea.vmem [#allocation2], 98
  %v1342 = vld [vmem:[%s1341] ss:$8 sm:$0x7]
  %s1343 = scalar_lea.vmem [#allocation2], 122
  %v1344 = vld [vmem:[%s1343] ss:$8 sm:$0x7]
  %s1345 = scalar_lea.vmem [#allocation2], 146
  %v1346 = vld [vmem:[%s1345] ss:$8 sm:$0x7]
  %s1347 = scalar_lea.vmem [#allocation2], 170
  %v1348 = vld [vmem:[%s1347] ss:$8 sm:$0x7]
  %v1349 = vpack.c.bf16 %v1325, %v1325
  %v1350 = vpack.c.bf16 %v1326, %v1326
  %v1351 = vpack.c.bf16 %v1327, %v1327
  %v1352 = vpack.c.bf16 %v1328, %v1328
  %v1353 = vpack.c.bf16 %v1329, %v1329
  %v1354 = vpack.c.bf16 %v1330, %v1330
  %v1355 = vpack.c.bf16 %v1331, %v1331
  %v1356 = vpack.c.bf16 %v1332, %v1332
  %v1365 = vunpack.c.l.b16 %v1349
  %v1366 = vunpack.c.l.b16 %v1350
  %v1367 = vunpack.c.l.b16 %v1351
  %v1368 = vunpack.c.l.b16 %v1352
  %v1369 = vunpack.c.l.b16 %v1353
  %v1370 = vunpack.c.l.b16 %v1354
  %v1371 = vunpack.c.l.b16 %v1355
  %v1372 = vunpack.c.l.b16 %v1356
  %v1373 = vrot.slane %v1366, 7
  %v1374 = vsel %vm951, %v1373, %v1365
  %v1375 = vrot.slane %v1367, 6
  %v1376 = vsel %vm954, %v1375, %v1374
  %v1377 = vrot.slane %v1368, 5
  %v1378 = vsel %vm957, %v1377, %v1376
  %v1379 = vrot.slane %v1369, 4
  %v1380 = vsel %vm960, %v1379, %v1378
  %v1381 = vrot.slane %v1370, 3
  %v1382 = vsel %vm963, %v1381, %v1380
  %v1383 = vrot.slane %v1371, 2
  %v1384 = vsel %vm966, %v1383, %v1382
  %v1385 = vrot.slane %v1372, 1
  %v1386 = vsel %vm969, %v1385, %v1384
  %v1387 = vpack.c.b16 %v1386, %v1386
  %1389 = vmatprep.subr.bf16.mxu0 %v524
  %1390 = vmatpush1.bf16.msra.mxu0 %v523
  %1391 = vmatprep.subr.bf16.mxu0 %v521
  %1392 = vmatpush1.bf16.msra.mxu0 %v520
  %1393 = vmatprep.subr.bf16.mxu0 %v518
  %1394 = vmatpush1.bf16.msra.mxu0 %v517
  %1395 = vmatprep.subr.bf16.mxu0 %v515
  %1396 = vmatpush1.bf16.msra.mxu0 %v514
  %1397 = vmatprep.subr.bf16.mxu0 %v512
  %1398 = vmatpush1.bf16.msra.mxu0 %v511
  %1399 = vmatprep.subr.bf16.mxu0 %v509
  %1400 = vmatpush1.bf16.msra.mxu0 %v508
  %1401 = vmatprep.subr.bf16.mxu0 %v506
  %1402 = vmatpush1.bf16.msra.mxu0 %v505
  %1403 = vmatprep.subr.bf16.mxu0 %v503
  %1404 = vmatpush1.bf16.msra.mxu0 %v502
  %1405 = vmatprep.subr.bf16.mxu0 0
  %1406 = vmatpush2.bf16.msra.mxu0 0
  %1407 = vmatprep.subr.bf16.mxu0 0
  %1408 = vmatpush2.bf16.msra.mxu0 0
  %1409 = vmatprep.subr.bf16.mxu0 0
  %1410 = vmatpush2.bf16.msra.mxu0 0
  %1411 = vmatprep.subr.bf16.mxu0 0
  %1412 = vmatpush2.bf16.msra.mxu0 0
  %1413 = vmatprep.subr.bf16.mxu0 0
  %1414 = vmatpush2.bf16.msra.mxu0 0
  %1415 = vmatprep.subr.bf16.mxu0 0
  %1416 = vmatpush2.bf16.msra.mxu0 0
  %1417 = vmatprep.subr.bf16.mxu0 0
  %1418 = vmatpush2.bf16.msra.mxu0 0
  %1419 = vmatprep.subr.bf16.mxu0 0
  %1420 = vmatpush2.bf16.msra.mxu0 0
  %1421 = vmatprep.mubr.bf16.mxu0 0
  %1422 = vmatmul.mubr.bf16.gmra.mxu0 %v1387
  %v1423 = vpop.f32.mrf.mxu0
  %v1424 = vadd.f32 0.0, %v1423
  %v1425 = vpop.f32.mrf.mxu0
  %v1426 = vadd.f32 0.0, %v1425
  %v1427 = vpop.f32.mrf.mxu0
  %v1428 = vpop.f32.mrf.mxu0
  %1429 = vdwg.mxu0
  %1430 = vmatprep.subr.bf16.mxu0 0
  %1431 = vmatpush1.bf16.msra.mxu0 %v525
  %1432 = vmatprep.subr.bf16.mxu0 0
  %1433 = vmatpush1.bf16.msra.mxu0 %v522
  %1434 = vmatprep.subr.bf16.mxu0 0
  %1435 = vmatpush1.bf16.msra.mxu0 %v519
  %1436 = vmatprep.subr.bf16.mxu0 0
  %1437 = vmatpush1.bf16.msra.mxu0 %v516
  %1438 = vmatprep.subr.bf16.mxu0 0
  %1439 = vmatpush1.bf16.msra.mxu0 %v513
  %1440 = vmatprep.subr.bf16.mxu0 0
  %1441 = vmatpush1.bf16.msra.mxu0 %v510
  %1442 = vmatprep.subr.bf16.mxu0 0
  %1443 = vmatpush1.bf16.msra.mxu0 %v507
  %1444 = vmatprep.subr.bf16.mxu0 0
  %1445 = vmatpush1.bf16.msra.mxu0 %v504
  %1446 = vmatprep.subr.bf16.mxu0 0
  %1447 = vmatpush2.bf16.msra.mxu0 0
  %1448 = vmatprep.subr.bf16.mxu0 0
  %1449 = vmatpush2.bf16.msra.mxu0 0
  %1450 = vmatprep.subr.bf16.mxu0 0
  %1451 = vmatpush2.bf16.msra.mxu0 0
  %1452 = vmatprep.subr.bf16.mxu0 0
  %1453 = vmatpush2.bf16.msra.mxu0 0
  %1454 = vmatprep.subr.bf16.mxu0 0
  %1455 = vmatpush2.bf16.msra.mxu0 0
  %1456 = vmatprep.subr.bf16.mxu0 0
  %1457 = vmatpush2.bf16.msra.mxu0 0
  %1458 = vmatprep.subr.bf16.mxu0 0
  %1459 = vmatpush2.bf16.msra.mxu0 0
  %1460 = vmatprep.subr.bf16.mxu0 0
  %1461 = vmatpush2.bf16.msra.mxu0 0
  %1462 = vmatprep.mubr.bf16.mxu0 0
  %1463 = vmatmul.mubr.bf16.gmra.mxu0 %v1387
  %v1464 = vpop.f32.mrf.mxu0
  %v1465 = vadd.f32 0.0, %v1464
  %v1466 = vpop.f32.mrf.mxu0
  %v1467 = vpop.f32.mrf.mxu0
  %v1468 = vpop.f32.mrf.mxu0
  %1469 = vdwg.mxu0
  %v1472 = vcombine.low %v1424, %v1426
  %v1473 = vcombine.high %v1424, %v1426
  %v1475 = vunpack.c.l.s4 1966171168
  %v1476 = vunpack.c.0.s8 %v1475
  %v1477 = vlaneseq
  %v1478 = vshrl.u32 %v1477, 7
  %v1479 = vsub.s32 %v1476, %v1478
  %v1480 = vrot.slane %v1472, %v1479
  %v1482 = vunpack.c.l.s4 1966171168
  %v1483 = vunpack.c.0.s8 %v1482
  %v1484 = vlaneseq
  %v1485 = vshrl.u32 %v1484, 7
  %v1486 = vsub.s32 %v1483, %v1485
  %v1487 = vrot.slane %v1473, %v1486
  %v1488 = vcombine.high %v1480, %v1480
  %v1489 = vcombine.high %v1487, %v1487
  %v1491 = vunpack.c.l.s4 1966171168
  %v1492 = vunpack.c.0.s8 %v1491
  %v1493 = vlaneseq
  %v1494 = vshrl.u32 %v1493, 7
  %v1495 = vsub.s32 %v1492, %v1494
  %v1496 = vrot.slane %v1480, %v1495
  %v1498 = vunpack.c.l.s4 1966171168
  %v1499 = vunpack.c.0.s8 %v1498
  %v1500 = vlaneseq
  %v1501 = vshrl.u32 %v1500, 7
  %v1502 = vsub.s32 %v1499, %v1501
  %v1503 = vrot.slane %v1487, %v1502
  %v1505 = vunpack.c.l.s4 1966171168
  %v1506 = vunpack.c.0.s8 %v1505
  %v1507 = vlaneseq
  %v1508 = vshrl.u32 %v1507, 7
  %v1509 = vsub.s32 %v1506, %v1508
  %v1510 = vrot.slane %v1488, %v1509
  %v1512 = vunpack.c.l.s4 1966171168
  %v1513 = vunpack.c.0.s8 %v1512
  %v1514 = vlaneseq
  %v1515 = vshrl.u32 %v1514, 7
  %v1516 = vsub.s32 %v1513, %v1515
  %v1517 = vrot.slane %v1489, %v1516
  %v1518 = vcombine.high %v1496, %v1496
  %v1519 = vcombine.high %v1503, %v1503
  %v1520 = vcombine.high %v1510, %v1510
  %v1521 = vcombine.high %v1517, %v1517
  %v1530 = vadd.f32 %v1334, %v1496
  %v1531 = vadd.f32 %v1336, %v1510
  %v1532 = vadd.f32 %v1338, %v1518
  %v1533 = vadd.f32 %v1340, %v1520
  %v1534 = vadd.f32 %v1342, %v1503
  %v1535 = vadd.f32 %v1344, %v1517
  %v1536 = vadd.f32 %v1346, %v1519
  %v1537 = vadd.f32 %v1348, %v1521
  %v1538 = vxor.u32 %v1530, 2147483648
  %v1539 = vxor.u32 %v1531, 2147483648
  %v1540 = vxor.u32 %v1532, 2147483648
  %v1541 = vxor.u32 %v1533, 2147483648
  %v1542 = vxor.u32 %v1534, 2147483648
  %v1543 = vxor.u32 %v1535, 2147483648
  %v1544 = vxor.u32 %v1536, 2147483648
  %v1545 = vxor.u32 %v1537, 2147483648
  %v1546 = vmul.f32 %v1538, 1.442695
  %v1547 = vpow.pop %v1546
  %v1548 = vmul.f32 %v1539, 1.442695
  %v1549 = vpow.pop %v1548
  %v1550 = vmul.f32 %v1540, 1.442695
  %v1551 = vpow.pop %v1550
  %v1552 = vmul.f32 %v1541, 1.442695
  %v1553 = vpow.pop %v1552
  %v1554 = vmul.f32 %v1542, 1.442695
  %v1555 = vpow.pop %v1554
  %v1556 = vmul.f32 %v1543, 1.442695
  %v1557 = vpow.pop %v1556
  %v1558 = vmul.f32 %v1544, 1.442695
  %v1559 = vpow.pop %v1558
  %v1560 = vmul.f32 %v1545, 1.442695
  %v1561 = vpow.pop %v1560
  %v1562 = vadd.f32 %v1547, 1.0
  %v1563 = vadd.f32 %v1549, 1.0
  %v1564 = vadd.f32 %v1551, 1.0
  %v1565 = vadd.f32 %v1553, 1.0
  %v1566 = vadd.f32 %v1555, 1.0
  %v1567 = vadd.f32 %v1557, 1.0
  %v1568 = vadd.f32 %v1559, 1.0
  %v1569 = vadd.f32 %v1561, 1.0
  %v1570 = vrcp.pop %v1562
  %v1571 = vmul.f32 1.0, %v1570
  %v1572 = vrcp.pop %v1563
  %v1573 = vmul.f32 1.0, %v1572
  %v1574 = vrcp.pop %v1564
  %v1575 = vmul.f32 1.0, %v1574
  %v1576 = vrcp.pop %v1565
  %v1577 = vmul.f32 1.0, %v1576
  %v1578 = vrcp.pop %v1566
  %v1579 = vmul.f32 1.0, %v1578
  %v1580 = vrcp.pop %v1567
  %v1581 = vmul.f32 1.0, %v1580
  %v1582 = vrcp.pop %v1568
  %v1583 = vmul.f32 1.0, %v1582
  %v1584 = vrcp.pop %v1569
  %v1585 = vmul.f32 1.0, %v1584
  %v1586 = vadd.f32 %v1465, %v398
  %v1588 = vcombine.high %v1586, %v1586
  %v1590 = vunpack.c.l.s4 1966171168
  %v1591 = vunpack.c.0.s8 %v1590
  %v1592 = vlaneseq
  %v1593 = vshrl.u32 %v1592, 7
  %v1594 = vsub.s32 %v1591, %v1593
  %v1595 = vrot.slane %v1586, %v1594
  %v1597 = vunpack.c.l.s4 1966171168
  %v1598 = vunpack.c.0.s8 %v1597
  %v1599 = vlaneseq
  %v1600 = vshrl.u32 %v1599, 7
  %v1601 = vsub.s32 %v1598, %v1600
  %v1602 = vrot.slane %v1588, %v1601
  %v1603 = vcombine.high %v1595, %v1595
  %v1604 = vcombine.high %v1602, %v1602
  %v1606 = vunpack.c.l.s4 1966171168
  %v1607 = vunpack.c.0.s8 %v1606
  %v1608 = vlaneseq
  %v1609 = vshrl.u32 %v1608, 7
  %v1610 = vsub.s32 %v1607, %v1609
  %v1611 = vrot.slane %v1595, %v1610
  %v1613 = vunpack.c.l.s4 1966171168
  %v1614 = vunpack.c.0.s8 %v1613
  %v1615 = vlaneseq
  %v1616 = vshrl.u32 %v1615, 7
  %v1617 = vsub.s32 %v1614, %v1616
  %v1618 = vrot.slane %v1602, %v1617
  %v1620 = vunpack.c.l.s4 1966171168
  %v1621 = vunpack.c.0.s8 %v1620
  %v1622 = vlaneseq
  %v1623 = vshrl.u32 %v1622, 7
  %v1624 = vsub.s32 %v1621, %v1623
  %v1625 = vrot.slane %v1603, %v1624
  %v1627 = vunpack.c.l.s4 1966171168
  %v1628 = vunpack.c.0.s8 %v1627
  %v1629 = vlaneseq
  %v1630 = vshrl.u32 %v1629, 7
  %v1631 = vsub.s32 %v1628, %v1630
  %v1632 = vrot.slane %v1604, %v1631
  %v1633 = vcombine.high %v1611, %v1611
  %v1634 = vcombine.high %v1618, %v1618
  %v1635 = vcombine.high %v1625, %v1625
  %v1636 = vcombine.high %v1632, %v1632
  %v1645 = vmul.f32 %v1571, %v1611
  %v1646 = vmul.f32 %v1573, %v1625
  %v1647 = vmul.f32 %v1575, %v1633
  %v1648 = vmul.f32 %v1577, %v1635
  %v1649 = vmul.f32 %v1579, %v1618
  %v1650 = vmul.f32 %v1581, %v1632
  %v1651 = vmul.f32 %v1583, %v1634
  %v1652 = vmul.f32 %v1585, %v1636
  %v1661 = vrot.slane %v1334, 2
  %v1662 = vrot.slane %v1336, 2
  %v1663 = vrot.slane %v1338, 2
  %v1664 = vrot.slane %v1340, 2
  %v1665 = vrot.slane %v1342, 2
  %v1666 = vrot.slane %v1344, 2
  %v1667 = vrot.slane %v1346, 2
  %v1668 = vrot.slane %v1348, 2
  %v1677 = vadd.f32 %v1661, %v1645
  %v1678 = vadd.f32 %v1662, %v1646
  %v1679 = vadd.f32 %v1663, %v1647
  %v1680 = vadd.f32 %v1664, %v1648
  %v1681 = vadd.f32 %v1665, %v1649
  %v1682 = vadd.f32 %v1666, %v1650
  %v1683 = vadd.f32 %v1667, %v1651
  %v1684 = vadd.f32 %v1668, %v1652
  %v1685 = vtanh.pop %v1677
  %v1686 = vtanh.pop %v1678
  %v1687 = vtanh.pop %v1679
  %v1688 = vtanh.pop %v1680
  %v1689 = vtanh.pop %v1681
  %v1690 = vtanh.pop %v1682
  %v1691 = vtanh.pop %v1683
  %v1692 = vtanh.pop %v1684
  %v1701 = vrot.slane %v1571, 1
  %v1702 = vrot.slane %v1573, 1
  %v1703 = vrot.slane %v1575, 1
  %v1704 = vrot.slane %v1577, 1
  %v1705 = vrot.slane %v1579, 1
  %v1706 = vrot.slane %v1581, 1
  %v1707 = vrot.slane %v1583, 1
  %v1708 = vrot.slane %v1585, 1
  %v1717 = vsub.f32 1.0, %v1701
  %v1718 = vsub.f32 1.0, %v1702
  %v1719 = vsub.f32 1.0, %v1703
  %v1720 = vsub.f32 1.0, %v1704
  %v1721 = vsub.f32 1.0, %v1705
  %v1722 = vsub.f32 1.0, %v1706
  %v1723 = vsub.f32 1.0, %v1707
  %v1724 = vsub.f32 1.0, %v1708
  %v1725 = vmul.f32 %v1717, %v1685
  %v1726 = vmul.f32 %v1718, %v1686
  %v1727 = vmul.f32 %v1719, %v1687
  %v1728 = vmul.f32 %v1720, %v1688
  %v1729 = vmul.f32 %v1721, %v1689
  %v1730 = vmul.f32 %v1722, %v1690
  %v1731 = vmul.f32 %v1723, %v1691
  %v1732 = vmul.f32 %v1724, %v1692
  %v1733 = vmul.f32 %v1701, %v1325
  %v1734 = vmul.f32 %v1702, %v1326
  %v1735 = vmul.f32 %v1703, %v1327
  %v1736 = vmul.f32 %v1704, %v1328
  %v1737 = vmul.f32 %v1705, %v1329
  %v1738 = vmul.f32 %v1706, %v1330
  %v1739 = vmul.f32 %v1707, %v1331
  %v1740 = vmul.f32 %v1708, %v1332
  %v1741 = vadd.f32 %v1725, %v1733
  %v1742 = vadd.f32 %v1726, %v1734
  %v1743 = vadd.f32 %v1727, %v1735
  %v1744 = vadd.f32 %v1728, %v1736
  %v1745 = vadd.f32 %v1729, %v1737
  %v1746 = vadd.f32 %v1730, %v1738
  %v1747 = vadd.f32 %v1731, %v1739
  %v1748 = vadd.f32 %v1732, %v1740
  %s1749 = scalar_lea.vmem [#allocation2], 3
  %v1750 = vld [vmem:[%s1749] ss:$8 sm:$0x7]
  %s1751 = scalar_lea.vmem [#allocation2], 27
  %v1752 = vld [vmem:[%s1751] ss:$8 sm:$0x7]
  %s1753 = scalar_lea.vmem [#allocation2], 51
  %v1754 = vld [vmem:[%s1753] ss:$8 sm:$0x7]
  %s1755 = scalar_lea.vmem [#allocation2], 75
  %v1756 = vld [vmem:[%s1755] ss:$8 sm:$0x7]
  %s1757 = scalar_lea.vmem [#allocation2], 99
  %v1758 = vld [vmem:[%s1757] ss:$8 sm:$0x7]
  %s1759 = scalar_lea.vmem [#allocation2], 123
  %v1760 = vld [vmem:[%s1759] ss:$8 sm:$0x7]
  %s1761 = scalar_lea.vmem [#allocation2], 147
  %v1762 = vld [vmem:[%s1761] ss:$8 sm:$0x7]
  %s1763 = scalar_lea.vmem [#allocation2], 171
  %v1764 = vld [vmem:[%s1763] ss:$8 sm:$0x7]
  %v1765 = vpack.c.bf16 %v1741, %v1741
  %v1766 = vpack.c.bf16 %v1742, %v1742
  %v1767 = vpack.c.bf16 %v1743, %v1743
  %v1768 = vpack.c.bf16 %v1744, %v1744
  %v1769 = vpack.c.bf16 %v1745, %v1745
  %v1770 = vpack.c.bf16 %v1746, %v1746
  %v1771 = vpack.c.bf16 %v1747, %v1747
  %v1772 = vpack.c.bf16 %v1748, %v1748
  %v1781 = vunpack.c.l.b16 %v1765
  %v1782 = vunpack.c.l.b16 %v1766
  %v1783 = vunpack.c.l.b16 %v1767
  %v1784 = vunpack.c.l.b16 %v1768
  %v1785 = vunpack.c.l.b16 %v1769
  %v1786 = vunpack.c.l.b16 %v1770
  %v1787 = vunpack.c.l.b16 %v1771
  %v1788 = vunpack.c.l.b16 %v1772
  %v1789 = vrot.slane %v1782, 7
  %v1790 = vsel %vm951, %v1789, %v1781
  %v1791 = vrot.slane %v1783, 6
  %v1792 = vsel %vm954, %v1791, %v1790
  %v1793 = vrot.slane %v1784, 5
  %v1794 = vsel %vm957, %v1793, %v1792
  %v1795 = vrot.slane %v1785, 4
  %v1796 = vsel %vm960, %v1795, %v1794
  %v1797 = vrot.slane %v1786, 3
  %v1798 = vsel %vm963, %v1797, %v1796
  %v1799 = vrot.slane %v1787, 2
  %v1800 = vsel %vm966, %v1799, %v1798
  %v1801 = vrot.slane %v1788, 1
  %v1802 = vsel %vm969, %v1801, %v1800
  %v1803 = vpack.c.b16 %v1802, %v1802
  %1805 = vmatprep.subr.bf16.mxu0 %v524
  %1806 = vmatpush1.bf16.msra.mxu0 %v523
  %1807 = vmatprep.subr.bf16.mxu0 %v521
  %1808 = vmatpush1.bf16.msra.mxu0 %v520
  %1809 = vmatprep.subr.bf16.mxu0 %v518
  %1810 = vmatpush1.bf16.msra.mxu0 %v517
  %1811 = vmatprep.subr.bf16.mxu0 %v515
  %1812 = vmatpush1.bf16.msra.mxu0 %v514
  %1813 = vmatprep.subr.bf16.mxu0 %v512
  %1814 = vmatpush1.bf16.msra.mxu0 %v511
  %1815 = vmatprep.subr.bf16.mxu0 %v509
  %1816 = vmatpush1.bf16.msra.mxu0 %v508
  %1817 = vmatprep.subr.bf16.mxu0 %v506
  %1818 = vmatpush1.bf16.msra.mxu0 %v505
  %1819 = vmatprep.subr.bf16.mxu0 %v503
  %1820 = vmatpush1.bf16.msra.mxu0 %v502
  %1821 = vmatprep.subr.bf16.mxu0 0
  %1822 = vmatpush2.bf16.msra.mxu0 0
  %1823 = vmatprep.subr.bf16.mxu0 0
  %1824 = vmatpush2.bf16.msra.mxu0 0
  %1825 = vmatprep.subr.bf16.mxu0 0
  %1826 = vmatpush2.bf16.msra.mxu0 0
  %1827 = vmatprep.subr.bf16.mxu0 0
  %1828 = vmatpush2.bf16.msra.mxu0 0
  %1829 = vmatprep.subr.bf16.mxu0 0
  %1830 = vmatpush2.bf16.msra.mxu0 0
  %1831 = vmatprep.subr.bf16.mxu0 0
  %1832 = vmatpush2.bf16.msra.mxu0 0
  %1833 = vmatprep.subr.bf16.mxu0 0
  %1834 = vmatpush2.bf16.msra.mxu0 0
  %1835 = vmatprep.subr.bf16.mxu0 0
  %1836 = vmatpush2.bf16.msra.mxu0 0
  %1837 = vmatprep.mubr.bf16.mxu0 0
  %1838 = vmatmul.mubr.bf16.gmra.mxu0 %v1803
  %v1839 = vpop.f32.mrf.mxu0
  %v1840 = vadd.f32 0.0, %v1839
  %v1841 = vpop.f32.mrf.mxu0
  %v1842 = vadd.f32 0.0, %v1841
  %v1843 = vpop.f32.mrf.mxu0
  %v1844 = vpop.f32.mrf.mxu0
  %1845 = vdwg.mxu0
  %1846 = vmatprep.subr.bf16.mxu0 0
  %1847 = vmatpush1.bf16.msra.mxu0 %v525
  %1848 = vmatprep.subr.bf16.mxu0 0
  %1849 = vmatpush1.bf16.msra.mxu0 %v522
  %1850 = vmatprep.subr.bf16.mxu0 0
  %1851 = vmatpush1.bf16.msra.mxu0 %v519
  %1852 = vmatprep.subr.bf16.mxu0 0
  %1853 = vmatpush1.bf16.msra.mxu0 %v516
  %1854 = vmatprep.subr.bf16.mxu0 0
  %1855 = vmatpush1.bf16.msra.mxu0 %v513
  %1856 = vmatprep.subr.bf16.mxu0 0
  %1857 = vmatpush1.bf16.msra.mxu0 %v510
  %1858 = vmatprep.subr.bf16.mxu0 0
  %1859 = vmatpush1.bf16.msra.mxu0 %v507
  %1860 = vmatprep.subr.bf16.mxu0 0
  %1861 = vmatpush1.bf16.msra.mxu0 %v504
  %1862 = vmatprep.subr.bf16.mxu0 0
  %1863 = vmatpush2.bf16.msra.mxu0 0
  %1864 = vmatprep.subr.bf16.mxu0 0
  %1865 = vmatpush2.bf16.msra.mxu0 0
  %1866 = vmatprep.subr.bf16.mxu0 0
  %1867 = vmatpush2.bf16.msra.mxu0 0
  %1868 = vmatprep.subr.bf16.mxu0 0
  %1869 = vmatpush2.bf16.msra.mxu0 0
  %1870 = vmatprep.subr.bf16.mxu0 0
  %1871 = vmatpush2.bf16.msra.mxu0 0
  %1872 = vmatprep.subr.bf16.mxu0 0
  %1873 = vmatpush2.bf16.msra.mxu0 0
  %1874 = vmatprep.subr.bf16.mxu0 0
  %1875 = vmatpush2.bf16.msra.mxu0 0
  %1876 = vmatprep.subr.bf16.mxu0 0
  %1877 = vmatpush2.bf16.msra.mxu0 0
  %1878 = vmatprep.mubr.bf16.mxu0 0
  %1879 = vmatmul.mubr.bf16.gmra.mxu0 %v1803
  %v1880 = vpop.f32.mrf.mxu0
  %v1881 = vadd.f32 0.0, %v1880
  %v1882 = vpop.f32.mrf.mxu0
  %v1883 = vpop.f32.mrf.mxu0
  %v1884 = vpop.f32.mrf.mxu0
  %1885 = vdwg.mxu0
  %v1888 = vcombine.low %v1840, %v1842
  %v1889 = vcombine.high %v1840, %v1842
  %v1891 = vunpack.c.l.s4 1966171168
  %v1892 = vunpack.c.0.s8 %v1891
  %v1893 = vlaneseq
  %v1894 = vshrl.u32 %v1893, 7
  %v1895 = vsub.s32 %v1892, %v1894
  %v1896 = vrot.slane %v1888, %v1895
  %v1898 = vunpack.c.l.s4 1966171168
  %v1899 = vunpack.c.0.s8 %v1898
  %v1900 = vlaneseq
  %v1901 = vshrl.u32 %v1900, 7
  %v1902 = vsub.s32 %v1899, %v1901
  %v1903 = vrot.slane %v1889, %v1902
  %v1904 = vcombine.high %v1896, %v1896
  %v1905 = vcombine.high %v1903, %v1903
  %v1907 = vunpack.c.l.s4 1966171168
  %v1908 = vunpack.c.0.s8 %v1907
  %v1909 = vlaneseq
  %v1910 = vshrl.u32 %v1909, 7
  %v1911 = vsub.s32 %v1908, %v1910
  %v1912 = vrot.slane %v1896, %v1911
  %v1914 = vunpack.c.l.s4 1966171168
  %v1915 = vunpack.c.0.s8 %v1914
  %v1916 = vlaneseq
  %v1917 = vshrl.u32 %v1916, 7
  %v1918 = vsub.s32 %v1915, %v1917
  %v1919 = vrot.slane %v1903, %v1918
  %v1921 = vunpack.c.l.s4 1966171168
  %v1922 = vunpack.c.0.s8 %v1921
  %v1923 = vlaneseq
  %v1924 = vshrl.u32 %v1923, 7
  %v1925 = vsub.s32 %v1922, %v1924
  %v1926 = vrot.slane %v1904, %v1925
  %v1928 = vunpack.c.l.s4 1966171168
  %v1929 = vunpack.c.0.s8 %v1928
  %v1930 = vlaneseq
  %v1931 = vshrl.u32 %v1930, 7
  %v1932 = vsub.s32 %v1929, %v1931
  %v1933 = vrot.slane %v1905, %v1932
  %v1934 = vcombine.high %v1912, %v1912
  %v1935 = vcombine.high %v1919, %v1919
  %v1936 = vcombine.high %v1926, %v1926
  %v1937 = vcombine.high %v1933, %v1933
  %v1946 = vadd.f32 %v1750, %v1912
  %v1947 = vadd.f32 %v1752, %v1926
  %v1948 = vadd.f32 %v1754, %v1934
  %v1949 = vadd.f32 %v1756, %v1936
  %v1950 = vadd.f32 %v1758, %v1919
  %v1951 = vadd.f32 %v1760, %v1933
  %v1952 = vadd.f32 %v1762, %v1935
  %v1953 = vadd.f32 %v1764, %v1937
  %v1954 = vxor.u32 %v1946, 2147483648
  %v1955 = vxor.u32 %v1947, 2147483648
  %v1956 = vxor.u32 %v1948, 2147483648
  %v1957 = vxor.u32 %v1949, 2147483648
  %v1958 = vxor.u32 %v1950, 2147483648
  %v1959 = vxor.u32 %v1951, 2147483648
  %v1960 = vxor.u32 %v1952, 2147483648
  %v1961 = vxor.u32 %v1953, 2147483648
  %v1962 = vmul.f32 %v1954, 1.442695
  %v1963 = vpow.pop %v1962
  %v1964 = vmul.f32 %v1955, 1.442695
  %v1965 = vpow.pop %v1964
  %v1966 = vmul.f32 %v1956, 1.442695
  %v1967 = vpow.pop %v1966
  %v1968 = vmul.f32 %v1957, 1.442695
  %v1969 = vpow.pop %v1968
  %v1970 = vmul.f32 %v1958, 1.442695
  %v1971 = vpow.pop %v1970
  %v1972 = vmul.f32 %v1959, 1.442695
  %v1973 = vpow.pop %v1972
  %v1974 = vmul.f32 %v1960, 1.442695
  %v1975 = vpow.pop %v1974
  %v1976 = vmul.f32 %v1961, 1.442695
  %v1977 = vpow.pop %v1976
  %v1978 = vadd.f32 %v1963, 1.0
  %v1979 = vadd.f32 %v1965, 1.0
  %v1980 = vadd.f32 %v1967, 1.0
  %v1981 = vadd.f32 %v1969, 1.0
  %v1982 = vadd.f32 %v1971, 1.0
  %v1983 = vadd.f32 %v1973, 1.0
  %v1984 = vadd.f32 %v1975, 1.0
  %v1985 = vadd.f32 %v1977, 1.0
  %v1986 = vrcp.pop %v1978
  %v1987 = vmul.f32 1.0, %v1986
  %v1988 = vrcp.pop %v1979
  %v1989 = vmul.f32 1.0, %v1988
  %v1990 = vrcp.pop %v1980
  %v1991 = vmul.f32 1.0, %v1990
  %v1992 = vrcp.pop %v1981
  %v1993 = vmul.f32 1.0, %v1992
  %v1994 = vrcp.pop %v1982
  %v1995 = vmul.f32 1.0, %v1994
  %v1996 = vrcp.pop %v1983
  %v1997 = vmul.f32 1.0, %v1996
  %v1998 = vrcp.pop %v1984
  %v1999 = vmul.f32 1.0, %v1998
  %v2000 = vrcp.pop %v1985
  %v2001 = vmul.f32 1.0, %v2000
  %v2002 = vadd.f32 %v1881, %v398
  %v2004 = vcombine.high %v2002, %v2002
  %v2006 = vunpack.c.l.s4 1966171168
  %v2007 = vunpack.c.0.s8 %v2006
  %v2008 = vlaneseq
  %v2009 = vshrl.u32 %v2008, 7
  %v2010 = vsub.s32 %v2007, %v2009
  %v2011 = vrot.slane %v2002, %v2010
  %v2013 = vunpack.c.l.s4 1966171168
  %v2014 = vunpack.c.0.s8 %v2013
  %v2015 = vlaneseq
  %v2016 = vshrl.u32 %v2015, 7
  %v2017 = vsub.s32 %v2014, %v2016
  %v2018 = vrot.slane %v2004, %v2017
  %v2019 = vcombine.high %v2011, %v2011
  %v2020 = vcombine.high %v2018, %v2018
  %v2022 = vunpack.c.l.s4 1966171168
  %v2023 = vunpack.c.0.s8 %v2022
  %v2024 = vlaneseq
  %v2025 = vshrl.u32 %v2024, 7
  %v2026 = vsub.s32 %v2023, %v2025
  %v2027 = vrot.slane %v2011, %v2026
  %v2029 = vunpack.c.l.s4 1966171168
  %v2030 = vunpack.c.0.s8 %v2029
  %v2031 = vlaneseq
  %v2032 = vshrl.u32 %v2031, 7
  %v2033 = vsub.s32 %v2030, %v2032
  %v2034 = vrot.slane %v2018, %v2033
  %v2036 = vunpack.c.l.s4 1966171168
  %v2037 = vunpack.c.0.s8 %v2036
  %v2038 = vlaneseq
  %v2039 = vshrl.u32 %v2038, 7
  %v2040 = vsub.s32 %v2037, %v2039
  %v2041 = vrot.slane %v2019, %v2040
  %v2043 = vunpack.c.l.s4 1966171168
  %v2044 = vunpack.c.0.s8 %v2043
  %v2045 = vlaneseq
  %v2046 = vshrl.u32 %v2045, 7
  %v2047 = vsub.s32 %v2044, %v2046
  %v2048 = vrot.slane %v2020, %v2047
  %v2049 = vcombine.high %v2027, %v2027
  %v2050 = vcombine.high %v2034, %v2034
  %v2051 = vcombine.high %v2041, %v2041
  %v2052 = vcombine.high %v2048, %v2048
  %v2061 = vmul.f32 %v1987, %v2027
  %v2062 = vmul.f32 %v1989, %v2041
  %v2063 = vmul.f32 %v1991, %v2049
  %v2064 = vmul.f32 %v1993, %v2051
  %v2065 = vmul.f32 %v1995, %v2034
  %v2066 = vmul.f32 %v1997, %v2048
  %v2067 = vmul.f32 %v1999, %v2050
  %v2068 = vmul.f32 %v2001, %v2052
  %v2077 = vrot.slane %v1750, 2
  %v2078 = vrot.slane %v1752, 2
  %v2079 = vrot.slane %v1754, 2
  %v2080 = vrot.slane %v1756, 2
  %v2081 = vrot.slane %v1758, 2
  %v2082 = vrot.slane %v1760, 2
  %v2083 = vrot.slane %v1762, 2
  %v2084 = vrot.slane %v1764, 2
  %v2093 = vadd.f32 %v2077, %v2061
  %v2094 = vadd.f32 %v2078, %v2062
  %v2095 = vadd.f32 %v2079, %v2063
  %v2096 = vadd.f32 %v2080, %v2064
  %v2097 = vadd.f32 %v2081, %v2065
  %v2098 = vadd.f32 %v2082, %v2066
  %v2099 = vadd.f32 %v2083, %v2067
  %v2100 = vadd.f32 %v2084, %v2068
  %v2101 = vtanh.pop %v2093
  %v2102 = vtanh.pop %v2094
  %v2103 = vtanh.pop %v2095
  %v2104 = vtanh.pop %v2096
  %v2105 = vtanh.pop %v2097
  %v2106 = vtanh.pop %v2098
  %v2107 = vtanh.pop %v2099
  %v2108 = vtanh.pop %v2100
  %v2117 = vrot.slane %v1987, 1
  %v2118 = vrot.slane %v1989, 1
  %v2119 = vrot.slane %v1991, 1
  %v2120 = vrot.slane %v1993, 1
  %v2121 = vrot.slane %v1995, 1
  %v2122 = vrot.slane %v1997, 1
  %v2123 = vrot.slane %v1999, 1
  %v2124 = vrot.slane %v2001, 1
  %v2133 = vsub.f32 1.0, %v2117
  %v2134 = vsub.f32 1.0, %v2118
  %v2135 = vsub.f32 1.0, %v2119
  %v2136 = vsub.f32 1.0, %v2120
  %v2137 = vsub.f32 1.0, %v2121
  %v2138 = vsub.f32 1.0, %v2122
  %v2139 = vsub.f32 1.0, %v2123
  %v2140 = vsub.f32 1.0, %v2124
  %v2141 = vmul.f32 %v2133, %v2101
  %v2142 = vmul.f32 %v2134, %v2102
  %v2143 = vmul.f32 %v2135, %v2103
  %v2144 = vmul.f32 %v2136, %v2104
  %v2145 = vmul.f32 %v2137, %v2105
  %v2146 = vmul.f32 %v2138, %v2106
  %v2147 = vmul.f32 %v2139, %v2107
  %v2148 = vmul.f32 %v2140, %v2108
  %v2149 = vmul.f32 %v2117, %v1741
  %v2150 = vmul.f32 %v2118, %v1742
  %v2151 = vmul.f32 %v2119, %v1743
  %v2152 = vmul.f32 %v2120, %v1744
  %v2153 = vmul.f32 %v2121, %v1745
  %v2154 = vmul.f32 %v2122, %v1746
  %v2155 = vmul.f32 %v2123, %v1747
  %v2156 = vmul.f32 %v2124, %v1748
  %v2157 = vadd.f32 %v2141, %v2149
  %v2158 = vadd.f32 %v2142, %v2150
  %v2159 = vadd.f32 %v2143, %v2151
  %v2160 = vadd.f32 %v2144, %v2152
  %v2161 = vadd.f32 %v2145, %v2153
  %v2162 = vadd.f32 %v2146, %v2154
  %v2163 = vadd.f32 %v2147, %v2155
  %v2164 = vadd.f32 %v2148, %v2156
  %s2165 = scalar_lea.vmem [#allocation2], 4
  %v2166 = vld [vmem:[%s2165] ss:$8 sm:$0x7]
  %s2167 = scalar_lea.vmem [#allocation2], 28
  %v2168 = vld [vmem:[%s2167] ss:$8 sm:$0x7]
  %s2169 = scalar_lea.vmem [#allocation2], 52
  %v2170 = vld [vmem:[%s2169] ss:$8 sm:$0x7]
  %s2171 = scalar_lea.vmem [#allocation2], 76
  %v2172 = vld [vmem:[%s2171] ss:$8 sm:$0x7]
  %s2173 = scalar_lea.vmem [#allocation2], 100
  %v2174 = vld [vmem:[%s2173] ss:$8 sm:$0x7]
  %s2175 = scalar_lea.vmem [#allocation2], 124
  %v2176 = vld [vmem:[%s2175] ss:$8 sm:$0x7]
  %s2177 = scalar_lea.vmem [#allocation2], 148
  %v2178 = vld [vmem:[%s2177] ss:$8 sm:$0x7]
  %s2179 = scalar_lea.vmem [#allocation2], 172
  %v2180 = vld [vmem:[%s2179] ss:$8 sm:$0x7]
  %v2181 = vpack.c.bf16 %v2157, %v2157
  %v2182 = vpack.c.bf16 %v2158, %v2158
  %v2183 = vpack.c.bf16 %v2159, %v2159
  %v2184 = vpack.c.bf16 %v2160, %v2160
  %v2185 = vpack.c.bf16 %v2161, %v2161
  %v2186 = vpack.c.bf16 %v2162, %v2162
  %v2187 = vpack.c.bf16 %v2163, %v2163
  %v2188 = vpack.c.bf16 %v2164, %v2164
  %v2197 = vunpack.c.l.b16 %v2181
  %v2198 = vunpack.c.l.b16 %v2182
  %v2199 = vunpack.c.l.b16 %v2183
  %v2200 = vunpack.c.l.b16 %v2184
  %v2201 = vunpack.c.l.b16 %v2185
  %v2202 = vunpack.c.l.b16 %v2186
  %v2203 = vunpack.c.l.b16 %v2187
  %v2204 = vunpack.c.l.b16 %v2188
  %v2205 = vrot.slane %v2198, 7
  %v2206 = vsel %vm951, %v2205, %v2197
  %v2207 = vrot.slane %v2199, 6
  %v2208 = vsel %vm954, %v2207, %v2206
  %v2209 = vrot.slane %v2200, 5
  %v2210 = vsel %vm957, %v2209, %v2208
  %v2211 = vrot.slane %v2201, 4
  %v2212 = vsel %vm960, %v2211, %v2210
  %v2213 = vrot.slane %v2202, 3
  %v2214 = vsel %vm963, %v2213, %v2212
  %v2215 = vrot.slane %v2203, 2
  %v2216 = vsel %vm966, %v2215, %v2214
  %v2217 = vrot.slane %v2204, 1
  %v2218 = vsel %vm969, %v2217, %v2216
  %v2219 = vpack.c.b16 %v2218, %v2218
  %2221 = vmatprep.subr.bf16.mxu0 %v524
  %2222 = vmatpush1.bf16.msra.mxu0 %v523
  %2223 = vmatprep.subr.bf16.mxu0 %v521
  %2224 = vmatpush1.bf16.msra.mxu0 %v520
  %2225 = vmatprep.subr.bf16.mxu0 %v518
  %2226 = vmatpush1.bf16.msra.mxu0 %v517
  %2227 = vmatprep.subr.bf16.mxu0 %v515
  %2228 = vmatpush1.bf16.msra.mxu0 %v514
  %2229 = vmatprep.subr.bf16.mxu0 %v512
  %2230 = vmatpush1.bf16.msra.mxu0 %v511
  %2231 = vmatprep.subr.bf16.mxu0 %v509
  %2232 = vmatpush1.bf16.msra.mxu0 %v508
  %2233 = vmatprep.subr.bf16.mxu0 %v506
  %2234 = vmatpush1.bf16.msra.mxu0 %v505
  %2235 = vmatprep.subr.bf16.mxu0 %v503
  %2236 = vmatpush1.bf16.msra.mxu0 %v502
  %2237 = vmatprep.subr.bf16.mxu0 0
  %2238 = vmatpush2.bf16.msra.mxu0 0
  %2239 = vmatprep.subr.bf16.mxu0 0
  %2240 = vmatpush2.bf16.msra.mxu0 0
  %2241 = vmatprep.subr.bf16.mxu0 0
  %2242 = vmatpush2.bf16.msra.mxu0 0
  %2243 = vmatprep.subr.bf16.mxu0 0
  %2244 = vmatpush2.bf16.msra.mxu0 0
  %2245 = vmatprep.subr.bf16.mxu0 0
  %2246 = vmatpush2.bf16.msra.mxu0 0
  %2247 = vmatprep.subr.bf16.mxu0 0
  %2248 = vmatpush2.bf16.msra.mxu0 0
  %2249 = vmatprep.subr.bf16.mxu0 0
  %2250 = vmatpush2.bf16.msra.mxu0 0
  %2251 = vmatprep.subr.bf16.mxu0 0
  %2252 = vmatpush2.bf16.msra.mxu0 0
  %2253 = vmatprep.mubr.bf16.mxu0 0
  %2254 = vmatmul.mubr.bf16.gmra.mxu0 %v2219
  %v2255 = vpop.f32.mrf.mxu0
  %v2256 = vadd.f32 0.0, %v2255
  %v2257 = vpop.f32.mrf.mxu0
  %v2258 = vadd.f32 0.0, %v2257
  %v2259 = vpop.f32.mrf.mxu0
  %v2260 = vpop.f32.mrf.mxu0
  %2261 = vdwg.mxu0
  %2262 = vmatprep.subr.bf16.mxu0 0
  %2263 = vmatpush1.bf16.msra.mxu0 %v525
  %2264 = vmatprep.subr.bf16.mxu0 0
  %2265 = vmatpush1.bf16.msra.mxu0 %v522
  %2266 = vmatprep.subr.bf16.mxu0 0
  %2267 = vmatpush1.bf16.msra.mxu0 %v519
  %2268 = vmatprep.subr.bf16.mxu0 0
  %2269 = vmatpush1.bf16.msra.mxu0 %v516
  %2270 = vmatprep.subr.bf16.mxu0 0
  %2271 = vmatpush1.bf16.msra.mxu0 %v513
  %2272 = vmatprep.subr.bf16.mxu0 0
  %2273 = vmatpush1.bf16.msra.mxu0 %v510
  %2274 = vmatprep.subr.bf16.mxu0 0
  %2275 = vmatpush1.bf16.msra.mxu0 %v507
  %2276 = vmatprep.subr.bf16.mxu0 0
  %2277 = vmatpush1.bf16.msra.mxu0 %v504
  %2278 = vmatprep.subr.bf16.mxu0 0
  %2279 = vmatpush2.bf16.msra.mxu0 0
  %2280 = vmatprep.subr.bf16.mxu0 0
  %2281 = vmatpush2.bf16.msra.mxu0 0
  %2282 = vmatprep.subr.bf16.mxu0 0
  %2283 = vmatpush2.bf16.msra.mxu0 0
  %2284 = vmatprep.subr.bf16.mxu0 0
  %2285 = vmatpush2.bf16.msra.mxu0 0
  %2286 = vmatprep.subr.bf16.mxu0 0
  %2287 = vmatpush2.bf16.msra.mxu0 0
  %2288 = vmatprep.subr.bf16.mxu0 0
  %2289 = vmatpush2.bf16.msra.mxu0 0
  %2290 = vmatprep.subr.bf16.mxu0 0
  %2291 = vmatpush2.bf16.msra.mxu0 0
  %2292 = vmatprep.subr.bf16.mxu0 0
  %2293 = vmatpush2.bf16.msra.mxu0 0
  %2294 = vmatprep.mubr.bf16.mxu0 0
  %2295 = vmatmul.mubr.bf16.gmra.mxu0 %v2219
  %v2296 = vpop.f32.mrf.mxu0
  %v2297 = vadd.f32 0.0, %v2296
  %v2298 = vpop.f32.mrf.mxu0
  %v2299 = vpop.f32.mrf.mxu0
  %v2300 = vpop.f32.mrf.mxu0
  %2301 = vdwg.mxu0
  %v2304 = vcombine.low %v2256, %v2258
  %v2305 = vcombine.high %v2256, %v2258
  %v2307 = vunpack.c.l.s4 1966171168
  %v2308 = vunpack.c.0.s8 %v2307
  %v2309 = vlaneseq
  %v2310 = vshrl.u32 %v2309, 7
  %v2311 = vsub.s32 %v2308, %v2310
  %v2312 = vrot.slane %v2304, %v2311
  %v2314 = vunpack.c.l.s4 1966171168
  %v2315 = vunpack.c.0.s8 %v2314
  %v2316 = vlaneseq
  %v2317 = vshrl.u32 %v2316, 7
  %v2318 = vsub.s32 %v2315, %v2317
  %v2319 = vrot.slane %v2305, %v2318
  %v2320 = vcombine.high %v2312, %v2312
  %v2321 = vcombine.high %v2319, %v2319
  %v2323 = vunpack.c.l.s4 1966171168
  %v2324 = vunpack.c.0.s8 %v2323
  %v2325 = vlaneseq
  %v2326 = vshrl.u32 %v2325, 7
  %v2327 = vsub.s32 %v2324, %v2326
  %v2328 = vrot.slane %v2312, %v2327
  %v2330 = vunpack.c.l.s4 1966171168
  %v2331 = vunpack.c.0.s8 %v2330
  %v2332 = vlaneseq
  %v2333 = vshrl.u32 %v2332, 7
  %v2334 = vsub.s32 %v2331, %v2333
  %v2335 = vrot.slane %v2319, %v2334
  %v2337 = vunpack.c.l.s4 1966171168
  %v2338 = vunpack.c.0.s8 %v2337
  %v2339 = vlaneseq
  %v2340 = vshrl.u32 %v2339, 7
  %v2341 = vsub.s32 %v2338, %v2340
  %v2342 = vrot.slane %v2320, %v2341
  %v2344 = vunpack.c.l.s4 1966171168
  %v2345 = vunpack.c.0.s8 %v2344
  %v2346 = vlaneseq
  %v2347 = vshrl.u32 %v2346, 7
  %v2348 = vsub.s32 %v2345, %v2347
  %v2349 = vrot.slane %v2321, %v2348
  %v2350 = vcombine.high %v2328, %v2328
  %v2351 = vcombine.high %v2335, %v2335
  %v2352 = vcombine.high %v2342, %v2342
  %v2353 = vcombine.high %v2349, %v2349
  %v2362 = vadd.f32 %v2166, %v2328
  %v2363 = vadd.f32 %v2168, %v2342
  %v2364 = vadd.f32 %v2170, %v2350
  %v2365 = vadd.f32 %v2172, %v2352
  %v2366 = vadd.f32 %v2174, %v2335
  %v2367 = vadd.f32 %v2176, %v2349
  %v2368 = vadd.f32 %v2178, %v2351
  %v2369 = vadd.f32 %v2180, %v2353
  %v2370 = vxor.u32 %v2362, 2147483648
  %v2371 = vxor.u32 %v2363, 2147483648
  %v2372 = vxor.u32 %v2364, 2147483648
  %v2373 = vxor.u32 %v2365, 2147483648
  %v2374 = vxor.u32 %v2366, 2147483648
  %v2375 = vxor.u32 %v2367, 2147483648
  %v2376 = vxor.u32 %v2368, 2147483648
  %v2377 = vxor.u32 %v2369, 2147483648
  %v2378 = vmul.f32 %v2370, 1.442695
  %v2379 = vpow.pop %v2378
  %v2380 = vmul.f32 %v2371, 1.442695
  %v2381 = vpow.pop %v2380
  %v2382 = vmul.f32 %v2372, 1.442695
  %v2383 = vpow.pop %v2382
  %v2384 = vmul.f32 %v2373, 1.442695
  %v2385 = vpow.pop %v2384
  %v2386 = vmul.f32 %v2374, 1.442695
  %v2387 = vpow.pop %v2386
  %v2388 = vmul.f32 %v2375, 1.442695
  %v2389 = vpow.pop %v2388
  %v2390 = vmul.f32 %v2376, 1.442695
  %v2391 = vpow.pop %v2390
  %v2392 = vmul.f32 %v2377, 1.442695
  %v2393 = vpow.pop %v2392
  %v2394 = vadd.f32 %v2379, 1.0
  %v2395 = vadd.f32 %v2381, 1.0
  %v2396 = vadd.f32 %v2383, 1.0
  %v2397 = vadd.f32 %v2385, 1.0
  %v2398 = vadd.f32 %v2387, 1.0
  %v2399 = vadd.f32 %v2389, 1.0
  %v2400 = vadd.f32 %v2391, 1.0
  %v2401 = vadd.f32 %v2393, 1.0
  %v2402 = vrcp.pop %v2394
  %v2403 = vmul.f32 1.0, %v2402
  %v2404 = vrcp.pop %v2395
  %v2405 = vmul.f32 1.0, %v2404
  %v2406 = vrcp.pop %v2396
  %v2407 = vmul.f32 1.0, %v2406
  %v2408 = vrcp.pop %v2397
  %v2409 = vmul.f32 1.0, %v2408
  %v2410 = vrcp.pop %v2398
  %v2411 = vmul.f32 1.0, %v2410
  %v2412 = vrcp.pop %v2399
  %v2413 = vmul.f32 1.0, %v2412
  %v2414 = vrcp.pop %v2400
  %v2415 = vmul.f32 1.0, %v2414
  %v2416 = vrcp.pop %v2401
  %v2417 = vmul.f32 1.0, %v2416
  %v2418 = vadd.f32 %v2297, %v398
  %v2420 = vcombine.high %v2418, %v2418
  %v2422 = vunpack.c.l.s4 1966171168
  %v2423 = vunpack.c.0.s8 %v2422
  %v2424 = vlaneseq
  %v2425 = vshrl.u32 %v2424, 7
  %v2426 = vsub.s32 %v2423, %v2425
  %v2427 = vrot.slane %v2418, %v2426
  %v2429 = vunpack.c.l.s4 1966171168
  %v2430 = vunpack.c.0.s8 %v2429
  %v2431 = vlaneseq
  %v2432 = vshrl.u32 %v2431, 7
  %v2433 = vsub.s32 %v2430, %v2432
  %v2434 = vrot.slane %v2420, %v2433
  %v2435 = vcombine.high %v2427, %v2427
  %v2436 = vcombine.high %v2434, %v2434
  %v2438 = vunpack.c.l.s4 1966171168
  %v2439 = vunpack.c.0.s8 %v2438
  %v2440 = vlaneseq
  %v2441 = vshrl.u32 %v2440, 7
  %v2442 = vsub.s32 %v2439, %v2441
  %v2443 = vrot.slane %v2427, %v2442
  %v2445 = vunpack.c.l.s4 1966171168
  %v2446 = vunpack.c.0.s8 %v2445
  %v2447 = vlaneseq
  %v2448 = vshrl.u32 %v2447, 7
  %v2449 = vsub.s32 %v2446, %v2448
  %v2450 = vrot.slane %v2434, %v2449
  %v2452 = vunpack.c.l.s4 1966171168
  %v2453 = vunpack.c.0.s8 %v2452
  %v2454 = vlaneseq
  %v2455 = vshrl.u32 %v2454, 7
  %v2456 = vsub.s32 %v2453, %v2455
  %v2457 = vrot.slane %v2435, %v2456
  %v2459 = vunpack.c.l.s4 1966171168
  %v2460 = vunpack.c.0.s8 %v2459
  %v2461 = vlaneseq
  %v2462 = vshrl.u32 %v2461, 7
  %v2463 = vsub.s32 %v2460, %v2462
  %v2464 = vrot.slane %v2436, %v2463
  %v2465 = vcombine.high %v2443, %v2443
  %v2466 = vcombine.high %v2450, %v2450
  %v2467 = vcombine.high %v2457, %v2457
  %v2468 = vcombine.high %v2464, %v2464
  %v2477 = vmul.f32 %v2403, %v2443
  %v2478 = vmul.f32 %v2405, %v2457
  %v2479 = vmul.f32 %v2407, %v2465
  %v2480 = vmul.f32 %v2409, %v2467
  %v2481 = vmul.f32 %v2411, %v2450
  %v2482 = vmul.f32 %v2413, %v2464
  %v2483 = vmul.f32 %v2415, %v2466
  %v2484 = vmul.f32 %v2417, %v2468
  %v2493 = vrot.slane %v2166, 2
  %v2494 = vrot.slane %v2168, 2
  %v2495 = vrot.slane %v2170, 2
  %v2496 = vrot.slane %v2172, 2
  %v2497 = vrot.slane %v2174, 2
  %v2498 = vrot.slane %v2176, 2
  %v2499 = vrot.slane %v2178, 2
  %v2500 = vrot.slane %v2180, 2
  %v2509 = vadd.f32 %v2493, %v2477
  %v2510 = vadd.f32 %v2494, %v2478
  %v2511 = vadd.f32 %v2495, %v2479
  %v2512 = vadd.f32 %v2496, %v2480
  %v2513 = vadd.f32 %v2497, %v2481
  %v2514 = vadd.f32 %v2498, %v2482
  %v2515 = vadd.f32 %v2499, %v2483
  %v2516 = vadd.f32 %v2500, %v2484
  %v2517 = vtanh.pop %v2509
  %v2518 = vtanh.pop %v2510
  %v2519 = vtanh.pop %v2511
  %v2520 = vtanh.pop %v2512
  %v2521 = vtanh.pop %v2513
  %v2522 = vtanh.pop %v2514
  %v2523 = vtanh.pop %v2515
  %v2524 = vtanh.pop %v2516
  %v2533 = vrot.slane %v2403, 1
  %v2534 = vrot.slane %v2405, 1
  %v2535 = vrot.slane %v2407, 1
  %v2536 = vrot.slane %v2409, 1
  %v2537 = vrot.slane %v2411, 1
  %v2538 = vrot.slane %v2413, 1
  %v2539 = vrot.slane %v2415, 1
  %v2540 = vrot.slane %v2417, 1
  %v2549 = vsub.f32 1.0, %v2533
  %v2550 = vsub.f32 1.0, %v2534
  %v2551 = vsub.f32 1.0, %v2535
  %v2552 = vsub.f32 1.0, %v2536
  %v2553 = vsub.f32 1.0, %v2537
  %v2554 = vsub.f32 1.0, %v2538
  %v2555 = vsub.f32 1.0, %v2539
  %v2556 = vsub.f32 1.0, %v2540
  %v2557 = vmul.f32 %v2549, %v2517
  %v2558 = vmul.f32 %v2550, %v2518
  %v2559 = vmul.f32 %v2551, %v2519
  %v2560 = vmul.f32 %v2552, %v2520
  %v2561 = vmul.f32 %v2553, %v2521
  %v2562 = vmul.f32 %v2554, %v2522
  %v2563 = vmul.f32 %v2555, %v2523
  %v2564 = vmul.f32 %v2556, %v2524
  %v2565 = vmul.f32 %v2533, %v2157
  %v2566 = vmul.f32 %v2534, %v2158
  %v2567 = vmul.f32 %v2535, %v2159
  %v2568 = vmul.f32 %v2536, %v2160
  %v2569 = vmul.f32 %v2537, %v2161
  %v2570 = vmul.f32 %v2538, %v2162
  %v2571 = vmul.f32 %v2539, %v2163
  %v2572 = vmul.f32 %v2540, %v2164
  %v2573 = vadd.f32 %v2557, %v2565
  %v2574 = vadd.f32 %v2558, %v2566
  %v2575 = vadd.f32 %v2559, %v2567
  %v2576 = vadd.f32 %v2560, %v2568
  %v2577 = vadd.f32 %v2561, %v2569
  %v2578 = vadd.f32 %v2562, %v2570
  %v2579 = vadd.f32 %v2563, %v2571
  %v2580 = vadd.f32 %v2564, %v2572
  %s2581 = scalar_lea.vmem [#allocation2], 5
  %v2582 = vld [vmem:[%s2581] ss:$8 sm:$0x7]
  %s2583 = scalar_lea.vmem [#allocation2], 29
  %v2584 = vld [vmem:[%s2583] ss:$8 sm:$0x7]
  %s2585 = scalar_lea.vmem [#allocation2], 53
  %v2586 = vld [vmem:[%s2585] ss:$8 sm:$0x7]
  %s2587 = scalar_lea.vmem [#allocation2], 77
  %v2588 = vld [vmem:[%s2587] ss:$8 sm:$0x7]
  %s2589 = scalar_lea.vmem [#allocation2], 101
  %v2590 = vld [vmem:[%s2589] ss:$8 sm:$0x7]
  %s2591 = scalar_lea.vmem [#allocation2], 125
  %v2592 = vld [vmem:[%s2591] ss:$8 sm:$0x7]
  %s2593 = scalar_lea.vmem [#allocation2], 149
  %v2594 = vld [vmem:[%s2593] ss:$8 sm:$0x7]
  %s2595 = scalar_lea.vmem [#allocation2], 173
  %v2596 = vld [vmem:[%s2595] ss:$8 sm:$0x7]
  %v2597 = vpack.c.bf16 %v2573, %v2573
  %v2598 = vpack.c.bf16 %v2574, %v2574
  %v2599 = vpack.c.bf16 %v2575, %v2575
  %v2600 = vpack.c.bf16 %v2576, %v2576
  %v2601 = vpack.c.bf16 %v2577, %v2577
  %v2602 = vpack.c.bf16 %v2578, %v2578
  %v2603 = vpack.c.bf16 %v2579, %v2579
  %v2604 = vpack.c.bf16 %v2580, %v2580
  %v2613 = vunpack.c.l.b16 %v2597
  %v2614 = vunpack.c.l.b16 %v2598
  %v2615 = vunpack.c.l.b16 %v2599
  %v2616 = vunpack.c.l.b16 %v2600
  %v2617 = vunpack.c.l.b16 %v2601
  %v2618 = vunpack.c.l.b16 %v2602
  %v2619 = vunpack.c.l.b16 %v2603
  %v2620 = vunpack.c.l.b16 %v2604
  %v2621 = vrot.slane %v2614, 7
  %v2622 = vsel %vm951, %v2621, %v2613
  %v2623 = vrot.slane %v2615, 6
  %v2624 = vsel %vm954, %v2623, %v2622
  %v2625 = vrot.slane %v2616, 5
  %v2626 = vsel %vm957, %v2625, %v2624
  %v2627 = vrot.slane %v2617, 4
  %v2628 = vsel %vm960, %v2627, %v2626
  %v2629 = vrot.slane %v2618, 3
  %v2630 = vsel %vm963, %v2629, %v2628
  %v2631 = vrot.slane %v2619, 2
  %v2632 = vsel %vm966, %v2631, %v2630
  %v2633 = vrot.slane %v2620, 1
  %v2634 = vsel %vm969, %v2633, %v2632
  %v2635 = vpack.c.b16 %v2634, %v2634
  %2637 = vmatprep.subr.bf16.mxu0 %v524
  %2638 = vmatpush1.bf16.msra.mxu0 %v523
  %2639 = vmatprep.subr.bf16.mxu0 %v521
  %2640 = vmatpush1.bf16.msra.mxu0 %v520
  %2641 = vmatprep.subr.bf16.mxu0 %v518
  %2642 = vmatpush1.bf16.msra.mxu0 %v517
  %2643 = vmatprep.subr.bf16.mxu0 %v515
  %2644 = vmatpush1.bf16.msra.mxu0 %v514
  %2645 = vmatprep.subr.bf16.mxu0 %v512
  %2646 = vmatpush1.bf16.msra.mxu0 %v511
  %2647 = vmatprep.subr.bf16.mxu0 %v509
  %2648 = vmatpush1.bf16.msra.mxu0 %v508
  %2649 = vmatprep.subr.bf16.mxu0 %v506
  %2650 = vmatpush1.bf16.msra.mxu0 %v505
  %2651 = vmatprep.subr.bf16.mxu0 %v503
  %2652 = vmatpush1.bf16.msra.mxu0 %v502
  %2653 = vmatprep.subr.bf16.mxu0 0
  %2654 = vmatpush2.bf16.msra.mxu0 0
  %2655 = vmatprep.subr.bf16.mxu0 0
  %2656 = vmatpush2.bf16.msra.mxu0 0
  %2657 = vmatprep.subr.bf16.mxu0 0
  %2658 = vmatpush2.bf16.msra.mxu0 0
  %2659 = vmatprep.subr.bf16.mxu0 0
  %2660 = vmatpush2.bf16.msra.mxu0 0
  %2661 = vmatprep.subr.bf16.mxu0 0
  %2662 = vmatpush2.bf16.msra.mxu0 0
  %2663 = vmatprep.subr.bf16.mxu0 0
  %2664 = vmatpush2.bf16.msra.mxu0 0
  %2665 = vmatprep.subr.bf16.mxu0 0
  %2666 = vmatpush2.bf16.msra.mxu0 0
  %2667 = vmatprep.subr.bf16.mxu0 0
  %2668 = vmatpush2.bf16.msra.mxu0 0
  %2669 = vmatprep.mubr.bf16.mxu0 0
  %2670 = vmatmul.mubr.bf16.gmra.mxu0 %v2635
  %v2671 = vpop.f32.mrf.mxu0
  %v2672 = vadd.f32 0.0, %v2671
  %v2673 = vpop.f32.mrf.mxu0
  %v2674 = vadd.f32 0.0, %v2673
  %v2675 = vpop.f32.mrf.mxu0
  %v2676 = vpop.f32.mrf.mxu0
  %2677 = vdwg.mxu0
  %2678 = vmatprep.subr.bf16.mxu0 0
  %2679 = vmatpush1.bf16.msra.mxu0 %v525
  %2680 = vmatprep.subr.bf16.mxu0 0
  %2681 = vmatpush1.bf16.msra.mxu0 %v522
  %2682 = vmatprep.subr.bf16.mxu0 0
  %2683 = vmatpush1.bf16.msra.mxu0 %v519
  %2684 = vmatprep.subr.bf16.mxu0 0
  %2685 = vmatpush1.bf16.msra.mxu0 %v516
  %2686 = vmatprep.subr.bf16.mxu0 0
  %2687 = vmatpush1.bf16.msra.mxu0 %v513
  %2688 = vmatprep.subr.bf16.mxu0 0
  %2689 = vmatpush1.bf16.msra.mxu0 %v510
  %2690 = vmatprep.subr.bf16.mxu0 0
  %2691 = vmatpush1.bf16.msra.mxu0 %v507
  %2692 = vmatprep.subr.bf16.mxu0 0
  %2693 = vmatpush1.bf16.msra.mxu0 %v504
  %2694 = vmatprep.subr.bf16.mxu0 0
  %2695 = vmatpush2.bf16.msra.mxu0 0
  %2696 = vmatprep.subr.bf16.mxu0 0
  %2697 = vmatpush2.bf16.msra.mxu0 0
  %2698 = vmatprep.subr.bf16.mxu0 0
  %2699 = vmatpush2.bf16.msra.mxu0 0
  %2700 = vmatprep.subr.bf16.mxu0 0
  %2701 = vmatpush2.bf16.msra.mxu0 0
  %2702 = vmatprep.subr.bf16.mxu0 0
  %2703 = vmatpush2.bf16.msra.mxu0 0
  %2704 = vmatprep.subr.bf16.mxu0 0
  %2705 = vmatpush2.bf16.msra.mxu0 0
  %2706 = vmatprep.subr.bf16.mxu0 0
  %2707 = vmatpush2.bf16.msra.mxu0 0
  %2708 = vmatprep.subr.bf16.mxu0 0
  %2709 = vmatpush2.bf16.msra.mxu0 0
  %2710 = vmatprep.mubr.bf16.mxu0 0
  %2711 = vmatmul.mubr.bf16.gmra.mxu0 %v2635
  %v2712 = vpop.f32.mrf.mxu0
  %v2713 = vadd.f32 0.0, %v2712
  %v2714 = vpop.f32.mrf.mxu0
  %v2715 = vpop.f32.mrf.mxu0
  %v2716 = vpop.f32.mrf.mxu0
  %2717 = vdwg.mxu0
  %v2720 = vcombine.low %v2672, %v2674
  %v2721 = vcombine.high %v2672, %v2674
  %v2723 = vunpack.c.l.s4 1966171168
  %v2724 = vunpack.c.0.s8 %v2723
  %v2725 = vlaneseq
  %v2726 = vshrl.u32 %v2725, 7
  %v2727 = vsub.s32 %v2724, %v2726
  %v2728 = vrot.slane %v2720, %v2727
  %v2730 = vunpack.c.l.s4 1966171168
  %v2731 = vunpack.c.0.s8 %v2730
  %v2732 = vlaneseq
  %v2733 = vshrl.u32 %v2732, 7
  %v2734 = vsub.s32 %v2731, %v2733
  %v2735 = vrot.slane %v2721, %v2734
  %v2736 = vcombine.high %v2728, %v2728
  %v2737 = vcombine.high %v2735, %v2735
  %v2739 = vunpack.c.l.s4 1966171168
  %v2740 = vunpack.c.0.s8 %v2739
  %v2741 = vlaneseq
  %v2742 = vshrl.u32 %v2741, 7
  %v2743 = vsub.s32 %v2740, %v2742
  %v2744 = vrot.slane %v2728, %v2743
  %v2746 = vunpack.c.l.s4 1966171168
  %v2747 = vunpack.c.0.s8 %v2746
  %v2748 = vlaneseq
  %v2749 = vshrl.u32 %v2748, 7
  %v2750 = vsub.s32 %v2747, %v2749
  %v2751 = vrot.slane %v2735, %v2750
  %v2753 = vunpack.c.l.s4 1966171168
  %v2754 = vunpack.c.0.s8 %v2753
  %v2755 = vlaneseq
  %v2756 = vshrl.u32 %v2755, 7
  %v2757 = vsub.s32 %v2754, %v2756
  %v2758 = vrot.slane %v2736, %v2757
  %v2760 = vunpack.c.l.s4 1966171168
  %v2761 = vunpack.c.0.s8 %v2760
  %v2762 = vlaneseq
  %v2763 = vshrl.u32 %v2762, 7
  %v2764 = vsub.s32 %v2761, %v2763
  %v2765 = vrot.slane %v2737, %v2764
  %v2766 = vcombine.high %v2744, %v2744
  %v2767 = vcombine.high %v2751, %v2751
  %v2768 = vcombine.high %v2758, %v2758
  %v2769 = vcombine.high %v2765, %v2765
  %v2778 = vadd.f32 %v2582, %v2744
  %v2779 = vadd.f32 %v2584, %v2758
  %v2780 = vadd.f32 %v2586, %v2766
  %v2781 = vadd.f32 %v2588, %v2768
  %v2782 = vadd.f32 %v2590, %v2751
  %v2783 = vadd.f32 %v2592, %v2765
  %v2784 = vadd.f32 %v2594, %v2767
  %v2785 = vadd.f32 %v2596, %v2769
  %v2786 = vxor.u32 %v2778, 2147483648
  %v2787 = vxor.u32 %v2779, 2147483648
  %v2788 = vxor.u32 %v2780, 2147483648
  %v2789 = vxor.u32 %v2781, 2147483648
  %v2790 = vxor.u32 %v2782, 2147483648
  %v2791 = vxor.u32 %v2783, 2147483648
  %v2792 = vxor.u32 %v2784, 2147483648
  %v2793 = vxor.u32 %v2785, 2147483648
  %v2794 = vmul.f32 %v2786, 1.442695
  %v2795 = vpow.pop %v2794
  %v2796 = vmul.f32 %v2787, 1.442695
  %v2797 = vpow.pop %v2796
  %v2798 = vmul.f32 %v2788, 1.442695
  %v2799 = vpow.pop %v2798
  %v2800 = vmul.f32 %v2789, 1.442695
  %v2801 = vpow.pop %v2800
  %v2802 = vmul.f32 %v2790, 1.442695
  %v2803 = vpow.pop %v2802
  %v2804 = vmul.f32 %v2791, 1.442695
  %v2805 = vpow.pop %v2804
  %v2806 = vmul.f32 %v2792, 1.442695
  %v2807 = vpow.pop %v2806
  %v2808 = vmul.f32 %v2793, 1.442695
  %v2809 = vpow.pop %v2808
  %v2810 = vadd.f32 %v2795, 1.0
  %v2811 = vadd.f32 %v2797, 1.0
  %v2812 = vadd.f32 %v2799, 1.0
  %v2813 = vadd.f32 %v2801, 1.0
  %v2814 = vadd.f32 %v2803, 1.0
  %v2815 = vadd.f32 %v2805, 1.0
  %v2816 = vadd.f32 %v2807, 1.0
  %v2817 = vadd.f32 %v2809, 1.0
  %v2818 = vrcp.pop %v2810
  %v2819 = vmul.f32 1.0, %v2818
  %v2820 = vrcp.pop %v2811
  %v2821 = vmul.f32 1.0, %v2820
  %v2822 = vrcp.pop %v2812
  %v2823 = vmul.f32 1.0, %v2822
  %v2824 = vrcp.pop %v2813
  %v2825 = vmul.f32 1.0, %v2824
  %v2826 = vrcp.pop %v2814
  %v2827 = vmul.f32 1.0, %v2826
  %v2828 = vrcp.pop %v2815
  %v2829 = vmul.f32 1.0, %v2828
  %v2830 = vrcp.pop %v2816
  %v2831 = vmul.f32 1.0, %v2830
  %v2832 = vrcp.pop %v2817
  %v2833 = vmul.f32 1.0, %v2832
  %v2834 = vadd.f32 %v2713, %v398
  %v2836 = vcombine.high %v2834, %v2834
  %v2838 = vunpack.c.l.s4 1966171168
  %v2839 = vunpack.c.0.s8 %v2838
  %v2840 = vlaneseq
  %v2841 = vshrl.u32 %v2840, 7
  %v2842 = vsub.s32 %v2839, %v2841
  %v2843 = vrot.slane %v2834, %v2842
  %v2845 = vunpack.c.l.s4 1966171168
  %v2846 = vunpack.c.0.s8 %v2845
  %v2847 = vlaneseq
  %v2848 = vshrl.u32 %v2847, 7
  %v2849 = vsub.s32 %v2846, %v2848
  %v2850 = vrot.slane %v2836, %v2849
  %v2851 = vcombine.high %v2843, %v2843
  %v2852 = vcombine.high %v2850, %v2850
  %v2854 = vunpack.c.l.s4 1966171168
  %v2855 = vunpack.c.0.s8 %v2854
  %v2856 = vlaneseq
  %v2857 = vshrl.u32 %v2856, 7
  %v2858 = vsub.s32 %v2855, %v2857
  %v2859 = vrot.slane %v2843, %v2858
  %v2861 = vunpack.c.l.s4 1966171168
  %v2862 = vunpack.c.0.s8 %v2861
  %v2863 = vlaneseq
  %v2864 = vshrl.u32 %v2863, 7
  %v2865 = vsub.s32 %v2862, %v2864
  %v2866 = vrot.slane %v2850, %v2865
  %v2868 = vunpack.c.l.s4 1966171168
  %v2869 = vunpack.c.0.s8 %v2868
  %v2870 = vlaneseq
  %v2871 = vshrl.u32 %v2870, 7
  %v2872 = vsub.s32 %v2869, %v2871
  %v2873 = vrot.slane %v2851, %v2872
  %v2875 = vunpack.c.l.s4 1966171168
  %v2876 = vunpack.c.0.s8 %v2875
  %v2877 = vlaneseq
  %v2878 = vshrl.u32 %v2877, 7
  %v2879 = vsub.s32 %v2876, %v2878
  %v2880 = vrot.slane %v2852, %v2879
  %v2881 = vcombine.high %v2859, %v2859
  %v2882 = vcombine.high %v2866, %v2866
  %v2883 = vcombine.high %v2873, %v2873
  %v2884 = vcombine.high %v2880, %v2880
  %v2893 = vmul.f32 %v2819, %v2859
  %v2894 = vmul.f32 %v2821, %v2873
  %v2895 = vmul.f32 %v2823, %v2881
  %v2896 = vmul.f32 %v2825, %v2883
  %v2897 = vmul.f32 %v2827, %v2866
  %v2898 = vmul.f32 %v2829, %v2880
  %v2899 = vmul.f32 %v2831, %v2882
  %v2900 = vmul.f32 %v2833, %v2884
  %v2909 = vrot.slane %v2582, 2
  %v2910 = vrot.slane %v2584, 2
  %v2911 = vrot.slane %v2586, 2
  %v2912 = vrot.slane %v2588, 2
  %v2913 = vrot.slane %v2590, 2
  %v2914 = vrot.slane %v2592, 2
  %v2915 = vrot.slane %v2594, 2
  %v2916 = vrot.slane %v2596, 2
  %v2925 = vadd.f32 %v2909, %v2893
  %v2926 = vadd.f32 %v2910, %v2894
  %v2927 = vadd.f32 %v2911, %v2895
  %v2928 = vadd.f32 %v2912, %v2896
  %v2929 = vadd.f32 %v2913, %v2897
  %v2930 = vadd.f32 %v2914, %v2898
  %v2931 = vadd.f32 %v2915, %v2899
  %v2932 = vadd.f32 %v2916, %v2900
  %v2933 = vtanh.pop %v2925
  %v2934 = vtanh.pop %v2926
  %v2935 = vtanh.pop %v2927
  %v2936 = vtanh.pop %v2928
  %v2937 = vtanh.pop %v2929
  %v2938 = vtanh.pop %v2930
  %v2939 = vtanh.pop %v2931
  %v2940 = vtanh.pop %v2932
  %v2949 = vrot.slane %v2819, 1
  %v2950 = vrot.slane %v2821, 1
  %v2951 = vrot.slane %v2823, 1
  %v2952 = vrot.slane %v2825, 1
  %v2953 = vrot.slane %v2827, 1
  %v2954 = vrot.slane %v2829, 1
  %v2955 = vrot.slane %v2831, 1
  %v2956 = vrot.slane %v2833, 1
  %v2965 = vsub.f32 1.0, %v2949
  %v2966 = vsub.f32 1.0, %v2950
  %v2967 = vsub.f32 1.0, %v2951
  %v2968 = vsub.f32 1.0, %v2952
  %v2969 = vsub.f32 1.0, %v2953
  %v2970 = vsub.f32 1.0, %v2954
  %v2971 = vsub.f32 1.0, %v2955
  %v2972 = vsub.f32 1.0, %v2956
  %v2973 = vmul.f32 %v2965, %v2933
  %v2974 = vmul.f32 %v2966, %v2934
  %v2975 = vmul.f32 %v2967, %v2935
  %v2976 = vmul.f32 %v2968, %v2936
  %v2977 = vmul.f32 %v2969, %v2937
  %v2978 = vmul.f32 %v2970, %v2938
  %v2979 = vmul.f32 %v2971, %v2939
  %v2980 = vmul.f32 %v2972, %v2940
  %v2981 = vmul.f32 %v2949, %v2573
  %v2982 = vmul.f32 %v2950, %v2574
  %v2983 = vmul.f32 %v2951, %v2575
  %v2984 = vmul.f32 %v2952, %v2576
  %v2985 = vmul.f32 %v2953, %v2577
  %v2986 = vmul.f32 %v2954, %v2578
  %v2987 = vmul.f32 %v2955, %v2579
  %v2988 = vmul.f32 %v2956, %v2580
  %v2989 = vadd.f32 %v2973, %v2981
  %v2990 = vadd.f32 %v2974, %v2982
  %v2991 = vadd.f32 %v2975, %v2983
  %v2992 = vadd.f32 %v2976, %v2984
  %v2993 = vadd.f32 %v2977, %v2985
  %v2994 = vadd.f32 %v2978, %v2986
  %v2995 = vadd.f32 %v2979, %v2987
  %v2996 = vadd.f32 %v2980, %v2988
  %s2997 = scalar_lea.vmem [#allocation2], 6
  %v2998 = vld [vmem:[%s2997] ss:$8 sm:$0x7]
  %s2999 = scalar_lea.vmem [#allocation2], 30
  %v3000 = vld [vmem:[%s2999] ss:$8 sm:$0x7]
  %s3001 = scalar_lea.vmem [#allocation2], 54
  %v3002 = vld [vmem:[%s3001] ss:$8 sm:$0x7]
  %s3003 = scalar_lea.vmem [#allocation2], 78
  %v3004 = vld [vmem:[%s3003] ss:$8 sm:$0x7]
  %s3005 = scalar_lea.vmem [#allocation2], 102
  %v3006 = vld [vmem:[%s3005] ss:$8 sm:$0x7]
  %s3007 = scalar_lea.vmem [#allocation2], 126
  %v3008 = vld [vmem:[%s3007] ss:$8 sm:$0x7]
  %s3009 = scalar_lea.vmem [#allocation2], 150
  %v3010 = vld [vmem:[%s3009] ss:$8 sm:$0x7]
  %s3011 = scalar_lea.vmem [#allocation2], 174
  %v3012 = vld [vmem:[%s3011] ss:$8 sm:$0x7]
  %v3013 = vpack.c.bf16 %v2989, %v2989
  %v3014 = vpack.c.bf16 %v2990, %v2990
  %v3015 = vpack.c.bf16 %v2991, %v2991
  %v3016 = vpack.c.bf16 %v2992, %v2992
  %v3017 = vpack.c.bf16 %v2993, %v2993
  %v3018 = vpack.c.bf16 %v2994, %v2994
  %v3019 = vpack.c.bf16 %v2995, %v2995
  %v3020 = vpack.c.bf16 %v2996, %v2996
  %v3029 = vunpack.c.l.b16 %v3013
  %v3030 = vunpack.c.l.b16 %v3014
  %v3031 = vunpack.c.l.b16 %v3015
  %v3032 = vunpack.c.l.b16 %v3016
  %v3033 = vunpack.c.l.b16 %v3017
  %v3034 = vunpack.c.l.b16 %v3018
  %v3035 = vunpack.c.l.b16 %v3019
  %v3036 = vunpack.c.l.b16 %v3020
  %v3037 = vrot.slane %v3030, 7
  %v3038 = vsel %vm951, %v3037, %v3029
  %v3039 = vrot.slane %v3031, 6
  %v3040 = vsel %vm954, %v3039, %v3038
  %v3041 = vrot.slane %v3032, 5
  %v3042 = vsel %vm957, %v3041, %v3040
  %v3043 = vrot.slane %v3033, 4
  %v3044 = vsel %vm960, %v3043, %v3042
  %v3045 = vrot.slane %v3034, 3
  %v3046 = vsel %vm963, %v3045, %v3044
  %v3047 = vrot.slane %v3035, 2
  %v3048 = vsel %vm966, %v3047, %v3046
  %v3049 = vrot.slane %v3036, 1
  %v3050 = vsel %vm969, %v3049, %v3048
  %v3051 = vpack.c.b16 %v3050, %v3050
  %3053 = vmatprep.subr.bf16.mxu0 %v524
  %3054 = vmatpush1.bf16.msra.mxu0 %v523
  %3055 = vmatprep.subr.bf16.mxu0 %v521
  %3056 = vmatpush1.bf16.msra.mxu0 %v520
  %3057 = vmatprep.subr.bf16.mxu0 %v518
  %3058 = vmatpush1.bf16.msra.mxu0 %v517
  %3059 = vmatprep.subr.bf16.mxu0 %v515
  %3060 = vmatpush1.bf16.msra.mxu0 %v514
  %3061 = vmatprep.subr.bf16.mxu0 %v512
  %3062 = vmatpush1.bf16.msra.mxu0 %v511
  %3063 = vmatprep.subr.bf16.mxu0 %v509
  %3064 = vmatpush1.bf16.msra.mxu0 %v508
  %3065 = vmatprep.subr.bf16.mxu0 %v506
  %3066 = vmatpush1.bf16.msra.mxu0 %v505
  %3067 = vmatprep.subr.bf16.mxu0 %v503
  %3068 = vmatpush1.bf16.msra.mxu0 %v502
  %3069 = vmatprep.subr.bf16.mxu0 0
  %3070 = vmatpush2.bf16.msra.mxu0 0
  %3071 = vmatprep.subr.bf16.mxu0 0
  %3072 = vmatpush2.bf16.msra.mxu0 0
  %3073 = vmatprep.subr.bf16.mxu0 0
  %3074 = vmatpush2.bf16.msra.mxu0 0
  %3075 = vmatprep.subr.bf16.mxu0 0
  %3076 = vmatpush2.bf16.msra.mxu0 0
  %3077 = vmatprep.subr.bf16.mxu0 0
  %3078 = vmatpush2.bf16.msra.mxu0 0
  %3079 = vmatprep.subr.bf16.mxu0 0
  %3080 = vmatpush2.bf16.msra.mxu0 0
  %3081 = vmatprep.subr.bf16.mxu0 0
  %3082 = vmatpush2.bf16.msra.mxu0 0
  %3083 = vmatprep.subr.bf16.mxu0 0
  %3084 = vmatpush2.bf16.msra.mxu0 0
  %3085 = vmatprep.mubr.bf16.mxu0 0
  %3086 = vmatmul.mubr.bf16.gmra.mxu0 %v3051
  %v3087 = vpop.f32.mrf.mxu0
  %v3088 = vadd.f32 0.0, %v3087
  %v3089 = vpop.f32.mrf.mxu0
  %v3090 = vadd.f32 0.0, %v3089
  %v3091 = vpop.f32.mrf.mxu0
  %v3092 = vpop.f32.mrf.mxu0
  %3093 = vdwg.mxu0
  %3094 = vmatprep.subr.bf16.mxu0 0
  %3095 = vmatpush1.bf16.msra.mxu0 %v525
  %3096 = vmatprep.subr.bf16.mxu0 0
  %3097 = vmatpush1.bf16.msra.mxu0 %v522
  %3098 = vmatprep.subr.bf16.mxu0 0
  %3099 = vmatpush1.bf16.msra.mxu0 %v519
  %3100 = vmatprep.subr.bf16.mxu0 0
  %3101 = vmatpush1.bf16.msra.mxu0 %v516
  %3102 = vmatprep.subr.bf16.mxu0 0
  %3103 = vmatpush1.bf16.msra.mxu0 %v513
  %3104 = vmatprep.subr.bf16.mxu0 0
  %3105 = vmatpush1.bf16.msra.mxu0 %v510
  %3106 = vmatprep.subr.bf16.mxu0 0
  %3107 = vmatpush1.bf16.msra.mxu0 %v507
  %3108 = vmatprep.subr.bf16.mxu0 0
  %3109 = vmatpush1.bf16.msra.mxu0 %v504
  %3110 = vmatprep.subr.bf16.mxu0 0
  %3111 = vmatpush2.bf16.msra.mxu0 0
  %3112 = vmatprep.subr.bf16.mxu0 0
  %3113 = vmatpush2.bf16.msra.mxu0 0
  %3114 = vmatprep.subr.bf16.mxu0 0
  %3115 = vmatpush2.bf16.msra.mxu0 0
  %3116 = vmatprep.subr.bf16.mxu0 0
  %3117 = vmatpush2.bf16.msra.mxu0 0
  %3118 = vmatprep.subr.bf16.mxu0 0
  %3119 = vmatpush2.bf16.msra.mxu0 0
  %3120 = vmatprep.subr.bf16.mxu0 0
  %3121 = vmatpush2.bf16.msra.mxu0 0
  %3122 = vmatprep.subr.bf16.mxu0 0
  %3123 = vmatpush2.bf16.msra.mxu0 0
  %3124 = vmatprep.subr.bf16.mxu0 0
  %3125 = vmatpush2.bf16.msra.mxu0 0
  %3126 = vmatprep.mubr.bf16.mxu0 0
  %3127 = vmatmul.mubr.bf16.gmra.mxu0 %v3051
  %v3128 = vpop.f32.mrf.mxu0
  %v3129 = vadd.f32 0.0, %v3128
  %v3130 = vpop.f32.mrf.mxu0
  %v3131 = vpop.f32.mrf.mxu0
  %v3132 = vpop.f32.mrf.mxu0
  %3133 = vdwg.mxu0
  %v3136 = vcombine.low %v3088, %v3090
  %v3137 = vcombine.high %v3088, %v3090
  %v3139 = vunpack.c.l.s4 1966171168
  %v3140 = vunpack.c.0.s8 %v3139
  %v3141 = vlaneseq
  %v3142 = vshrl.u32 %v3141, 7
  %v3143 = vsub.s32 %v3140, %v3142
  %v3144 = vrot.slane %v3136, %v3143
  %v3146 = vunpack.c.l.s4 1966171168
  %v3147 = vunpack.c.0.s8 %v3146
  %v3148 = vlaneseq
  %v3149 = vshrl.u32 %v3148, 7
  %v3150 = vsub.s32 %v3147, %v3149
  %v3151 = vrot.slane %v3137, %v3150
  %v3152 = vcombine.high %v3144, %v3144
  %v3153 = vcombine.high %v3151, %v3151
  %v3155 = vunpack.c.l.s4 1966171168
  %v3156 = vunpack.c.0.s8 %v3155
  %v3157 = vlaneseq
  %v3158 = vshrl.u32 %v3157, 7
  %v3159 = vsub.s32 %v3156, %v3158
  %v3160 = vrot.slane %v3144, %v3159
  %v3162 = vunpack.c.l.s4 1966171168
  %v3163 = vunpack.c.0.s8 %v3162
  %v3164 = vlaneseq
  %v3165 = vshrl.u32 %v3164, 7
  %v3166 = vsub.s32 %v3163, %v3165
  %v3167 = vrot.slane %v3151, %v3166
  %v3169 = vunpack.c.l.s4 1966171168
  %v3170 = vunpack.c.0.s8 %v3169
  %v3171 = vlaneseq
  %v3172 = vshrl.u32 %v3171, 7
  %v3173 = vsub.s32 %v3170, %v3172
  %v3174 = vrot.slane %v3152, %v3173
  %v3176 = vunpack.c.l.s4 1966171168
  %v3177 = vunpack.c.0.s8 %v3176
  %v3178 = vlaneseq
  %v3179 = vshrl.u32 %v3178, 7
  %v3180 = vsub.s32 %v3177, %v3179
  %v3181 = vrot.slane %v3153, %v3180
  %v3182 = vcombine.high %v3160, %v3160
  %v3183 = vcombine.high %v3167, %v3167
  %v3184 = vcombine.high %v3174, %v3174
  %v3185 = vcombine.high %v3181, %v3181
  %v3194 = vadd.f32 %v2998, %v3160
  %v3195 = vadd.f32 %v3000, %v3174
  %v3196 = vadd.f32 %v3002, %v3182
  %v3197 = vadd.f32 %v3004, %v3184
  %v3198 = vadd.f32 %v3006, %v3167
  %v3199 = vadd.f32 %v3008, %v3181
  %v3200 = vadd.f32 %v3010, %v3183
  %v3201 = vadd.f32 %v3012, %v3185
  %v3202 = vxor.u32 %v3194, 2147483648
  %v3203 = vxor.u32 %v3195, 2147483648
  %v3204 = vxor.u32 %v3196, 2147483648
  %v3205 = vxor.u32 %v3197, 2147483648
  %v3206 = vxor.u32 %v3198, 2147483648
  %v3207 = vxor.u32 %v3199, 2147483648
  %v3208 = vxor.u32 %v3200, 2147483648
  %v3209 = vxor.u32 %v3201, 2147483648
  %v3210 = vmul.f32 %v3202, 1.442695
  %v3211 = vpow.pop %v3210
  %v3212 = vmul.f32 %v3203, 1.442695
  %v3213 = vpow.pop %v3212
  %v3214 = vmul.f32 %v3204, 1.442695
  %v3215 = vpow.pop %v3214
  %v3216 = vmul.f32 %v3205, 1.442695
  %v3217 = vpow.pop %v3216
  %v3218 = vmul.f32 %v3206, 1.442695
  %v3219 = vpow.pop %v3218
  %v3220 = vmul.f32 %v3207, 1.442695
  %v3221 = vpow.pop %v3220
  %v3222 = vmul.f32 %v3208, 1.442695
  %v3223 = vpow.pop %v3222
  %v3224 = vmul.f32 %v3209, 1.442695
  %v3225 = vpow.pop %v3224
  %v3226 = vadd.f32 %v3211, 1.0
  %v3227 = vadd.f32 %v3213, 1.0
  %v3228 = vadd.f32 %v3215, 1.0
  %v3229 = vadd.f32 %v3217, 1.0
  %v3230 = vadd.f32 %v3219, 1.0
  %v3231 = vadd.f32 %v3221, 1.0
  %v3232 = vadd.f32 %v3223, 1.0
  %v3233 = vadd.f32 %v3225, 1.0
  %v3234 = vrcp.pop %v3226
  %v3235 = vmul.f32 1.0, %v3234
  %v3236 = vrcp.pop %v3227
  %v3237 = vmul.f32 1.0, %v3236
  %v3238 = vrcp.pop %v3228
  %v3239 = vmul.f32 1.0, %v3238
  %v3240 = vrcp.pop %v3229
  %v3241 = vmul.f32 1.0, %v3240
  %v3242 = vrcp.pop %v3230
  %v3243 = vmul.f32 1.0, %v3242
  %v3244 = vrcp.pop %v3231
  %v3245 = vmul.f32 1.0, %v3244
  %v3246 = vrcp.pop %v3232
  %v3247 = vmul.f32 1.0, %v3246
  %v3248 = vrcp.pop %v3233
  %v3249 = vmul.f32 1.0, %v3248
  %v3250 = vadd.f32 %v3129, %v398
  %v3252 = vcombine.high %v3250, %v3250
  %v3254 = vunpack.c.l.s4 1966171168
  %v3255 = vunpack.c.0.s8 %v3254
  %v3256 = vlaneseq
  %v3257 = vshrl.u32 %v3256, 7
  %v3258 = vsub.s32 %v3255, %v3257
  %v3259 = vrot.slane %v3250, %v3258
  %v3261 = vunpack.c.l.s4 1966171168
  %v3262 = vunpack.c.0.s8 %v3261
  %v3263 = vlaneseq
  %v3264 = vshrl.u32 %v3263, 7
  %v3265 = vsub.s32 %v3262, %v3264
  %v3266 = vrot.slane %v3252, %v3265
  %v3267 = vcombine.high %v3259, %v3259
  %v3268 = vcombine.high %v3266, %v3266
  %v3270 = vunpack.c.l.s4 1966171168
  %v3271 = vunpack.c.0.s8 %v3270
  %v3272 = vlaneseq
  %v3273 = vshrl.u32 %v3272, 7
  %v3274 = vsub.s32 %v3271, %v3273
  %v3275 = vrot.slane %v3259, %v3274
  %v3277 = vunpack.c.l.s4 1966171168
  %v3278 = vunpack.c.0.s8 %v3277
  %v3279 = vlaneseq
  %v3280 = vshrl.u32 %v3279, 7
  %v3281 = vsub.s32 %v3278, %v3280
  %v3282 = vrot.slane %v3266, %v3281
  %v3284 = vunpack.c.l.s4 1966171168
  %v3285 = vunpack.c.0.s8 %v3284
  %v3286 = vlaneseq
  %v3287 = vshrl.u32 %v3286, 7
  %v3288 = vsub.s32 %v3285, %v3287
  %v3289 = vrot.slane %v3267, %v3288
  %v3291 = vunpack.c.l.s4 1966171168
  %v3292 = vunpack.c.0.s8 %v3291
  %v3293 = vlaneseq
  %v3294 = vshrl.u32 %v3293, 7
  %v3295 = vsub.s32 %v3292, %v3294
  %v3296 = vrot.slane %v3268, %v3295
  %v3297 = vcombine.high %v3275, %v3275
  %v3298 = vcombine.high %v3282, %v3282
  %v3299 = vcombine.high %v3289, %v3289
  %v3300 = vcombine.high %v3296, %v3296
  %v3309 = vmul.f32 %v3235, %v3275
  %v3310 = vmul.f32 %v3237, %v3289
  %v3311 = vmul.f32 %v3239, %v3297
  %v3312 = vmul.f32 %v3241, %v3299
  %v3313 = vmul.f32 %v3243, %v3282
  %v3314 = vmul.f32 %v3245, %v3296
  %v3315 = vmul.f32 %v3247, %v3298
  %v3316 = vmul.f32 %v3249, %v3300
  %v3325 = vrot.slane %v2998, 2
  %v3326 = vrot.slane %v3000, 2
  %v3327 = vrot.slane %v3002, 2
  %v3328 = vrot.slane %v3004, 2
  %v3329 = vrot.slane %v3006, 2
  %v3330 = vrot.slane %v3008, 2
  %v3331 = vrot.slane %v3010, 2
  %v3332 = vrot.slane %v3012, 2
  %v3341 = vadd.f32 %v3325, %v3309
  %v3342 = vadd.f32 %v3326, %v3310
  %v3343 = vadd.f32 %v3327, %v3311
  %v3344 = vadd.f32 %v3328, %v3312
  %v3345 = vadd.f32 %v3329, %v3313
  %v3346 = vadd.f32 %v3330, %v3314
  %v3347 = vadd.f32 %v3331, %v3315
  %v3348 = vadd.f32 %v3332, %v3316
  %v3349 = vtanh.pop %v3341
  %v3350 = vtanh.pop %v3342
  %v3351 = vtanh.pop %v3343
  %v3352 = vtanh.pop %v3344
  %v3353 = vtanh.pop %v3345
  %v3354 = vtanh.pop %v3346
  %v3355 = vtanh.pop %v3347
  %v3356 = vtanh.pop %v3348
  %v3365 = vrot.slane %v3235, 1
  %v3366 = vrot.slane %v3237, 1
  %v3367 = vrot.slane %v3239, 1
  %v3368 = vrot.slane %v3241, 1
  %v3369 = vrot.slane %v3243, 1
  %v3370 = vrot.slane %v3245, 1
  %v3371 = vrot.slane %v3247, 1
  %v3372 = vrot.slane %v3249, 1
  %v3381 = vsub.f32 1.0, %v3365
  %v3382 = vsub.f32 1.0, %v3366
  %v3383 = vsub.f32 1.0, %v3367
  %v3384 = vsub.f32 1.0, %v3368
  %v3385 = vsub.f32 1.0, %v3369
  %v3386 = vsub.f32 1.0, %v3370
  %v3387 = vsub.f32 1.0, %v3371
  %v3388 = vsub.f32 1.0, %v3372
  %v3389 = vmul.f32 %v3381, %v3349
  %v3390 = vmul.f32 %v3382, %v3350
  %v3391 = vmul.f32 %v3383, %v3351
  %v3392 = vmul.f32 %v3384, %v3352
  %v3393 = vmul.f32 %v3385, %v3353
  %v3394 = vmul.f32 %v3386, %v3354
  %v3395 = vmul.f32 %v3387, %v3355
  %v3396 = vmul.f32 %v3388, %v3356
  %v3397 = vmul.f32 %v3365, %v2989
  %v3398 = vmul.f32 %v3366, %v2990
  %v3399 = vmul.f32 %v3367, %v2991
  %v3400 = vmul.f32 %v3368, %v2992
  %v3401 = vmul.f32 %v3369, %v2993
  %v3402 = vmul.f32 %v3370, %v2994
  %v3403 = vmul.f32 %v3371, %v2995
  %v3404 = vmul.f32 %v3372, %v2996
  %v3405 = vadd.f32 %v3389, %v3397
  %v3406 = vadd.f32 %v3390, %v3398
  %v3407 = vadd.f32 %v3391, %v3399
  %v3408 = vadd.f32 %v3392, %v3400
  %v3409 = vadd.f32 %v3393, %v3401
  %v3410 = vadd.f32 %v3394, %v3402
  %v3411 = vadd.f32 %v3395, %v3403
  %v3412 = vadd.f32 %v3396, %v3404
  %s3413 = scalar_lea.vmem [#allocation2], 7
  %v3414 = vld [vmem:[%s3413] ss:$8 sm:$0x7]
  %s3415 = scalar_lea.vmem [#allocation2], 31
  %v3416 = vld [vmem:[%s3415] ss:$8 sm:$0x7]
  %s3417 = scalar_lea.vmem [#allocation2], 55
  %v3418 = vld [vmem:[%s3417] ss:$8 sm:$0x7]
  %s3419 = scalar_lea.vmem [#allocation2], 79
  %v3420 = vld [vmem:[%s3419] ss:$8 sm:$0x7]
  %s3421 = scalar_lea.vmem [#allocation2], 103
  %v3422 = vld [vmem:[%s3421] ss:$8 sm:$0x7]
  %s3423 = scalar_lea.vmem [#allocation2], 127
  %v3424 = vld [vmem:[%s3423] ss:$8 sm:$0x7]
  %s3425 = scalar_lea.vmem [#allocation2], 151
  %v3426 = vld [vmem:[%s3425] ss:$8 sm:$0x7]
  %s3427 = scalar_lea.vmem [#allocation2], 175
  %v3428 = vld [vmem:[%s3427] ss:$8 sm:$0x7]
  %v3429 = vpack.c.bf16 %v3405, %v3405
  %v3430 = vpack.c.bf16 %v3406, %v3406
  %v3431 = vpack.c.bf16 %v3407, %v3407
  %v3432 = vpack.c.bf16 %v3408, %v3408
  %v3433 = vpack.c.bf16 %v3409, %v3409
  %v3434 = vpack.c.bf16 %v3410, %v3410
  %v3435 = vpack.c.bf16 %v3411, %v3411
  %v3436 = vpack.c.bf16 %v3412, %v3412
  %v3445 = vunpack.c.l.b16 %v3429
  %v3446 = vunpack.c.l.b16 %v3430
  %v3447 = vunpack.c.l.b16 %v3431
  %v3448 = vunpack.c.l.b16 %v3432
  %v3449 = vunpack.c.l.b16 %v3433
  %v3450 = vunpack.c.l.b16 %v3434
  %v3451 = vunpack.c.l.b16 %v3435
  %v3452 = vunpack.c.l.b16 %v3436
  %v3453 = vrot.slane %v3446, 7
  %v3454 = vsel %vm951, %v3453, %v3445
  %v3455 = vrot.slane %v3447, 6
  %v3456 = vsel %vm954, %v3455, %v3454
  %v3457 = vrot.slane %v3448, 5
  %v3458 = vsel %vm957, %v3457, %v3456
  %v3459 = vrot.slane %v3449, 4
  %v3460 = vsel %vm960, %v3459, %v3458
  %v3461 = vrot.slane %v3450, 3
  %v3462 = vsel %vm963, %v3461, %v3460
  %v3463 = vrot.slane %v3451, 2
  %v3464 = vsel %vm966, %v3463, %v3462
  %v3465 = vrot.slane %v3452, 1
  %v3466 = vsel %vm969, %v3465, %v3464
  %v3467 = vpack.c.b16 %v3466, %v3466
  %3469 = vmatprep.subr.bf16.mxu0 %v524
  %3470 = vmatpush1.bf16.msra.mxu0 %v523
  %3471 = vmatprep.subr.bf16.mxu0 %v521
  %3472 = vmatpush1.bf16.msra.mxu0 %v520
  %3473 = vmatprep.subr.bf16.mxu0 %v518
  %3474 = vmatpush1.bf16.msra.mxu0 %v517
  %3475 = vmatprep.subr.bf16.mxu0 %v515
  %3476 = vmatpush1.bf16.msra.mxu0 %v514
  %3477 = vmatprep.subr.bf16.mxu0 %v512
  %3478 = vmatpush1.bf16.msra.mxu0 %v511
  %3479 = vmatprep.subr.bf16.mxu0 %v509
  %3480 = vmatpush1.bf16.msra.mxu0 %v508
  %3481 = vmatprep.subr.bf16.mxu0 %v506
  %3482 = vmatpush1.bf16.msra.mxu0 %v505
  %3483 = vmatprep.subr.bf16.mxu0 %v503
  %3484 = vmatpush1.bf16.msra.mxu0 %v502
  %3485 = vmatprep.subr.bf16.mxu0 0
  %3486 = vmatpush2.bf16.msra.mxu0 0
  %3487 = vmatprep.subr.bf16.mxu0 0
  %3488 = vmatpush2.bf16.msra.mxu0 0
  %3489 = vmatprep.subr.bf16.mxu0 0
  %3490 = vmatpush2.bf16.msra.mxu0 0
  %3491 = vmatprep.subr.bf16.mxu0 0
  %3492 = vmatpush2.bf16.msra.mxu0 0
  %3493 = vmatprep.subr.bf16.mxu0 0
  %3494 = vmatpush2.bf16.msra.mxu0 0
  %3495 = vmatprep.subr.bf16.mxu0 0
  %3496 = vmatpush2.bf16.msra.mxu0 0
  %3497 = vmatprep.subr.bf16.mxu0 0
  %3498 = vmatpush2.bf16.msra.mxu0 0
  %3499 = vmatprep.subr.bf16.mxu0 0
  %3500 = vmatpush2.bf16.msra.mxu0 0
  %3501 = vmatprep.mubr.bf16.mxu0 0
  %3502 = vmatmul.mubr.bf16.gmra.mxu0 %v3467
  %v3503 = vpop.f32.mrf.mxu0
  %v3504 = vadd.f32 0.0, %v3503
  %v3505 = vpop.f32.mrf.mxu0
  %v3506 = vadd.f32 0.0, %v3505
  %v3507 = vpop.f32.mrf.mxu0
  %v3508 = vpop.f32.mrf.mxu0
  %3509 = vdwg.mxu0
  %3510 = vmatprep.subr.bf16.mxu0 0
  %3511 = vmatpush1.bf16.msra.mxu0 %v525
  %3512 = vmatprep.subr.bf16.mxu0 0
  %3513 = vmatpush1.bf16.msra.mxu0 %v522
  %3514 = vmatprep.subr.bf16.mxu0 0
  %3515 = vmatpush1.bf16.msra.mxu0 %v519
  %3516 = vmatprep.subr.bf16.mxu0 0
  %3517 = vmatpush1.bf16.msra.mxu0 %v516
  %3518 = vmatprep.subr.bf16.mxu0 0
  %3519 = vmatpush1.bf16.msra.mxu0 %v513
  %3520 = vmatprep.subr.bf16.mxu0 0
  %3521 = vmatpush1.bf16.msra.mxu0 %v510
  %3522 = vmatprep.subr.bf16.mxu0 0
  %3523 = vmatpush1.bf16.msra.mxu0 %v507
  %3524 = vmatprep.subr.bf16.mxu0 0
  %3525 = vmatpush1.bf16.msra.mxu0 %v504
  %3526 = vmatprep.subr.bf16.mxu0 0
  %3527 = vmatpush2.bf16.msra.mxu0 0
  %3528 = vmatprep.subr.bf16.mxu0 0
  %3529 = vmatpush2.bf16.msra.mxu0 0
  %3530 = vmatprep.subr.bf16.mxu0 0
  %3531 = vmatpush2.bf16.msra.mxu0 0
  %3532 = vmatprep.subr.bf16.mxu0 0
  %3533 = vmatpush2.bf16.msra.mxu0 0
  %3534 = vmatprep.subr.bf16.mxu0 0
  %3535 = vmatpush2.bf16.msra.mxu0 0
  %3536 = vmatprep.subr.bf16.mxu0 0
  %3537 = vmatpush2.bf16.msra.mxu0 0
  %3538 = vmatprep.subr.bf16.mxu0 0
  %3539 = vmatpush2.bf16.msra.mxu0 0
  %3540 = vmatprep.subr.bf16.mxu0 0
  %3541 = vmatpush2.bf16.msra.mxu0 0
  %3542 = vmatprep.mubr.bf16.mxu0 0
  %3543 = vmatmul.mubr.bf16.gmra.mxu0 %v3467
  %v3544 = vpop.f32.mrf.mxu0
  %v3545 = vadd.f32 0.0, %v3544
  %v3546 = vpop.f32.mrf.mxu0
  %v3547 = vpop.f32.mrf.mxu0
  %v3548 = vpop.f32.mrf.mxu0
  %3549 = vdwg.mxu0
  %v3552 = vcombine.low %v3504, %v3506
  %v3553 = vcombine.high %v3504, %v3506
  %v3555 = vunpack.c.l.s4 1966171168
  %v3556 = vunpack.c.0.s8 %v3555
  %v3557 = vlaneseq
  %v3558 = vshrl.u32 %v3557, 7
  %v3559 = vsub.s32 %v3556, %v3558
  %v3560 = vrot.slane %v3552, %v3559
  %v3562 = vunpack.c.l.s4 1966171168
  %v3563 = vunpack.c.0.s8 %v3562
  %v3564 = vlaneseq
  %v3565 = vshrl.u32 %v3564, 7
  %v3566 = vsub.s32 %v3563, %v3565
  %v3567 = vrot.slane %v3553, %v3566
  %v3568 = vcombine.high %v3560, %v3560
  %v3569 = vcombine.high %v3567, %v3567
  %v3571 = vunpack.c.l.s4 1966171168
  %v3572 = vunpack.c.0.s8 %v3571
  %v3573 = vlaneseq
  %v3574 = vshrl.u32 %v3573, 7
  %v3575 = vsub.s32 %v3572, %v3574
  %v3576 = vrot.slane %v3560, %v3575
  %v3578 = vunpack.c.l.s4 1966171168
  %v3579 = vunpack.c.0.s8 %v3578
  %v3580 = vlaneseq
  %v3581 = vshrl.u32 %v3580, 7
  %v3582 = vsub.s32 %v3579, %v3581
  %v3583 = vrot.slane %v3567, %v3582
  %v3585 = vunpack.c.l.s4 1966171168
  %v3586 = vunpack.c.0.s8 %v3585
  %v3587 = vlaneseq
  %v3588 = vshrl.u32 %v3587, 7
  %v3589 = vsub.s32 %v3586, %v3588
  %v3590 = vrot.slane %v3568, %v3589
  %v3592 = vunpack.c.l.s4 1966171168
  %v3593 = vunpack.c.0.s8 %v3592
  %v3594 = vlaneseq
  %v3595 = vshrl.u32 %v3594, 7
  %v3596 = vsub.s32 %v3593, %v3595
  %v3597 = vrot.slane %v3569, %v3596
  %v3598 = vcombine.high %v3576, %v3576
  %v3599 = vcombine.high %v3583, %v3583
  %v3600 = vcombine.high %v3590, %v3590
  %v3601 = vcombine.high %v3597, %v3597
  %v3610 = vadd.f32 %v3414, %v3576
  %v3611 = vadd.f32 %v3416, %v3590
  %v3612 = vadd.f32 %v3418, %v3598
  %v3613 = vadd.f32 %v3420, %v3600
  %v3614 = vadd.f32 %v3422, %v3583
  %v3615 = vadd.f32 %v3424, %v3597
  %v3616 = vadd.f32 %v3426, %v3599
  %v3617 = vadd.f32 %v3428, %v3601
  %v3618 = vxor.u32 %v3610, 2147483648
  %v3619 = vxor.u32 %v3611, 2147483648
  %v3620 = vxor.u32 %v3612, 2147483648
  %v3621 = vxor.u32 %v3613, 2147483648
  %v3622 = vxor.u32 %v3614, 2147483648
  %v3623 = vxor.u32 %v3615, 2147483648
  %v3624 = vxor.u32 %v3616, 2147483648
  %v3625 = vxor.u32 %v3617, 2147483648
  %v3626 = vmul.f32 %v3618, 1.442695
  %v3627 = vpow.pop %v3626
  %v3628 = vmul.f32 %v3619, 1.442695
  %v3629 = vpow.pop %v3628
  %v3630 = vmul.f32 %v3620, 1.442695
  %v3631 = vpow.pop %v3630
  %v3632 = vmul.f32 %v3621, 1.442695
  %v3633 = vpow.pop %v3632
  %v3634 = vmul.f32 %v3622, 1.442695
  %v3635 = vpow.pop %v3634
  %v3636 = vmul.f32 %v3623, 1.442695
  %v3637 = vpow.pop %v3636
  %v3638 = vmul.f32 %v3624, 1.442695
  %v3639 = vpow.pop %v3638
  %v3640 = vmul.f32 %v3625, 1.442695
  %v3641 = vpow.pop %v3640
  %v3642 = vadd.f32 %v3627, 1.0
  %v3643 = vadd.f32 %v3629, 1.0
  %v3644 = vadd.f32 %v3631, 1.0
  %v3645 = vadd.f32 %v3633, 1.0
  %v3646 = vadd.f32 %v3635, 1.0
  %v3647 = vadd.f32 %v3637, 1.0
  %v3648 = vadd.f32 %v3639, 1.0
  %v3649 = vadd.f32 %v3641, 1.0
  %v3650 = vrcp.pop %v3642
  %v3651 = vmul.f32 1.0, %v3650
  %v3652 = vrcp.pop %v3643
  %v3653 = vmul.f32 1.0, %v3652
  %v3654 = vrcp.pop %v3644
  %v3655 = vmul.f32 1.0, %v3654
  %v3656 = vrcp.pop %v3645
  %v3657 = vmul.f32 1.0, %v3656
  %v3658 = vrcp.pop %v3646
  %v3659 = vmul.f32 1.0, %v3658
  %v3660 = vrcp.pop %v3647
  %v3661 = vmul.f32 1.0, %v3660
  %v3662 = vrcp.pop %v3648
  %v3663 = vmul.f32 1.0, %v3662
  %v3664 = vrcp.pop %v3649
  %v3665 = vmul.f32 1.0, %v3664
  %v3666 = vadd.f32 %v3545, %v398
  %v3668 = vcombine.high %v3666, %v3666
  %v3670 = vunpack.c.l.s4 1966171168
  %v3671 = vunpack.c.0.s8 %v3670
  %v3672 = vlaneseq
  %v3673 = vshrl.u32 %v3672, 7
  %v3674 = vsub.s32 %v3671, %v3673
  %v3675 = vrot.slane %v3666, %v3674
  %v3677 = vunpack.c.l.s4 1966171168
  %v3678 = vunpack.c.0.s8 %v3677
  %v3679 = vlaneseq
  %v3680 = vshrl.u32 %v3679, 7
  %v3681 = vsub.s32 %v3678, %v3680
  %v3682 = vrot.slane %v3668, %v3681
  %v3683 = vcombine.high %v3675, %v3675
  %v3684 = vcombine.high %v3682, %v3682
  %v3686 = vunpack.c.l.s4 1966171168
  %v3687 = vunpack.c.0.s8 %v3686
  %v3688 = vlaneseq
  %v3689 = vshrl.u32 %v3688, 7
  %v3690 = vsub.s32 %v3687, %v3689
  %v3691 = vrot.slane %v3675, %v3690
  %v3693 = vunpack.c.l.s4 1966171168
  %v3694 = vunpack.c.0.s8 %v3693
  %v3695 = vlaneseq
  %v3696 = vshrl.u32 %v3695, 7
  %v3697 = vsub.s32 %v3694, %v3696
  %v3698 = vrot.slane %v3682, %v3697
  %v3700 = vunpack.c.l.s4 1966171168
  %v3701 = vunpack.c.0.s8 %v3700
  %v3702 = vlaneseq
  %v3703 = vshrl.u32 %v3702, 7
  %v3704 = vsub.s32 %v3701, %v3703
  %v3705 = vrot.slane %v3683, %v3704
  %v3707 = vunpack.c.l.s4 1966171168
  %v3708 = vunpack.c.0.s8 %v3707
  %v3709 = vlaneseq
  %v3710 = vshrl.u32 %v3709, 7
  %v3711 = vsub.s32 %v3708, %v3710
  %v3712 = vrot.slane %v3684, %v3711
  %v3713 = vcombine.high %v3691, %v3691
  %v3714 = vcombine.high %v3698, %v3698
  %v3715 = vcombine.high %v3705, %v3705
  %v3716 = vcombine.high %v3712, %v3712
  %v3725 = vmul.f32 %v3651, %v3691
  %v3726 = vmul.f32 %v3653, %v3705
  %v3727 = vmul.f32 %v3655, %v3713
  %v3728 = vmul.f32 %v3657, %v3715
  %v3729 = vmul.f32 %v3659, %v3698
  %v3730 = vmul.f32 %v3661, %v3712
  %v3731 = vmul.f32 %v3663, %v3714
  %v3732 = vmul.f32 %v3665, %v3716
  %v3741 = vrot.slane %v3414, 2
  %v3742 = vrot.slane %v3416, 2
  %v3743 = vrot.slane %v3418, 2
  %v3744 = vrot.slane %v3420, 2
  %v3745 = vrot.slane %v3422, 2
  %v3746 = vrot.slane %v3424, 2
  %v3747 = vrot.slane %v3426, 2
  %v3748 = vrot.slane %v3428, 2
  %v3757 = vadd.f32 %v3741, %v3725
  %v3758 = vadd.f32 %v3742, %v3726
  %v3759 = vadd.f32 %v3743, %v3727
  %v3760 = vadd.f32 %v3744, %v3728
  %v3761 = vadd.f32 %v3745, %v3729
  %v3762 = vadd.f32 %v3746, %v3730
  %v3763 = vadd.f32 %v3747, %v3731
  %v3764 = vadd.f32 %v3748, %v3732
  %v3765 = vtanh.pop %v3757
  %v3766 = vtanh.pop %v3758
  %v3767 = vtanh.pop %v3759
  %v3768 = vtanh.pop %v3760
  %v3769 = vtanh.pop %v3761
  %v3770 = vtanh.pop %v3762
  %v3771 = vtanh.pop %v3763
  %v3772 = vtanh.pop %v3764
  %v3781 = vrot.slane %v3651, 1
  %v3782 = vrot.slane %v3653, 1
  %v3783 = vrot.slane %v3655, 1
  %v3784 = vrot.slane %v3657, 1
  %v3785 = vrot.slane %v3659, 1
  %v3786 = vrot.slane %v3661, 1
  %v3787 = vrot.slane %v3663, 1
  %v3788 = vrot.slane %v3665, 1
  %v3797 = vsub.f32 1.0, %v3781
  %v3798 = vsub.f32 1.0, %v3782
  %v3799 = vsub.f32 1.0, %v3783
  %v3800 = vsub.f32 1.0, %v3784
  %v3801 = vsub.f32 1.0, %v3785
  %v3802 = vsub.f32 1.0, %v3786
  %v3803 = vsub.f32 1.0, %v3787
  %v3804 = vsub.f32 1.0, %v3788
  %v3805 = vmul.f32 %v3797, %v3765
  %v3806 = vmul.f32 %v3798, %v3766
  %v3807 = vmul.f32 %v3799, %v3767
  %v3808 = vmul.f32 %v3800, %v3768
  %v3809 = vmul.f32 %v3801, %v3769
  %v3810 = vmul.f32 %v3802, %v3770
  %v3811 = vmul.f32 %v3803, %v3771
  %v3812 = vmul.f32 %v3804, %v3772
  %v3813 = vmul.f32 %v3781, %v3405
  %v3814 = vmul.f32 %v3782, %v3406
  %v3815 = vmul.f32 %v3783, %v3407
  %v3816 = vmul.f32 %v3784, %v3408
  %v3817 = vmul.f32 %v3785, %v3409
  %v3818 = vmul.f32 %v3786, %v3410
  %v3819 = vmul.f32 %v3787, %v3411
  %v3820 = vmul.f32 %v3788, %v3412
  %v3821 = vadd.f32 %v3805, %v3813
  %v3822 = vadd.f32 %v3806, %v3814
  %v3823 = vadd.f32 %v3807, %v3815
  %v3824 = vadd.f32 %v3808, %v3816
  %v3825 = vadd.f32 %v3809, %v3817
  %v3826 = vadd.f32 %v3810, %v3818
  %v3827 = vadd.f32 %v3811, %v3819
  %v3828 = vadd.f32 %v3812, %v3820
  %v3829 = vpack.c.bf16 %v3821, %v3821
  %v3830 = vpack.c.bf16 %v3822, %v3822
  %v3831 = vpack.c.bf16 %v3823, %v3823
  %v3832 = vpack.c.bf16 %v3824, %v3824
  %v3833 = vpack.c.bf16 %v3825, %v3825
  %v3834 = vpack.c.bf16 %v3826, %v3826
  %v3835 = vpack.c.bf16 %v3827, %v3827
  %v3836 = vpack.c.bf16 %v3828, %v3828
  %v3837 = vld [vmem:[%s5] sm:$0xf]
  %v3838 = vld [vmem:[%s5 + $0x4] sm:$0xf]
  %v3839 = vld [vmem:[%s5 + $0x8] sm:$0xf]
  %v3840 = vld [vmem:[%s5 + $0xc] sm:$0xf]
  %v3841 = vld [vmem:[%s5 + $0x10] sm:$0xf]
  %v3842 = vld [vmem:[%s5 + $0x14] sm:$0xf]
  %v3843 = vld [vmem:[%s5 + $0x18] sm:$0xf]
  %v3844 = vld [vmem:[%s5 + $0x1c] sm:$0xf]
  %v3845 = vld [vmem:[%s5 + $0x20] sm:$0xf]
  %v3846 = vld [vmem:[%s5 + $0x24] sm:$0xf]
  %v3847 = vld [vmem:[%s5 + $0x28] sm:$0xf]
  %v3848 = vld [vmem:[%s5 + $0x2c] sm:$0xf]
  %v3849 = vld [vmem:[%s5 + $0x30] sm:$0xf]
  %v3850 = vld [vmem:[%s5 + $0x34] sm:$0xf]
  %v3851 = vld [vmem:[%s5 + $0x38] sm:$0xf]
  %v3852 = vld [vmem:[%s5 + $0x3c] sm:$0xf]
  %v3853 = vld [vmem:[%s6] sm:$0x1]
  %v3855 = vlaneseq
  %v3856 = vshrl.u32 %v3855, 7
  %v3857 = vsub.s32 0, %v3856
  %v3858 = vrot.slane %v3853, %v3857
  %v3868 = vunpack.c.l.b16 %v3829
  %v3869 = vunpack.c.l.b16 %v3830
  %v3870 = vunpack.c.l.b16 %v3831
  %v3871 = vunpack.c.l.b16 %v3832
  %v3872 = vunpack.c.l.b16 %v3833
  %v3873 = vunpack.c.l.b16 %v3834
  %v3874 = vunpack.c.l.b16 %v3835
  %v3875 = vunpack.c.l.b16 %v3836
  %v3876 = vrot.slane %v3869, 7
  %v3877 = vsel %vm951, %v3876, %v3868
  %v3878 = vrot.slane %v3870, 6
  %v3879 = vsel %vm954, %v3878, %v3877
  %v3880 = vrot.slane %v3871, 5
  %v3881 = vsel %vm957, %v3880, %v3879
  %v3882 = vrot.slane %v3872, 4
  %v3883 = vsel %vm960, %v3882, %v3881
  %v3884 = vrot.slane %v3873, 3
  %v3885 = vsel %vm963, %v3884, %v3883
  %v3886 = vrot.slane %v3874, 2
  %v3887 = vsel %vm966, %v3886, %v3885
  %v3888 = vrot.slane %v3875, 1
  %v3889 = vsel %vm969, %v3888, %v3887
  %v3890 = vpack.c.b16 %v3889, %v3889
  %v3908 = vunpack.c.l.b16 %v3837
  %v3909 = vunpack.c.l.b16 %v3838
  %v3910 = vunpack.c.l.b16 %v3839
  %v3911 = vunpack.c.l.b16 %v3840
  %v3912 = vunpack.c.l.b16 %v3841
  %v3913 = vunpack.c.l.b16 %v3842
  %v3914 = vunpack.c.l.b16 %v3843
  %v3915 = vunpack.c.l.b16 %v3844
  %v3916 = vunpack.c.l.b16 %v3845
  %v3917 = vunpack.c.l.b16 %v3846
  %v3918 = vunpack.c.l.b16 %v3847
  %v3919 = vunpack.c.l.b16 %v3848
  %v3920 = vunpack.c.l.b16 %v3849
  %v3921 = vunpack.c.l.b16 %v3850
  %v3922 = vunpack.c.l.b16 %v3851
  %v3923 = vunpack.c.l.b16 %v3852
  %v3924 = vpack.c.b16 %v3909, %v3908
  %v3925 = vpack.c.b16 %v3911, %v3910
  %v3926 = vpack.c.b16 %v3913, %v3912
  %v3927 = vpack.c.b16 %v3915, %v3914
  %v3928 = vpack.c.b16 %v3917, %v3916
  %v3929 = vpack.c.b16 %v3919, %v3918
  %v3930 = vpack.c.b16 %v3921, %v3920
  %v3931 = vpack.c.b16 %v3923, %v3922
  %3940 = vmatprep.subr.bf16.mxu0 0
  %3941 = vmatpush1.bf16.msra.mxu0 %v3931
  %3942 = vmatprep.subr.bf16.mxu0 0
  %3943 = vmatpush1.bf16.msra.mxu0 %v3930
  %3944 = vmatprep.subr.bf16.mxu0 0
  %3945 = vmatpush1.bf16.msra.mxu0 %v3929
  %3946 = vmatprep.subr.bf16.mxu0 0
  %3947 = vmatpush1.bf16.msra.mxu0 %v3928
  %3948 = vmatprep.subr.bf16.mxu0 0
  %3949 = vmatpush1.bf16.msra.mxu0 %v3927
  %3950 = vmatprep.subr.bf16.mxu0 0
  %3951 = vmatpush1.bf16.msra.mxu0 %v3926
  %3952 = vmatprep.subr.bf16.mxu0 0
  %3953 = vmatpush1.bf16.msra.mxu0 %v3925
  %3954 = vmatprep.subr.bf16.mxu0 0
  %3955 = vmatpush1.bf16.msra.mxu0 %v3924
  %3956 = vmatprep.subr.bf16.mxu0 0
  %3957 = vmatpush2.bf16.msra.mxu0 0
  %3958 = vmatprep.subr.bf16.mxu0 0
  %3959 = vmatpush2.bf16.msra.mxu0 0
  %3960 = vmatprep.subr.bf16.mxu0 0
  %3961 = vmatpush2.bf16.msra.mxu0 0
  %3962 = vmatprep.subr.bf16.mxu0 0
  %3963 = vmatpush2.bf16.msra.mxu0 0
  %3964 = vmatprep.subr.bf16.mxu0 0
  %3965 = vmatpush2.bf16.msra.mxu0 0
  %3966 = vmatprep.subr.bf16.mxu0 0
  %3967 = vmatpush2.bf16.msra.mxu0 0
  %3968 = vmatprep.subr.bf16.mxu0 0
  %3969 = vmatpush2.bf16.msra.mxu0 0
  %3970 = vmatprep.subr.bf16.mxu0 0
  %3971 = vmatpush2.bf16.msra.mxu0 0
  %3972 = vmatprep.mubr.bf16.mxu0 0
  %3973 = vmatmul.mubr.bf16.gmra.mxu0 %v3890
  %v3974 = vpop.f32.mrf.mxu0
  %v3975 = vadd.f32 %v3858, %v3974
  %v3976 = vpop.f32.mrf.mxu0
  %v3977 = vpop.f32.mrf.mxu0
  %v3978 = vpop.f32.mrf.mxu0
  %3979 = vdwg.mxu0
  %v3980 = vpack.c.bf16 %v3975, %v3975
  %v3981 = vld [vmem:[%s7] sm:$0xff]
  %v3982 = vld [vmem:[%s7 + $0x8] sm:$0xf]
  %v3983 = vld [vmem:[%s7 + $0xc] sm:$0xff]
  %v3984 = vld [vmem:[%s7 + $0x14] sm:$0xf]
  %v3985 = vld [vmem:[%s7 + $0x18] sm:$0xff]
  %v3986 = vld [vmem:[%s7 + $0x20] sm:$0xf]
  %v3987 = vld [vmem:[%s7 + $0x24] sm:$0xff]
  %v3988 = vld [vmem:[%s7 + $0x2c] sm:$0xf]
  %v3989 = vld [vmem:[%s9] sm:$0x7]
  %v3991 = vlaneseq
  %v3992 = vshrl.u32 %v3991, 7
  %v3993 = vsub.s32 0, %v3992
  %v3994 = vrot.slane %v3989, %v3993
  %v3995 = vlaneseq
  %v3996 = vshrl.u32 %v3995, 7
  %v3997 = vsub.s32 1, %v3996
  %v3998 = vrot.slane %v3989, %v3997
  %v3999 = vlaneseq
  %v4000 = vshrl.u32 %v3999, 7
  %v4001 = vsub.s32 2, %v4000
  %v4002 = vrot.slane %v3989, %v4001
  %v4014 = vunpack.c.l.b16 %v3981
  %v4015 = vunpack.c.h.b16 %v3981
  %v4016 = vunpack.c.l.b16 %v3982
  %v4017 = vunpack.c.l.b16 %v3983
  %v4018 = vunpack.c.h.b16 %v3983
  %v4019 = vunpack.c.l.b16 %v3984
  %v4020 = vunpack.c.l.b16 %v3985
  %v4021 = vunpack.c.h.b16 %v3985
  %v4022 = vunpack.c.l.b16 %v3986
  %v4023 = vunpack.c.l.b16 %v3987
  %v4024 = vunpack.c.h.b16 %v3987
  %v4025 = vunpack.c.l.b16 %v3988
  %v4026 = vpack.c.b16 %v4017, %v4014
  %v4027 = vpack.c.b16 %v4018, %v4015
  %v4028 = vpack.c.b16 %v4019, %v4016
  %v4029 = vpack.c.b16 %v4023, %v4020
  %v4030 = vpack.c.b16 %v4024, %v4021
  %v4031 = vpack.c.b16 %v4025, %v4022
  %vm4038 = vcmask 261120
  %v4040 = vsel %vm4038, %v3980, 0
  %4042 = vmatprep.subr.bf16.mxu0 0
  %4043 = vmatpush1.bf16.msra.mxu0 0
  %4044 = vmatprep.subr.bf16.mxu0 0
  %4045 = vmatpush1.bf16.msra.mxu0 0
  %4046 = vmatprep.subr.bf16.mxu0 0
  %4047 = vmatpush1.bf16.msra.mxu0 0
  %4048 = vmatprep.subr.bf16.mxu0 0
  %4049 = vmatpush1.bf16.msra.mxu0 0
  %4050 = vmatprep.subr.bf16.mxu0 0
  %4051 = vmatpush1.bf16.msra.mxu0 0
  %4052 = vmatprep.subr.bf16.mxu0 0
  %4053 = vmatpush1.bf16.msra.mxu0 0
  %4054 = vmatprep.subr.bf16.mxu0 %v4030
  %4055 = vmatpush1.bf16.msra.mxu0 %v4029
  %4056 = vmatprep.subr.bf16.mxu0 %v4027
  %4057 = vmatpush1.bf16.msra.mxu0 %v4026
  %4058 = vmatprep.subr.bf16.mxu0 0
  %4059 = vmatpush2.bf16.msra.mxu0 0
  %4060 = vmatprep.subr.bf16.mxu0 0
  %4061 = vmatpush2.bf16.msra.mxu0 0
  %4062 = vmatprep.subr.bf16.mxu0 0
  %4063 = vmatpush2.bf16.msra.mxu0 0
  %4064 = vmatprep.subr.bf16.mxu0 0
  %4065 = vmatpush2.bf16.msra.mxu0 0
  %4066 = vmatprep.subr.bf16.mxu0 0
  %4067 = vmatpush2.bf16.msra.mxu0 0
  %4068 = vmatprep.subr.bf16.mxu0 0
  %4069 = vmatpush2.bf16.msra.mxu0 0
  %4070 = vmatprep.subr.bf16.mxu0 0
  %4071 = vmatpush2.bf16.msra.mxu0 0
  %4072 = vmatprep.subr.bf16.mxu0 0
  %4073 = vmatpush2.bf16.msra.mxu0 0
  %4074 = vmatprep.mubr.bf16.mxu0 0
  %4075 = vmatmul.mubr.bf16.gmra.mxu0 %v4040
  %v4076 = vpop.f32.mrf.mxu0
  %v4077 = vadd.f32 %v3994, %v4076
  %v4078 = vpop.f32.mrf.mxu0
  %v4079 = vadd.f32 %v3998, %v4078
  %v4080 = vpop.f32.mrf.mxu0
  %v4081 = vpop.f32.mrf.mxu0
  %4082 = vdwg.mxu0
  %4083 = vmatprep.subr.bf16.mxu0 0
  %4084 = vmatpush1.bf16.msra.mxu0 0
  %4085 = vmatprep.subr.bf16.mxu0 0
  %4086 = vmatpush1.bf16.msra.mxu0 0
  %4087 = vmatprep.subr.bf16.mxu0 0
  %4088 = vmatpush1.bf16.msra.mxu0 0
  %4089 = vmatprep.subr.bf16.mxu0 0
  %4090 = vmatpush1.bf16.msra.mxu0 0
  %4091 = vmatprep.subr.bf16.mxu0 0
  %4092 = vmatpush1.bf16.msra.mxu0 0
  %4093 = vmatprep.subr.bf16.mxu0 0
  %4094 = vmatpush1.bf16.msra.mxu0 0
  %4095 = vmatprep.subr.bf16.mxu0 0
  %4096 = vmatpush1.bf16.msra.mxu0 %v4031
  %4097 = vmatprep.subr.bf16.mxu0 0
  %4098 = vmatpush1.bf16.msra.mxu0 %v4028
  %4099 = vmatprep.subr.bf16.mxu0 0
  %4100 = vmatpush2.bf16.msra.mxu0 0
  %4101 = vmatprep.subr.bf16.mxu0 0
  %4102 = vmatpush2.bf16.msra.mxu0 0
  %4103 = vmatprep.subr.bf16.mxu0 0
  %4104 = vmatpush2.bf16.msra.mxu0 0
  %4105 = vmatprep.subr.bf16.mxu0 0
  %4106 = vmatpush2.bf16.msra.mxu0 0
  %4107 = vmatprep.subr.bf16.mxu0 0
  %4108 = vmatpush2.bf16.msra.mxu0 0
  %4109 = vmatprep.subr.bf16.mxu0 0
  %4110 = vmatpush2.bf16.msra.mxu0 0
  %4111 = vmatprep.subr.bf16.mxu0 0
  %4112 = vmatpush2.bf16.msra.mxu0 0
  %4113 = vmatprep.subr.bf16.mxu0 0
  %4114 = vmatpush2.bf16.msra.mxu0 0
  %4115 = vmatprep.mubr.bf16.mxu0 0
  %4116 = vmatmul.mubr.bf16.gmra.mxu0 %v4040
  %v4117 = vpop.f32.mrf.mxu0
  %v4118 = vadd.f32 %v4002, %v4117
  %v4119 = vpop.f32.mrf.mxu0
  %v4120 = vpop.f32.mrf.mxu0
  %v4121 = vpop.f32.mrf.mxu0
  %4122 = vdwg.mxu0
  %v4155 = vunpack.c.l.b16 %v361
  %v4156 = vunpack.c.h.b16 %v361
  %v4157 = vunpack.c.l.b16 %v362
  %v4158 = vunpack.c.l.b16 %v363
  %v4159 = vunpack.c.h.b16 %v363
  %v4160 = vunpack.c.l.b16 %v364
  %v4161 = vunpack.c.l.b16 %v365
  %v4162 = vunpack.c.h.b16 %v365
  %v4163 = vunpack.c.l.b16 %v366
  %v4164 = vunpack.c.l.b16 %v367
  %v4165 = vunpack.c.h.b16 %v367
  %v4166 = vunpack.c.l.b16 %v368
  %v4167 = vunpack.c.l.b16 %v369
  %v4168 = vunpack.c.h.b16 %v369
  %v4169 = vunpack.c.l.b16 %v370
  %v4170 = vunpack.c.l.b16 %v371
  %v4171 = vunpack.c.h.b16 %v371
  %v4172 = vunpack.c.l.b16 %v372
  %v4173 = vunpack.c.l.b16 %v373
  %v4174 = vunpack.c.h.b16 %v373
  %v4175 = vunpack.c.l.b16 %v374
  %v4176 = vunpack.c.l.b16 %v375
  %v4177 = vunpack.c.h.b16 %v375
  %v4178 = vunpack.c.l.b16 %v376
  %v4179 = vunpack.c.l.b16 %v377
  %v4180 = vunpack.c.h.b16 %v377
  %v4181 = vunpack.c.l.b16 %v378
  %v4182 = vunpack.c.l.b16 %v379
  %v4183 = vunpack.c.h.b16 %v379
  %v4184 = vunpack.c.l.b16 %v380
  %v4185 = vunpack.c.l.b16 %v381
  %v4186 = vunpack.c.h.b16 %v381
  %v4187 = vunpack.c.l.b16 %v382
  %v4188 = vunpack.c.l.b16 %v383
  %v4189 = vunpack.c.h.b16 %v383
  %v4190 = vunpack.c.l.b16 %v384
  %v4191 = vunpack.c.l.b16 %v385
  %v4192 = vunpack.c.h.b16 %v385
  %v4193 = vunpack.c.l.b16 %v386
  %v4194 = vunpack.c.l.b16 %v387
  %v4195 = vunpack.c.h.b16 %v387
  %v4196 = vunpack.c.l.b16 %v388
  %v4197 = vunpack.c.l.b16 %v389
  %v4198 = vunpack.c.h.b16 %v389
  %v4199 = vunpack.c.l.b16 %v390
  %v4200 = vunpack.c.l.b16 %v391
  %v4201 = vunpack.c.h.b16 %v391
  %v4202 = vunpack.c.l.b16 %v392
  %v4203 = vpack.c.b16 %v4158, %v4155
  %v4204 = vpack.c.b16 %v4159, %v4156
  %v4205 = vpack.c.b16 %v4160, %v4157
  %v4206 = vpack.c.b16 %v4164, %v4161
  %v4207 = vpack.c.b16 %v4165, %v4162
  %v4208 = vpack.c.b16 %v4166, %v4163
  %v4209 = vpack.c.b16 %v4170, %v4167
  %v4210 = vpack.c.b16 %v4171, %v4168
  %v4211 = vpack.c.b16 %v4172, %v4169
  %v4212 = vpack.c.b16 %v4176, %v4173
  %v4213 = vpack.c.b16 %v4177, %v4174
  %v4214 = vpack.c.b16 %v4178, %v4175
  %v4215 = vpack.c.b16 %v4182, %v4179
  %v4216 = vpack.c.b16 %v4183, %v4180
  %v4217 = vpack.c.b16 %v4184, %v4181
  %v4218 = vpack.c.b16 %v4188, %v4185
  %v4219 = vpack.c.b16 %v4189, %v4186
  %v4220 = vpack.c.b16 %v4190, %v4187
  %v4221 = vpack.c.b16 %v4194, %v4191
  %v4222 = vpack.c.b16 %v4195, %v4192
  %v4223 = vpack.c.b16 %v4196, %v4193
  %v4224 = vpack.c.b16 %v4200, %v4197
  %v4225 = vpack.c.b16 %v4201, %v4198
  %v4226 = vpack.c.b16 %v4202, %v4199
  %4251 = vmatprep.subr.bf16.mxu0 %v4225
  %4252 = vmatpush1.bf16.msra.mxu0 %v4224
  %4253 = vmatprep.subr.bf16.mxu0 %v4222
  %4254 = vmatpush1.bf16.msra.mxu0 %v4221
  %4255 = vmatprep.subr.bf16.mxu0 %v4219
  %4256 = vmatpush1.bf16.msra.mxu0 %v4218
  %4257 = vmatprep.subr.bf16.mxu0 %v4216
  %4258 = vmatpush1.bf16.msra.mxu0 %v4215
  %4259 = vmatprep.subr.bf16.mxu0 %v4213
  %4260 = vmatpush1.bf16.msra.mxu0 %v4212
  %4261 = vmatprep.subr.bf16.mxu0 %v4210
  %4262 = vmatpush1.bf16.msra.mxu0 %v4209
  %4263 = vmatprep.subr.bf16.mxu0 %v4207
  %4264 = vmatpush1.bf16.msra.mxu0 %v4206
  %4265 = vmatprep.subr.bf16.mxu0 %v4204
  %4266 = vmatpush1.bf16.msra.mxu0 %v4203
  %4267 = vmatprep.subr.bf16.mxu0 0
  %4268 = vmatpush2.bf16.msra.mxu0 0
  %4269 = vmatprep.subr.bf16.mxu0 0
  %4270 = vmatpush2.bf16.msra.mxu0 0
  %4271 = vmatprep.subr.bf16.mxu0 0
  %4272 = vmatpush2.bf16.msra.mxu0 0
  %4273 = vmatprep.subr.bf16.mxu0 0
  %4274 = vmatpush2.bf16.msra.mxu0 0
  %4275 = vmatprep.subr.bf16.mxu0 0
  %4276 = vmatpush2.bf16.msra.mxu0 0
  %4277 = vmatprep.subr.bf16.mxu0 0
  %4278 = vmatpush2.bf16.msra.mxu0 0
  %4279 = vmatprep.subr.bf16.mxu0 0
  %4280 = vmatpush2.bf16.msra.mxu0 0
  %4281 = vmatprep.subr.bf16.mxu0 0
  %4282 = vmatpush2.bf16.msra.mxu0 0
  %4283 = vmatprep.mubr.bf16.mxu0 0
  %4284 = vmatmul.mubr.bf16.gmra.mxu0 0
  %v4285 = vpop.f32.mrf.mxu0
  %v4286 = vadd.f32 0.0, %v4285
  %v4287 = vpop.f32.mrf.mxu0
  %v4288 = vadd.f32 0.0, %v4287
  %v4289 = vpop.f32.mrf.mxu0
  %v4290 = vpop.f32.mrf.mxu0
  %4291 = vdwg.mxu0
  %4292 = vmatprep.subr.bf16.mxu0 0
  %4293 = vmatpush1.bf16.msra.mxu0 %v4226
  %4294 = vmatprep.subr.bf16.mxu0 0
  %4295 = vmatpush1.bf16.msra.mxu0 %v4223
  %4296 = vmatprep.subr.bf16.mxu0 0
  %4297 = vmatpush1.bf16.msra.mxu0 %v4220
  %4298 = vmatprep.subr.bf16.mxu0 0
  %4299 = vmatpush1.bf16.msra.mxu0 %v4217
  %4300 = vmatprep.subr.bf16.mxu0 0
  %4301 = vmatpush1.bf16.msra.mxu0 %v4214
  %4302 = vmatprep.subr.bf16.mxu0 0
  %4303 = vmatpush1.bf16.msra.mxu0 %v4211
  %4304 = vmatprep.subr.bf16.mxu0 0
  %4305 = vmatpush1.bf16.msra.mxu0 %v4208
  %4306 = vmatprep.subr.bf16.mxu0 0
  %4307 = vmatpush1.bf16.msra.mxu0 %v4205
  %4308 = vmatprep.subr.bf16.mxu0 0
  %4309 = vmatpush2.bf16.msra.mxu0 0
  %4310 = vmatprep.subr.bf16.mxu0 0
  %4311 = vmatpush2.bf16.msra.mxu0 0
  %4312 = vmatprep.subr.bf16.mxu0 0
  %4313 = vmatpush2.bf16.msra.mxu0 0
  %4314 = vmatprep.subr.bf16.mxu0 0
  %4315 = vmatpush2.bf16.msra.mxu0 0
  %4316 = vmatprep.subr.bf16.mxu0 0
  %4317 = vmatpush2.bf16.msra.mxu0 0
  %4318 = vmatprep.subr.bf16.mxu0 0
  %4319 = vmatpush2.bf16.msra.mxu0 0
  %4320 = vmatprep.subr.bf16.mxu0 0
  %4321 = vmatpush2.bf16.msra.mxu0 0
  %4322 = vmatprep.subr.bf16.mxu0 0
  %4323 = vmatpush2.bf16.msra.mxu0 0
  %4324 = vmatprep.mubr.bf16.mxu0 0
  %4325 = vmatmul.mubr.bf16.gmra.mxu0 0
  %v4326 = vpop.f32.mrf.mxu0
  %v4327 = vadd.f32 0.0, %v4326
  %v4328 = vpop.f32.mrf.mxu0
  %v4329 = vpop.f32.mrf.mxu0
  %v4330 = vpop.f32.mrf.mxu0
  %4331 = vdwg.mxu0
  %v4332 = vadd.f32 %v4077, %v4286
  %v4333 = vadd.f32 %v4079, %v4288
  %v4334 = vxor.u32 %v4332, 2147483648
  %v4335 = vxor.u32 %v4333, 2147483648
  %v4336 = vmul.f32 %v4334, 1.442695
  %v4337 = vpow.pop %v4336
  %v4338 = vmul.f32 %v4335, 1.442695
  %v4339 = vpow.pop %v4338
  %v4340 = vadd.f32 %v4337, 1.0
  %v4341 = vadd.f32 %v4339, 1.0
  %v4342 = vrcp.pop %v4340
  %v4343 = vmul.f32 1.0, %v4342
  %v4344 = vrcp.pop %v4341
  %v4345 = vmul.f32 1.0, %v4344
  %v4346 = vadd.f32 %v4327, %v405
  %v4347 = vmul.f32 %v4343, %v4346
  %v4348 = vadd.f32 %v4118, %v4347
  %v4349 = vtanh.pop %v4348
  %v4350 = vsub.f32 1.0, %v4345
  %v4351 = vmul.f32 %v4350, %v4349
  %v4352 = vmul.f32 %v4345, 0.0
  %v4353 = vadd.f32 %v4351, %v4352
  %v4355 = vcombine.high %v4353, %v4353
  %v4357 = vunpack.c.l.s4 1966171168
  %v4358 = vunpack.c.0.s8 %v4357
  %v4359 = vlaneseq
  %v4360 = vshrl.u32 %v4359, 7
  %v4361 = vsub.s32 %v4358, %v4360
  %v4362 = vrot.slane %v4353, %v4361
  %v4364 = vunpack.c.l.s4 1966171168
  %v4365 = vunpack.c.0.s8 %v4364
  %v4366 = vlaneseq
  %v4367 = vshrl.u32 %v4366, 7
  %v4368 = vsub.s32 %v4365, %v4367
  %v4369 = vrot.slane %v4355, %v4368
  %v4370 = vcombine.high %v4362, %v4362
  %v4371 = vcombine.high %v4369, %v4369
  %v4373 = vunpack.c.l.s4 1966171168
  %v4374 = vunpack.c.0.s8 %v4373
  %v4375 = vlaneseq
  %v4376 = vshrl.u32 %v4375, 7
  %v4377 = vsub.s32 %v4374, %v4376
  %v4378 = vrot.slane %v4362, %v4377
  %v4380 = vunpack.c.l.s4 1966171168
  %v4381 = vunpack.c.0.s8 %v4380
  %v4382 = vlaneseq
  %v4383 = vshrl.u32 %v4382, 7
  %v4384 = vsub.s32 %v4381, %v4383
  %v4385 = vrot.slane %v4369, %v4384
  %v4387 = vunpack.c.l.s4 1966171168
  %v4388 = vunpack.c.0.s8 %v4387
  %v4389 = vlaneseq
  %v4390 = vshrl.u32 %v4389, 7
  %v4391 = vsub.s32 %v4388, %v4390
  %v4392 = vrot.slane %v4370, %v4391
  %v4394 = vunpack.c.l.s4 1966171168
  %v4395 = vunpack.c.0.s8 %v4394
  %v4396 = vlaneseq
  %v4397 = vshrl.u32 %v4396, 7
  %v4398 = vsub.s32 %v4395, %v4397
  %v4399 = vrot.slane %v4371, %v4398
  %v4400 = vcombine.high %v4378, %v4378
  %v4401 = vcombine.high %v4385, %v4385
  %v4402 = vcombine.high %v4392, %v4392
  %v4403 = vcombine.high %v4399, %v4399
  %4412 = vst [vmem:[#allocation3] sm:$0x1] %v4378
  %4413 = vst [vmem:[#allocation3 + $0x8] sm:$0x1] %v4392
  %4414 = vst [vmem:[#allocation3 + $0x10] sm:$0x1] %v4400
  %4415 = vst [vmem:[#allocation3 + $0x18] sm:$0x1] %v4402
  %4416 = vst [vmem:[#allocation3 + $0x20] sm:$0x1] %v4385
  %4417 = vst [vmem:[#allocation3 + $0x28] sm:$0x1] %v4399
  %4418 = vst [vmem:[#allocation3 + $0x30] sm:$0x1] %v4401
  %4419 = vst [vmem:[#allocation3 + $0x38] sm:$0x1] %v4403
  %v4420 = vpack.c.bf16 %v4353, %v4353
  %4421 = vmatprep.subr.bf16.mxu0 %v4225
  %4422 = vmatpush1.bf16.msra.mxu0 %v4224
  %4423 = vmatprep.subr.bf16.mxu0 %v4222
  %4424 = vmatpush1.bf16.msra.mxu0 %v4221
  %4425 = vmatprep.subr.bf16.mxu0 %v4219
  %4426 = vmatpush1.bf16.msra.mxu0 %v4218
  %4427 = vmatprep.subr.bf16.mxu0 %v4216
  %4428 = vmatpush1.bf16.msra.mxu0 %v4215
  %4429 = vmatprep.subr.bf16.mxu0 %v4213
  %4430 = vmatpush1.bf16.msra.mxu0 %v4212
  %4431 = vmatprep.subr.bf16.mxu0 %v4210
  %4432 = vmatpush1.bf16.msra.mxu0 %v4209
  %4433 = vmatprep.subr.bf16.mxu0 %v4207
  %4434 = vmatpush1.bf16.msra.mxu0 %v4206
  %4435 = vmatprep.subr.bf16.mxu0 %v4204
  %4436 = vmatpush1.bf16.msra.mxu0 %v4203
  %4437 = vmatprep.subr.bf16.mxu0 0
  %4438 = vmatpush2.bf16.msra.mxu0 0
  %4439 = vmatprep.subr.bf16.mxu0 0
  %4440 = vmatpush2.bf16.msra.mxu0 0
  %4441 = vmatprep.subr.bf16.mxu0 0
  %4442 = vmatpush2.bf16.msra.mxu0 0
  %4443 = vmatprep.subr.bf16.mxu0 0
  %4444 = vmatpush2.bf16.msra.mxu0 0
  %4445 = vmatprep.subr.bf16.mxu0 0
  %4446 = vmatpush2.bf16.msra.mxu0 0
  %4447 = vmatprep.subr.bf16.mxu0 0
  %4448 = vmatpush2.bf16.msra.mxu0 0
  %4449 = vmatprep.subr.bf16.mxu0 0
  %4450 = vmatpush2.bf16.msra.mxu0 0
  %4451 = vmatprep.subr.bf16.mxu0 0
  %4452 = vmatpush2.bf16.msra.mxu0 0
  %4453 = vmatprep.mubr.bf16.mxu0 0
  %4454 = vmatmul.mubr.bf16.gmra.mxu0 %v4420
  %v4455 = vpop.f32.mrf.mxu0
  %v4456 = vadd.f32 0.0, %v4455
  %v4457 = vpop.f32.mrf.mxu0
  %v4458 = vadd.f32 0.0, %v4457
  %v4459 = vpop.f32.mrf.mxu0
  %v4460 = vpop.f32.mrf.mxu0
  %4461 = vdwg.mxu0
  %4462 = vmatprep.subr.bf16.mxu0 0
  %4463 = vmatpush1.bf16.msra.mxu0 %v4226
  %4464 = vmatprep.subr.bf16.mxu0 0
  %4465 = vmatpush1.bf16.msra.mxu0 %v4223
  %4466 = vmatprep.subr.bf16.mxu0 0
  %4467 = vmatpush1.bf16.msra.mxu0 %v4220
  %4468 = vmatprep.subr.bf16.mxu0 0
  %4469 = vmatpush1.bf16.msra.mxu0 %v4217
  %4470 = vmatprep.subr.bf16.mxu0 0
  %4471 = vmatpush1.bf16.msra.mxu0 %v4214
  %4472 = vmatprep.subr.bf16.mxu0 0
  %4473 = vmatpush1.bf16.msra.mxu0 %v4211
  %4474 = vmatprep.subr.bf16.mxu0 0
  %4475 = vmatpush1.bf16.msra.mxu0 %v4208
  %4476 = vmatprep.subr.bf16.mxu0 0
  %4477 = vmatpush1.bf16.msra.mxu0 %v4205
  %4478 = vmatprep.subr.bf16.mxu0 0
  %4479 = vmatpush2.bf16.msra.mxu0 0
  %4480 = vmatprep.subr.bf16.mxu0 0
  %4481 = vmatpush2.bf16.msra.mxu0 0
  %4482 = vmatprep.subr.bf16.mxu0 0
  %4483 = vmatpush2.bf16.msra.mxu0 0
  %4484 = vmatprep.subr.bf16.mxu0 0
  %4485 = vmatpush2.bf16.msra.mxu0 0
  %4486 = vmatprep.subr.bf16.mxu0 0
  %4487 = vmatpush2.bf16.msra.mxu0 0
  %4488 = vmatprep.subr.bf16.mxu0 0
  %4489 = vmatpush2.bf16.msra.mxu0 0
  %4490 = vmatprep.subr.bf16.mxu0 0
  %4491 = vmatpush2.bf16.msra.mxu0 0
  %4492 = vmatprep.subr.bf16.mxu0 0
  %4493 = vmatpush2.bf16.msra.mxu0 0
  %4494 = vmatprep.mubr.bf16.mxu0 0
  %4495 = vmatmul.mubr.bf16.gmra.mxu0 %v4420
  %v4496 = vpop.f32.mrf.mxu0
  %v4497 = vadd.f32 0.0, %v4496
  %v4498 = vpop.f32.mrf.mxu0
  %v4499 = vpop.f32.mrf.mxu0
  %v4500 = vpop.f32.mrf.mxu0
  %4501 = vdwg.mxu0
  %v4502 = vadd.f32 %v4077, %v4456
  %v4503 = vadd.f32 %v4079, %v4458
  %v4504 = vxor.u32 %v4502, 2147483648
  %v4505 = vxor.u32 %v4503, 2147483648
  %v4506 = vmul.f32 %v4504, 1.442695
  %v4507 = vpow.pop %v4506
  %v4508 = vmul.f32 %v4505, 1.442695
  %v4509 = vpow.pop %v4508
  %v4510 = vadd.f32 %v4507, 1.0
  %v4511 = vadd.f32 %v4509, 1.0
  %v4512 = vrcp.pop %v4510
  %v4513 = vmul.f32 1.0, %v4512
  %v4514 = vrcp.pop %v4511
  %v4515 = vmul.f32 1.0, %v4514
  %v4516 = vadd.f32 %v4497, %v405
  %v4517 = vmul.f32 %v4513, %v4516
  %v4518 = vadd.f32 %v4118, %v4517
  %v4519 = vtanh.pop %v4518
  %v4520 = vsub.f32 1.0, %v4515
  %v4521 = vmul.f32 %v4520, %v4519
  %v4522 = vmul.f32 %v4515, %v4353
  %v4523 = vadd.f32 %v4521, %v4522
  %v4525 = vcombine.high %v4523, %v4523
  %v4527 = vunpack.c.l.s4 1966171168
  %v4528 = vunpack.c.0.s8 %v4527
  %v4529 = vlaneseq
  %v4530 = vshrl.u32 %v4529, 7
  %v4531 = vsub.s32 %v4528, %v4530
  %v4532 = vrot.slane %v4523, %v4531
  %v4534 = vunpack.c.l.s4 1966171168
  %v4535 = vunpack.c.0.s8 %v4534
  %v4536 = vlaneseq
  %v4537 = vshrl.u32 %v4536, 7
  %v4538 = vsub.s32 %v4535, %v4537
  %v4539 = vrot.slane %v4525, %v4538
  %v4540 = vcombine.high %v4532, %v4532
  %v4541 = vcombine.high %v4539, %v4539
  %v4543 = vunpack.c.l.s4 1966171168
  %v4544 = vunpack.c.0.s8 %v4543
  %v4545 = vlaneseq
  %v4546 = vshrl.u32 %v4545, 7
  %v4547 = vsub.s32 %v4544, %v4546
  %v4548 = vrot.slane %v4532, %v4547
  %v4550 = vunpack.c.l.s4 1966171168
  %v4551 = vunpack.c.0.s8 %v4550
  %v4552 = vlaneseq
  %v4553 = vshrl.u32 %v4552, 7
  %v4554 = vsub.s32 %v4551, %v4553
  %v4555 = vrot.slane %v4539, %v4554
  %v4557 = vunpack.c.l.s4 1966171168
  %v4558 = vunpack.c.0.s8 %v4557
  %v4559 = vlaneseq
  %v4560 = vshrl.u32 %v4559, 7
  %v4561 = vsub.s32 %v4558, %v4560
  %v4562 = vrot.slane %v4540, %v4561
  %v4564 = vunpack.c.l.s4 1966171168
  %v4565 = vunpack.c.0.s8 %v4564
  %v4566 = vlaneseq
  %v4567 = vshrl.u32 %v4566, 7
  %v4568 = vsub.s32 %v4565, %v4567
  %v4569 = vrot.slane %v4541, %v4568
  %v4570 = vcombine.high %v4548, %v4548
  %v4571 = vcombine.high %v4555, %v4555
  %v4572 = vcombine.high %v4562, %v4562
  %v4573 = vcombine.high %v4569, %v4569
  %4582 = vst [vmem:[#allocation3 + $0x1] sm:$0x1] %v4548
  %4583 = vst [vmem:[#allocation3 + $0x9] sm:$0x1] %v4562
  %4584 = vst [vmem:[#allocation3 + $0x11] sm:$0x1] %v4570
  %4585 = vst [vmem:[#allocation3 + $0x19] sm:$0x1] %v4572
  %4586 = vst [vmem:[#allocation3 + $0x21] sm:$0x1] %v4555
  %4587 = vst [vmem:[#allocation3 + $0x29] sm:$0x1] %v4569
  %4588 = vst [vmem:[#allocation3 + $0x31] sm:$0x1] %v4571
  %4589 = vst [vmem:[#allocation3 + $0x39] sm:$0x1] %v4573
  %v4590 = vpack.c.bf16 %v4523, %v4523
  %4591 = vmatprep.subr.bf16.mxu0 %v4225
  %4592 = vmatpush1.bf16.msra.mxu0 %v4224
  %4593 = vmatprep.subr.bf16.mxu0 %v4222
  %4594 = vmatpush1.bf16.msra.mxu0 %v4221
  %4595 = vmatprep.subr.bf16.mxu0 %v4219
  %4596 = vmatpush1.bf16.msra.mxu0 %v4218
  %4597 = vmatprep.subr.bf16.mxu0 %v4216
  %4598 = vmatpush1.bf16.msra.mxu0 %v4215
  %4599 = vmatprep.subr.bf16.mxu0 %v4213
  %4600 = vmatpush1.bf16.msra.mxu0 %v4212
  %4601 = vmatprep.subr.bf16.mxu0 %v4210
  %4602 = vmatpush1.bf16.msra.mxu0 %v4209
  %4603 = vmatprep.subr.bf16.mxu0 %v4207
  %4604 = vmatpush1.bf16.msra.mxu0 %v4206
  %4605 = vmatprep.subr.bf16.mxu0 %v4204
  %4606 = vmatpush1.bf16.msra.mxu0 %v4203
  %4607 = vmatprep.subr.bf16.mxu0 0
  %4608 = vmatpush2.bf16.msra.mxu0 0
  %4609 = vmatprep.subr.bf16.mxu0 0
  %4610 = vmatpush2.bf16.msra.mxu0 0
  %4611 = vmatprep.subr.bf16.mxu0 0
  %4612 = vmatpush2.bf16.msra.mxu0 0
  %4613 = vmatprep.subr.bf16.mxu0 0
  %4614 = vmatpush2.bf16.msra.mxu0 0
  %4615 = vmatprep.subr.bf16.mxu0 0
  %4616 = vmatpush2.bf16.msra.mxu0 0
  %4617 = vmatprep.subr.bf16.mxu0 0
  %4618 = vmatpush2.bf16.msra.mxu0 0
  %4619 = vmatprep.subr.bf16.mxu0 0
  %4620 = vmatpush2.bf16.msra.mxu0 0
  %4621 = vmatprep.subr.bf16.mxu0 0
  %4622 = vmatpush2.bf16.msra.mxu0 0
  %4623 = vmatprep.mubr.bf16.mxu0 0
  %4624 = vmatmul.mubr.bf16.gmra.mxu0 %v4590
  %v4625 = vpop.f32.mrf.mxu0
  %v4626 = vadd.f32 0.0, %v4625
  %v4627 = vpop.f32.mrf.mxu0
  %v4628 = vadd.f32 0.0, %v4627
  %v4629 = vpop.f32.mrf.mxu0
  %v4630 = vpop.f32.mrf.mxu0
  %4631 = vdwg.mxu0
  %4632 = vmatprep.subr.bf16.mxu0 0
  %4633 = vmatpush1.bf16.msra.mxu0 %v4226
  %4634 = vmatprep.subr.bf16.mxu0 0
  %4635 = vmatpush1.bf16.msra.mxu0 %v4223
  %4636 = vmatprep.subr.bf16.mxu0 0
  %4637 = vmatpush1.bf16.msra.mxu0 %v4220
  %4638 = vmatprep.subr.bf16.mxu0 0
  %4639 = vmatpush1.bf16.msra.mxu0 %v4217
  %4640 = vmatprep.subr.bf16.mxu0 0
  %4641 = vmatpush1.bf16.msra.mxu0 %v4214
  %4642 = vmatprep.subr.bf16.mxu0 0
  %4643 = vmatpush1.bf16.msra.mxu0 %v4211
  %4644 = vmatprep.subr.bf16.mxu0 0
  %4645 = vmatpush1.bf16.msra.mxu0 %v4208
  %4646 = vmatprep.subr.bf16.mxu0 0
  %4647 = vmatpush1.bf16.msra.mxu0 %v4205
  %4648 = vmatprep.subr.bf16.mxu0 0
  %4649 = vmatpush2.bf16.msra.mxu0 0
  %4650 = vmatprep.subr.bf16.mxu0 0
  %4651 = vmatpush2.bf16.msra.mxu0 0
  %4652 = vmatprep.subr.bf16.mxu0 0
  %4653 = vmatpush2.bf16.msra.mxu0 0
  %4654 = vmatprep.subr.bf16.mxu0 0
  %4655 = vmatpush2.bf16.msra.mxu0 0
  %4656 = vmatprep.subr.bf16.mxu0 0
  %4657 = vmatpush2.bf16.msra.mxu0 0
  %4658 = vmatprep.subr.bf16.mxu0 0
  %4659 = vmatpush2.bf16.msra.mxu0 0
  %4660 = vmatprep.subr.bf16.mxu0 0
  %4661 = vmatpush2.bf16.msra.mxu0 0
  %4662 = vmatprep.subr.bf16.mxu0 0
  %4663 = vmatpush2.bf16.msra.mxu0 0
  %4664 = vmatprep.mubr.bf16.mxu0 0
  %4665 = vmatmul.mubr.bf16.gmra.mxu0 %v4590
  %v4666 = vpop.f32.mrf.mxu0
  %v4667 = vadd.f32 0.0, %v4666
  %v4668 = vpop.f32.mrf.mxu0
  %v4669 = vpop.f32.mrf.mxu0
  %v4670 = vpop.f32.mrf.mxu0
  %4671 = vdwg.mxu0
  %v4672 = vadd.f32 %v4077, %v4626
  %v4673 = vadd.f32 %v4079, %v4628
  %v4674 = vxor.u32 %v4672, 2147483648
  %v4675 = vxor.u32 %v4673, 2147483648
  %v4676 = vmul.f32 %v4674, 1.442695
  %v4677 = vpow.pop %v4676
  %v4678 = vmul.f32 %v4675, 1.442695
  %v4679 = vpow.pop %v4678
  %v4680 = vadd.f32 %v4677, 1.0
  %v4681 = vadd.f32 %v4679, 1.0
  %v4682 = vrcp.pop %v4680
  %v4683 = vmul.f32 1.0, %v4682
  %v4684 = vrcp.pop %v4681
  %v4685 = vmul.f32 1.0, %v4684
  %v4686 = vadd.f32 %v4667, %v405
  %v4687 = vmul.f32 %v4683, %v4686
  %v4688 = vadd.f32 %v4118, %v4687
  %v4689 = vtanh.pop %v4688
  %v4690 = vsub.f32 1.0, %v4685
  %v4691 = vmul.f32 %v4690, %v4689
  %v4692 = vmul.f32 %v4685, %v4523
  %v4693 = vadd.f32 %v4691, %v4692
  %v4695 = vcombine.high %v4693, %v4693
  %v4697 = vunpack.c.l.s4 1966171168
  %v4698 = vunpack.c.0.s8 %v4697
  %v4699 = vlaneseq
  %v4700 = vshrl.u32 %v4699, 7
  %v4701 = vsub.s32 %v4698, %v4700
  %v4702 = vrot.slane %v4693, %v4701
  %v4704 = vunpack.c.l.s4 1966171168
  %v4705 = vunpack.c.0.s8 %v4704
  %v4706 = vlaneseq
  %v4707 = vshrl.u32 %v4706, 7
  %v4708 = vsub.s32 %v4705, %v4707
  %v4709 = vrot.slane %v4695, %v4708
  %v4710 = vcombine.high %v4702, %v4702
  %v4711 = vcombine.high %v4709, %v4709
  %v4713 = vunpack.c.l.s4 1966171168
  %v4714 = vunpack.c.0.s8 %v4713
  %v4715 = vlaneseq
  %v4716 = vshrl.u32 %v4715, 7
  %v4717 = vsub.s32 %v4714, %v4716
  %v4718 = vrot.slane %v4702, %v4717
  %v4720 = vunpack.c.l.s4 1966171168
  %v4721 = vunpack.c.0.s8 %v4720
  %v4722 = vlaneseq
  %v4723 = vshrl.u32 %v4722, 7
  %v4724 = vsub.s32 %v4721, %v4723
  %v4725 = vrot.slane %v4709, %v4724
  %v4727 = vunpack.c.l.s4 1966171168
  %v4728 = vunpack.c.0.s8 %v4727
  %v4729 = vlaneseq
  %v4730 = vshrl.u32 %v4729, 7
  %v4731 = vsub.s32 %v4728, %v4730
  %v4732 = vrot.slane %v4710, %v4731
  %v4734 = vunpack.c.l.s4 1966171168
  %v4735 = vunpack.c.0.s8 %v4734
  %v4736 = vlaneseq
  %v4737 = vshrl.u32 %v4736, 7
  %v4738 = vsub.s32 %v4735, %v4737
  %v4739 = vrot.slane %v4711, %v4738
  %v4740 = vcombine.high %v4718, %v4718
  %v4741 = vcombine.high %v4725, %v4725
  %v4742 = vcombine.high %v4732, %v4732
  %v4743 = vcombine.high %v4739, %v4739
  %4752 = vst [vmem:[#allocation3 + $0x2] sm:$0x1] %v4718
  %4753 = vst [vmem:[#allocation3 + $0xa] sm:$0x1] %v4732
  %4754 = vst [vmem:[#allocation3 + $0x12] sm:$0x1] %v4740
  %4755 = vst [vmem:[#allocation3 + $0x1a] sm:$0x1] %v4742
  %4756 = vst [vmem:[#allocation3 + $0x22] sm:$0x1] %v4725
  %4757 = vst [vmem:[#allocation3 + $0x2a] sm:$0x1] %v4739
  %4758 = vst [vmem:[#allocation3 + $0x32] sm:$0x1] %v4741
  %4759 = vst [vmem:[#allocation3 + $0x3a] sm:$0x1] %v4743
  %v4760 = vpack.c.bf16 %v4693, %v4693
  %4761 = vmatprep.subr.bf16.mxu0 %v4225
  %4762 = vmatpush1.bf16.msra.mxu0 %v4224
  %4763 = vmatprep.subr.bf16.mxu0 %v4222
  %4764 = vmatpush1.bf16.msra.mxu0 %v4221
  %4765 = vmatprep.subr.bf16.mxu0 %v4219
  %4766 = vmatpush1.bf16.msra.mxu0 %v4218
  %4767 = vmatprep.subr.bf16.mxu0 %v4216
  %4768 = vmatpush1.bf16.msra.mxu0 %v4215
  %4769 = vmatprep.subr.bf16.mxu0 %v4213
  %4770 = vmatpush1.bf16.msra.mxu0 %v4212
  %4771 = vmatprep.subr.bf16.mxu0 %v4210
  %4772 = vmatpush1.bf16.msra.mxu0 %v4209
  %4773 = vmatprep.subr.bf16.mxu0 %v4207
  %4774 = vmatpush1.bf16.msra.mxu0 %v4206
  %4775 = vmatprep.subr.bf16.mxu0 %v4204
  %4776 = vmatpush1.bf16.msra.mxu0 %v4203
  %4777 = vmatprep.subr.bf16.mxu0 0
  %4778 = vmatpush2.bf16.msra.mxu0 0
  %4779 = vmatprep.subr.bf16.mxu0 0
  %4780 = vmatpush2.bf16.msra.mxu0 0
  %4781 = vmatprep.subr.bf16.mxu0 0
  %4782 = vmatpush2.bf16.msra.mxu0 0
  %4783 = vmatprep.subr.bf16.mxu0 0
  %4784 = vmatpush2.bf16.msra.mxu0 0
  %4785 = vmatprep.subr.bf16.mxu0 0
  %4786 = vmatpush2.bf16.msra.mxu0 0
  %4787 = vmatprep.subr.bf16.mxu0 0
  %4788 = vmatpush2.bf16.msra.mxu0 0
  %4789 = vmatprep.subr.bf16.mxu0 0
  %4790 = vmatpush2.bf16.msra.mxu0 0
  %4791 = vmatprep.subr.bf16.mxu0 0
  %4792 = vmatpush2.bf16.msra.mxu0 0
  %4793 = vmatprep.mubr.bf16.mxu0 0
  %4794 = vmatmul.mubr.bf16.gmra.mxu0 %v4760
  %v4795 = vpop.f32.mrf.mxu0
  %v4796 = vadd.f32 0.0, %v4795
  %v4797 = vpop.f32.mrf.mxu0
  %v4798 = vadd.f32 0.0, %v4797
  %v4799 = vpop.f32.mrf.mxu0
  %v4800 = vpop.f32.mrf.mxu0
  %4801 = vdwg.mxu0
  %4802 = vmatprep.subr.bf16.mxu0 0
  %4803 = vmatpush1.bf16.msra.mxu0 %v4226
  %4804 = vmatprep.subr.bf16.mxu0 0
  %4805 = vmatpush1.bf16.msra.mxu0 %v4223
  %4806 = vmatprep.subr.bf16.mxu0 0
  %4807 = vmatpush1.bf16.msra.mxu0 %v4220
  %4808 = vmatprep.subr.bf16.mxu0 0
  %4809 = vmatpush1.bf16.msra.mxu0 %v4217
  %4810 = vmatprep.subr.bf16.mxu0 0
  %4811 = vmatpush1.bf16.msra.mxu0 %v4214
  %4812 = vmatprep.subr.bf16.mxu0 0
  %4813 = vmatpush1.bf16.msra.mxu0 %v4211
  %4814 = vmatprep.subr.bf16.mxu0 0
  %4815 = vmatpush1.bf16.msra.mxu0 %v4208
  %4816 = vmatprep.subr.bf16.mxu0 0
  %4817 = vmatpush1.bf16.msra.mxu0 %v4205
  %4818 = vmatprep.subr.bf16.mxu0 0
  %4819 = vmatpush2.bf16.msra.mxu0 0
  %4820 = vmatprep.subr.bf16.mxu0 0
  %4821 = vmatpush2.bf16.msra.mxu0 0
  %4822 = vmatprep.subr.bf16.mxu0 0
  %4823 = vmatpush2.bf16.msra.mxu0 0
  %4824 = vmatprep.subr.bf16.mxu0 0
  %4825 = vmatpush2.bf16.msra.mxu0 0
  %4826 = vmatprep.subr.bf16.mxu0 0
  %4827 = vmatpush2.bf16.msra.mxu0 0
  %4828 = vmatprep.subr.bf16.mxu0 0
  %4829 = vmatpush2.bf16.msra.mxu0 0
  %4830 = vmatprep.subr.bf16.mxu0 0
  %4831 = vmatpush2.bf16.msra.mxu0 0
  %4832 = vmatprep.subr.bf16.mxu0 0
  %4833 = vmatpush2.bf16.msra.mxu0 0
  %4834 = vmatprep.mubr.bf16.mxu0 0
  %4835 = vmatmul.mubr.bf16.gmra.mxu0 %v4760
  %v4836 = vpop.f32.mrf.mxu0
  %v4837 = vadd.f32 0.0, %v4836
  %v4838 = vpop.f32.mrf.mxu0
  %v4839 = vpop.f32.mrf.mxu0
  %v4840 = vpop.f32.mrf.mxu0
  %4841 = vdwg.mxu0
  %v4842 = vadd.f32 %v4077, %v4796
  %v4843 = vadd.f32 %v4079, %v4798
  %v4844 = vxor.u32 %v4842, 2147483648
  %v4845 = vxor.u32 %v4843, 2147483648
  %v4846 = vmul.f32 %v4844, 1.442695
  %v4847 = vpow.pop %v4846
  %v4848 = vmul.f32 %v4845, 1.442695
  %v4849 = vpow.pop %v4848
  %v4850 = vadd.f32 %v4847, 1.0
  %v4851 = vadd.f32 %v4849, 1.0
  %v4852 = vrcp.pop %v4850
  %v4853 = vmul.f32 1.0, %v4852
  %v4854 = vrcp.pop %v4851
  %v4855 = vmul.f32 1.0, %v4854
  %v4856 = vadd.f32 %v4837, %v405
  %v4857 = vmul.f32 %v4853, %v4856
  %v4858 = vadd.f32 %v4118, %v4857
  %v4859 = vtanh.pop %v4858
  %v4860 = vsub.f32 1.0, %v4855
  %v4861 = vmul.f32 %v4860, %v4859
  %v4862 = vmul.f32 %v4855, %v4693
  %v4863 = vadd.f32 %v4861, %v4862
  %v4865 = vcombine.high %v4863, %v4863
  %v4867 = vunpack.c.l.s4 1966171168
  %v4868 = vunpack.c.0.s8 %v4867
  %v4869 = vlaneseq
  %v4870 = vshrl.u32 %v4869, 7
  %v4871 = vsub.s32 %v4868, %v4870
  %v4872 = vrot.slane %v4863, %v4871
  %v4874 = vunpack.c.l.s4 1966171168
  %v4875 = vunpack.c.0.s8 %v4874
  %v4876 = vlaneseq
  %v4877 = vshrl.u32 %v4876, 7
  %v4878 = vsub.s32 %v4875, %v4877
  %v4879 = vrot.slane %v4865, %v4878
  %v4880 = vcombine.high %v4872, %v4872
  %v4881 = vcombine.high %v4879, %v4879
  %v4883 = vunpack.c.l.s4 1966171168
  %v4884 = vunpack.c.0.s8 %v4883
  %v4885 = vlaneseq
  %v4886 = vshrl.u32 %v4885, 7
  %v4887 = vsub.s32 %v4884, %v4886
  %v4888 = vrot.slane %v4872, %v4887
  %v4890 = vunpack.c.l.s4 1966171168
  %v4891 = vunpack.c.0.s8 %v4890
  %v4892 = vlaneseq
  %v4893 = vshrl.u32 %v4892, 7
  %v4894 = vsub.s32 %v4891, %v4893
  %v4895 = vrot.slane %v4879, %v4894
  %v4897 = vunpack.c.l.s4 1966171168
  %v4898 = vunpack.c.0.s8 %v4897
  %v4899 = vlaneseq
  %v4900 = vshrl.u32 %v4899, 7
  %v4901 = vsub.s32 %v4898, %v4900
  %v4902 = vrot.slane %v4880, %v4901
  %v4904 = vunpack.c.l.s4 1966171168
  %v4905 = vunpack.c.0.s8 %v4904
  %v4906 = vlaneseq
  %v4907 = vshrl.u32 %v4906, 7
  %v4908 = vsub.s32 %v4905, %v4907
  %v4909 = vrot.slane %v4881, %v4908
  %v4910 = vcombine.high %v4888, %v4888
  %v4911 = vcombine.high %v4895, %v4895
  %v4912 = vcombine.high %v4902, %v4902
  %v4913 = vcombine.high %v4909, %v4909
  %4922 = vst [vmem:[#allocation3 + $0x3] sm:$0x1] %v4888
  %4923 = vst [vmem:[#allocation3 + $0xb] sm:$0x1] %v4902
  %4924 = vst [vmem:[#allocation3 + $0x13] sm:$0x1] %v4910
  %4925 = vst [vmem:[#allocation3 + $0x1b] sm:$0x1] %v4912
  %4926 = vst [vmem:[#allocation3 + $0x23] sm:$0x1] %v4895
  %4927 = vst [vmem:[#allocation3 + $0x2b] sm:$0x1] %v4909
  %4928 = vst [vmem:[#allocation3 + $0x33] sm:$0x1] %v4911
  %4929 = vst [vmem:[#allocation3 + $0x3b] sm:$0x1] %v4913
  %v4930 = vpack.c.bf16 %v4863, %v4863
  %4931 = vmatprep.subr.bf16.mxu0 %v4225
  %4932 = vmatpush1.bf16.msra.mxu0 %v4224
  %4933 = vmatprep.subr.bf16.mxu0 %v4222
  %4934 = vmatpush1.bf16.msra.mxu0 %v4221
  %4935 = vmatprep.subr.bf16.mxu0 %v4219
  %4936 = vmatpush1.bf16.msra.mxu0 %v4218
  %4937 = vmatprep.subr.bf16.mxu0 %v4216
  %4938 = vmatpush1.bf16.msra.mxu0 %v4215
  %4939 = vmatprep.subr.bf16.mxu0 %v4213
  %4940 = vmatpush1.bf16.msra.mxu0 %v4212
  %4941 = vmatprep.subr.bf16.mxu0 %v4210
  %4942 = vmatpush1.bf16.msra.mxu0 %v4209
  %4943 = vmatprep.subr.bf16.mxu0 %v4207
  %4944 = vmatpush1.bf16.msra.mxu0 %v4206
  %4945 = vmatprep.subr.bf16.mxu0 %v4204
  %4946 = vmatpush1.bf16.msra.mxu0 %v4203
  %4947 = vmatprep.subr.bf16.mxu0 0
  %4948 = vmatpush2.bf16.msra.mxu0 0
  %4949 = vmatprep.subr.bf16.mxu0 0
  %4950 = vmatpush2.bf16.msra.mxu0 0
  %4951 = vmatprep.subr.bf16.mxu0 0
  %4952 = vmatpush2.bf16.msra.mxu0 0
  %4953 = vmatprep.subr.bf16.mxu0 0
  %4954 = vmatpush2.bf16.msra.mxu0 0
  %4955 = vmatprep.subr.bf16.mxu0 0
  %4956 = vmatpush2.bf16.msra.mxu0 0
  %4957 = vmatprep.subr.bf16.mxu0 0
  %4958 = vmatpush2.bf16.msra.mxu0 0
  %4959 = vmatprep.subr.bf16.mxu0 0
  %4960 = vmatpush2.bf16.msra.mxu0 0
  %4961 = vmatprep.subr.bf16.mxu0 0
  %4962 = vmatpush2.bf16.msra.mxu0 0
  %4963 = vmatprep.mubr.bf16.mxu0 0
  %4964 = vmatmul.mubr.bf16.gmra.mxu0 %v4930
  %v4965 = vpop.f32.mrf.mxu0
  %v4966 = vadd.f32 0.0, %v4965
  %v4967 = vpop.f32.mrf.mxu0
  %v4968 = vadd.f32 0.0, %v4967
  %v4969 = vpop.f32.mrf.mxu0
  %v4970 = vpop.f32.mrf.mxu0
  %4971 = vdwg.mxu0
  %4972 = vmatprep.subr.bf16.mxu0 0
  %4973 = vmatpush1.bf16.msra.mxu0 %v4226
  %4974 = vmatprep.subr.bf16.mxu0 0
  %4975 = vmatpush1.bf16.msra.mxu0 %v4223
  %4976 = vmatprep.subr.bf16.mxu0 0
  %4977 = vmatpush1.bf16.msra.mxu0 %v4220
  %4978 = vmatprep.subr.bf16.mxu0 0
  %4979 = vmatpush1.bf16.msra.mxu0 %v4217
  %4980 = vmatprep.subr.bf16.mxu0 0
  %4981 = vmatpush1.bf16.msra.mxu0 %v4214
  %4982 = vmatprep.subr.bf16.mxu0 0
  %4983 = vmatpush1.bf16.msra.mxu0 %v4211
  %4984 = vmatprep.subr.bf16.mxu0 0
  %4985 = vmatpush1.bf16.msra.mxu0 %v4208
  %4986 = vmatprep.subr.bf16.mxu0 0
  %4987 = vmatpush1.bf16.msra.mxu0 %v4205
  %4988 = vmatprep.subr.bf16.mxu0 0
  %4989 = vmatpush2.bf16.msra.mxu0 0
  %4990 = vmatprep.subr.bf16.mxu0 0
  %4991 = vmatpush2.bf16.msra.mxu0 0
  %4992 = vmatprep.subr.bf16.mxu0 0
  %4993 = vmatpush2.bf16.msra.mxu0 0
  %4994 = vmatprep.subr.bf16.mxu0 0
  %4995 = vmatpush2.bf16.msra.mxu0 0
  %4996 = vmatprep.subr.bf16.mxu0 0
  %4997 = vmatpush2.bf16.msra.mxu0 0
  %4998 = vmatprep.subr.bf16.mxu0 0
  %4999 = vmatpush2.bf16.msra.mxu0 0
  %5000 = vmatprep.subr.bf16.mxu0 0
  %5001 = vmatpush2.bf16.msra.mxu0 0
  %5002 = vmatprep.subr.bf16.mxu0 0
  %5003 = vmatpush2.bf16.msra.mxu0 0
  %5004 = vmatprep.mubr.bf16.mxu0 0
  %5005 = vmatmul.mubr.bf16.gmra.mxu0 %v4930
  %v5006 = vpop.f32.mrf.mxu0
  %v5007 = vadd.f32 0.0, %v5006
  %v5008 = vpop.f32.mrf.mxu0
  %v5009 = vpop.f32.mrf.mxu0
  %v5010 = vpop.f32.mrf.mxu0
  %5011 = vdwg.mxu0
  %v5012 = vadd.f32 %v4077, %v4966
  %v5013 = vadd.f32 %v4079, %v4968
  %v5014 = vxor.u32 %v5012, 2147483648
  %v5015 = vxor.u32 %v5013, 2147483648
  %v5016 = vmul.f32 %v5014, 1.442695
  %v5017 = vpow.pop %v5016
  %v5018 = vmul.f32 %v5015, 1.442695
  %v5019 = vpow.pop %v5018
  %v5020 = vadd.f32 %v5017, 1.0
  %v5021 = vadd.f32 %v5019, 1.0
  %v5022 = vrcp.pop %v5020
  %v5023 = vmul.f32 1.0, %v5022
  %v5024 = vrcp.pop %v5021
  %v5025 = vmul.f32 1.0, %v5024
  %v5026 = vadd.f32 %v5007, %v405
  %v5027 = vmul.f32 %v5023, %v5026
  %v5028 = vadd.f32 %v4118, %v5027
  %v5029 = vtanh.pop %v5028
  %v5030 = vsub.f32 1.0, %v5025
  %v5031 = vmul.f32 %v5030, %v5029
  %v5032 = vmul.f32 %v5025, %v4863
  %v5033 = vadd.f32 %v5031, %v5032
  %v5035 = vcombine.high %v5033, %v5033
  %v5037 = vunpack.c.l.s4 1966171168
  %v5038 = vunpack.c.0.s8 %v5037
  %v5039 = vlaneseq
  %v5040 = vshrl.u32 %v5039, 7
  %v5041 = vsub.s32 %v5038, %v5040
  %v5042 = vrot.slane %v5033, %v5041
  %v5044 = vunpack.c.l.s4 1966171168
  %v5045 = vunpack.c.0.s8 %v5044
  %v5046 = vlaneseq
  %v5047 = vshrl.u32 %v5046, 7
  %v5048 = vsub.s32 %v5045, %v5047
  %v5049 = vrot.slane %v5035, %v5048
  %v5050 = vcombine.high %v5042, %v5042
  %v5051 = vcombine.high %v5049, %v5049
  %v5053 = vunpack.c.l.s4 1966171168
  %v5054 = vunpack.c.0.s8 %v5053
  %v5055 = vlaneseq
  %v5056 = vshrl.u32 %v5055, 7
  %v5057 = vsub.s32 %v5054, %v5056
  %v5058 = vrot.slane %v5042, %v5057
  %v5060 = vunpack.c.l.s4 1966171168
  %v5061 = vunpack.c.0.s8 %v5060
  %v5062 = vlaneseq
  %v5063 = vshrl.u32 %v5062, 7
  %v5064 = vsub.s32 %v5061, %v5063
  %v5065 = vrot.slane %v5049, %v5064
  %v5067 = vunpack.c.l.s4 1966171168
  %v5068 = vunpack.c.0.s8 %v5067
  %v5069 = vlaneseq
  %v5070 = vshrl.u32 %v5069, 7
  %v5071 = vsub.s32 %v5068, %v5070
  %v5072 = vrot.slane %v5050, %v5071
  %v5074 = vunpack.c.l.s4 1966171168
  %v5075 = vunpack.c.0.s8 %v5074
  %v5076 = vlaneseq
  %v5077 = vshrl.u32 %v5076, 7
  %v5078 = vsub.s32 %v5075, %v5077
  %v5079 = vrot.slane %v5051, %v5078
  %v5080 = vcombine.high %v5058, %v5058
  %v5081 = vcombine.high %v5065, %v5065
  %v5082 = vcombine.high %v5072, %v5072
  %v5083 = vcombine.high %v5079, %v5079
  %5092 = vst [vmem:[#allocation3 + $0x4] sm:$0x1] %v5058
  %5093 = vst [vmem:[#allocation3 + $0xc] sm:$0x1] %v5072
  %5094 = vst [vmem:[#allocation3 + $0x14] sm:$0x1] %v5080
  %5095 = vst [vmem:[#allocation3 + $0x1c] sm:$0x1] %v5082
  %5096 = vst [vmem:[#allocation3 + $0x24] sm:$0x1] %v5065
  %5097 = vst [vmem:[#allocation3 + $0x2c] sm:$0x1] %v5079
  %5098 = vst [vmem:[#allocation3 + $0x34] sm:$0x1] %v5081
  %5099 = vst [vmem:[#allocation3 + $0x3c] sm:$0x1] %v5083
  %v5100 = vpack.c.bf16 %v5033, %v5033
  %5101 = vmatprep.subr.bf16.mxu0 %v4225
  %5102 = vmatpush1.bf16.msra.mxu0 %v4224
  %5103 = vmatprep.subr.bf16.mxu0 %v4222
  %5104 = vmatpush1.bf16.msra.mxu0 %v4221
  %5105 = vmatprep.subr.bf16.mxu0 %v4219
  %5106 = vmatpush1.bf16.msra.mxu0 %v4218
  %5107 = vmatprep.subr.bf16.mxu0 %v4216
  %5108 = vmatpush1.bf16.msra.mxu0 %v4215
  %5109 = vmatprep.subr.bf16.mxu0 %v4213
  %5110 = vmatpush1.bf16.msra.mxu0 %v4212
  %5111 = vmatprep.subr.bf16.mxu0 %v4210
  %5112 = vmatpush1.bf16.msra.mxu0 %v4209
  %5113 = vmatprep.subr.bf16.mxu0 %v4207
  %5114 = vmatpush1.bf16.msra.mxu0 %v4206
  %5115 = vmatprep.subr.bf16.mxu0 %v4204
  %5116 = vmatpush1.bf16.msra.mxu0 %v4203
  %5117 = vmatprep.subr.bf16.mxu0 0
  %5118 = vmatpush2.bf16.msra.mxu0 0
  %5119 = vmatprep.subr.bf16.mxu0 0
  %5120 = vmatpush2.bf16.msra.mxu0 0
  %5121 = vmatprep.subr.bf16.mxu0 0
  %5122 = vmatpush2.bf16.msra.mxu0 0
  %5123 = vmatprep.subr.bf16.mxu0 0
  %5124 = vmatpush2.bf16.msra.mxu0 0
  %5125 = vmatprep.subr.bf16.mxu0 0
  %5126 = vmatpush2.bf16.msra.mxu0 0
  %5127 = vmatprep.subr.bf16.mxu0 0
  %5128 = vmatpush2.bf16.msra.mxu0 0
  %5129 = vmatprep.subr.bf16.mxu0 0
  %5130 = vmatpush2.bf16.msra.mxu0 0
  %5131 = vmatprep.subr.bf16.mxu0 0
  %5132 = vmatpush2.bf16.msra.mxu0 0
  %5133 = vmatprep.mubr.bf16.mxu0 0
  %5134 = vmatmul.mubr.bf16.gmra.mxu0 %v5100
  %v5135 = vpop.f32.mrf.mxu0
  %v5136 = vadd.f32 0.0, %v5135
  %v5137 = vpop.f32.mrf.mxu0
  %v5138 = vadd.f32 0.0, %v5137
  %v5139 = vpop.f32.mrf.mxu0
  %v5140 = vpop.f32.mrf.mxu0
  %5141 = vdwg.mxu0
  %5142 = vmatprep.subr.bf16.mxu0 0
  %5143 = vmatpush1.bf16.msra.mxu0 %v4226
  %5144 = vmatprep.subr.bf16.mxu0 0
  %5145 = vmatpush1.bf16.msra.mxu0 %v4223
  %5146 = vmatprep.subr.bf16.mxu0 0
  %5147 = vmatpush1.bf16.msra.mxu0 %v4220
  %5148 = vmatprep.subr.bf16.mxu0 0
  %5149 = vmatpush1.bf16.msra.mxu0 %v4217
  %5150 = vmatprep.subr.bf16.mxu0 0
  %5151 = vmatpush1.bf16.msra.mxu0 %v4214
  %5152 = vmatprep.subr.bf16.mxu0 0
  %5153 = vmatpush1.bf16.msra.mxu0 %v4211
  %5154 = vmatprep.subr.bf16.mxu0 0
  %5155 = vmatpush1.bf16.msra.mxu0 %v4208
  %5156 = vmatprep.subr.bf16.mxu0 0
  %5157 = vmatpush1.bf16.msra.mxu0 %v4205
  %5158 = vmatprep.subr.bf16.mxu0 0
  %5159 = vmatpush2.bf16.msra.mxu0 0
  %5160 = vmatprep.subr.bf16.mxu0 0
  %5161 = vmatpush2.bf16.msra.mxu0 0
  %5162 = vmatprep.subr.bf16.mxu0 0
  %5163 = vmatpush2.bf16.msra.mxu0 0
  %5164 = vmatprep.subr.bf16.mxu0 0
  %5165 = vmatpush2.bf16.msra.mxu0 0
  %5166 = vmatprep.subr.bf16.mxu0 0
  %5167 = vmatpush2.bf16.msra.mxu0 0
  %5168 = vmatprep.subr.bf16.mxu0 0
  %5169 = vmatpush2.bf16.msra.mxu0 0
  %5170 = vmatprep.subr.bf16.mxu0 0
  %5171 = vmatpush2.bf16.msra.mxu0 0
  %5172 = vmatprep.subr.bf16.mxu0 0
  %5173 = vmatpush2.bf16.msra.mxu0 0
  %5174 = vmatprep.mubr.bf16.mxu0 0
  %5175 = vmatmul.mubr.bf16.gmra.mxu0 %v5100
  %v5176 = vpop.f32.mrf.mxu0
  %v5177 = vadd.f32 0.0, %v5176
  %v5178 = vpop.f32.mrf.mxu0
  %v5179 = vpop.f32.mrf.mxu0
  %v5180 = vpop.f32.mrf.mxu0
  %5181 = vdwg.mxu0
  %v5182 = vadd.f32 %v4077, %v5136
  %v5183 = vadd.f32 %v4079, %v5138
  %v5184 = vxor.u32 %v5182, 2147483648
  %v5185 = vxor.u32 %v5183, 2147483648
  %v5186 = vmul.f32 %v5184, 1.442695
  %v5187 = vpow.pop %v5186
  %v5188 = vmul.f32 %v5185, 1.442695
  %v5189 = vpow.pop %v5188
  %v5190 = vadd.f32 %v5187, 1.0
  %v5191 = vadd.f32 %v5189, 1.0
  %v5192 = vrcp.pop %v5190
  %v5193 = vmul.f32 1.0, %v5192
  %v5194 = vrcp.pop %v5191
  %v5195 = vmul.f32 1.0, %v5194
  %v5196 = vadd.f32 %v5177, %v405
  %v5197 = vmul.f32 %v5193, %v5196
  %v5198 = vadd.f32 %v4118, %v5197
  %v5199 = vtanh.pop %v5198
  %v5200 = vsub.f32 1.0, %v5195
  %v5201 = vmul.f32 %v5200, %v5199
  %v5202 = vmul.f32 %v5195, %v5033
  %v5203 = vadd.f32 %v5201, %v5202
  %v5205 = vcombine.high %v5203, %v5203
  %v5207 = vunpack.c.l.s4 1966171168
  %v5208 = vunpack.c.0.s8 %v5207
  %v5209 = vlaneseq
  %v5210 = vshrl.u32 %v5209, 7
  %v5211 = vsub.s32 %v5208, %v5210
  %v5212 = vrot.slane %v5203, %v5211
  %v5214 = vunpack.c.l.s4 1966171168
  %v5215 = vunpack.c.0.s8 %v5214
  %v5216 = vlaneseq
  %v5217 = vshrl.u32 %v5216, 7
  %v5218 = vsub.s32 %v5215, %v5217
  %v5219 = vrot.slane %v5205, %v5218
  %v5220 = vcombine.high %v5212, %v5212
  %v5221 = vcombine.high %v5219, %v5219
  %v5223 = vunpack.c.l.s4 1966171168
  %v5224 = vunpack.c.0.s8 %v5223
  %v5225 = vlaneseq
  %v5226 = vshrl.u32 %v5225, 7
  %v5227 = vsub.s32 %v5224, %v5226
  %v5228 = vrot.slane %v5212, %v5227
  %v5230 = vunpack.c.l.s4 1966171168
  %v5231 = vunpack.c.0.s8 %v5230
  %v5232 = vlaneseq
  %v5233 = vshrl.u32 %v5232, 7
  %v5234 = vsub.s32 %v5231, %v5233
  %v5235 = vrot.slane %v5219, %v5234
  %v5237 = vunpack.c.l.s4 1966171168
  %v5238 = vunpack.c.0.s8 %v5237
  %v5239 = vlaneseq
  %v5240 = vshrl.u32 %v5239, 7
  %v5241 = vsub.s32 %v5238, %v5240
  %v5242 = vrot.slane %v5220, %v5241
  %v5244 = vunpack.c.l.s4 1966171168
  %v5245 = vunpack.c.0.s8 %v5244
  %v5246 = vlaneseq
  %v5247 = vshrl.u32 %v5246, 7
  %v5248 = vsub.s32 %v5245, %v5247
  %v5249 = vrot.slane %v5221, %v5248
  %v5250 = vcombine.high %v5228, %v5228
  %v5251 = vcombine.high %v5235, %v5235
  %v5252 = vcombine.high %v5242, %v5242
  %v5253 = vcombine.high %v5249, %v5249
  %5262 = vst [vmem:[#allocation3 + $0x5] sm:$0x1] %v5228
  %5263 = vst [vmem:[#allocation3 + $0xd] sm:$0x1] %v5242
  %5264 = vst [vmem:[#allocation3 + $0x15] sm:$0x1] %v5250
  %5265 = vst [vmem:[#allocation3 + $0x1d] sm:$0x1] %v5252
  %5266 = vst [vmem:[#allocation3 + $0x25] sm:$0x1] %v5235
  %5267 = vst [vmem:[#allocation3 + $0x2d] sm:$0x1] %v5249
  %5268 = vst [vmem:[#allocation3 + $0x35] sm:$0x1] %v5251
  %5269 = vst [vmem:[#allocation3 + $0x3d] sm:$0x1] %v5253
  %v5270 = vpack.c.bf16 %v5203, %v5203
  %5271 = vmatprep.subr.bf16.mxu0 %v4225
  %5272 = vmatpush1.bf16.msra.mxu0 %v4224
  %5273 = vmatprep.subr.bf16.mxu0 %v4222
  %5274 = vmatpush1.bf16.msra.mxu0 %v4221
  %5275 = vmatprep.subr.bf16.mxu0 %v4219
  %5276 = vmatpush1.bf16.msra.mxu0 %v4218
  %5277 = vmatprep.subr.bf16.mxu0 %v4216
  %5278 = vmatpush1.bf16.msra.mxu0 %v4215
  %5279 = vmatprep.subr.bf16.mxu0 %v4213
  %5280 = vmatpush1.bf16.msra.mxu0 %v4212
  %5281 = vmatprep.subr.bf16.mxu0 %v4210
  %5282 = vmatpush1.bf16.msra.mxu0 %v4209
  %5283 = vmatprep.subr.bf16.mxu0 %v4207
  %5284 = vmatpush1.bf16.msra.mxu0 %v4206
  %5285 = vmatprep.subr.bf16.mxu0 %v4204
  %5286 = vmatpush1.bf16.msra.mxu0 %v4203
  %5287 = vmatprep.subr.bf16.mxu0 0
  %5288 = vmatpush2.bf16.msra.mxu0 0
  %5289 = vmatprep.subr.bf16.mxu0 0
  %5290 = vmatpush2.bf16.msra.mxu0 0
  %5291 = vmatprep.subr.bf16.mxu0 0
  %5292 = vmatpush2.bf16.msra.mxu0 0
  %5293 = vmatprep.subr.bf16.mxu0 0
  %5294 = vmatpush2.bf16.msra.mxu0 0
  %5295 = vmatprep.subr.bf16.mxu0 0
  %5296 = vmatpush2.bf16.msra.mxu0 0
  %5297 = vmatprep.subr.bf16.mxu0 0
  %5298 = vmatpush2.bf16.msra.mxu0 0
  %5299 = vmatprep.subr.bf16.mxu0 0
  %5300 = vmatpush2.bf16.msra.mxu0 0
  %5301 = vmatprep.subr.bf16.mxu0 0
  %5302 = vmatpush2.bf16.msra.mxu0 0
  %5303 = vmatprep.mubr.bf16.mxu0 0
  %5304 = vmatmul.mubr.bf16.gmra.mxu0 %v5270
  %v5305 = vpop.f32.mrf.mxu0
  %v5306 = vadd.f32 0.0, %v5305
  %v5307 = vpop.f32.mrf.mxu0
  %v5308 = vadd.f32 0.0, %v5307
  %v5309 = vpop.f32.mrf.mxu0
  %v5310 = vpop.f32.mrf.mxu0
  %5311 = vdwg.mxu0
  %5312 = vmatprep.subr.bf16.mxu0 0
  %5313 = vmatpush1.bf16.msra.mxu0 %v4226
  %5314 = vmatprep.subr.bf16.mxu0 0
  %5315 = vmatpush1.bf16.msra.mxu0 %v4223
  %5316 = vmatprep.subr.bf16.mxu0 0
  %5317 = vmatpush1.bf16.msra.mxu0 %v4220
  %5318 = vmatprep.subr.bf16.mxu0 0
  %5319 = vmatpush1.bf16.msra.mxu0 %v4217
  %5320 = vmatprep.subr.bf16.mxu0 0
  %5321 = vmatpush1.bf16.msra.mxu0 %v4214
  %5322 = vmatprep.subr.bf16.mxu0 0
  %5323 = vmatpush1.bf16.msra.mxu0 %v4211
  %5324 = vmatprep.subr.bf16.mxu0 0
  %5325 = vmatpush1.bf16.msra.mxu0 %v4208
  %5326 = vmatprep.subr.bf16.mxu0 0
  %5327 = vmatpush1.bf16.msra.mxu0 %v4205
  %5328 = vmatprep.subr.bf16.mxu0 0
  %5329 = vmatpush2.bf16.msra.mxu0 0
  %5330 = vmatprep.subr.bf16.mxu0 0
  %5331 = vmatpush2.bf16.msra.mxu0 0
  %5332 = vmatprep.subr.bf16.mxu0 0
  %5333 = vmatpush2.bf16.msra.mxu0 0
  %5334 = vmatprep.subr.bf16.mxu0 0
  %5335 = vmatpush2.bf16.msra.mxu0 0
  %5336 = vmatprep.subr.bf16.mxu0 0
  %5337 = vmatpush2.bf16.msra.mxu0 0
  %5338 = vmatprep.subr.bf16.mxu0 0
  %5339 = vmatpush2.bf16.msra.mxu0 0
  %5340 = vmatprep.subr.bf16.mxu0 0
  %5341 = vmatpush2.bf16.msra.mxu0 0
  %5342 = vmatprep.subr.bf16.mxu0 0
  %5343 = vmatpush2.bf16.msra.mxu0 0
  %5344 = vmatprep.mubr.bf16.mxu0 0
  %5345 = vmatmul.mubr.bf16.gmra.mxu0 %v5270
  %v5346 = vpop.f32.mrf.mxu0
  %v5347 = vadd.f32 0.0, %v5346
  %v5348 = vpop.f32.mrf.mxu0
  %v5349 = vpop.f32.mrf.mxu0
  %v5350 = vpop.f32.mrf.mxu0
  %5351 = vdwg.mxu0
  %v5352 = vadd.f32 %v4077, %v5306
  %v5353 = vadd.f32 %v4079, %v5308
  %v5354 = vxor.u32 %v5352, 2147483648
  %v5355 = vxor.u32 %v5353, 2147483648
  %v5356 = vmul.f32 %v5354, 1.442695
  %v5357 = vpow.pop %v5356
  %v5358 = vmul.f32 %v5355, 1.442695
  %v5359 = vpow.pop %v5358
  %v5360 = vadd.f32 %v5357, 1.0
  %v5361 = vadd.f32 %v5359, 1.0
  %v5362 = vrcp.pop %v5360
  %v5363 = vmul.f32 1.0, %v5362
  %v5364 = vrcp.pop %v5361
  %v5365 = vmul.f32 1.0, %v5364
  %v5366 = vadd.f32 %v5347, %v405
  %v5367 = vmul.f32 %v5363, %v5366
  %v5368 = vadd.f32 %v4118, %v5367
  %v5369 = vtanh.pop %v5368
  %v5370 = vsub.f32 1.0, %v5365
  %v5371 = vmul.f32 %v5370, %v5369
  %v5372 = vmul.f32 %v5365, %v5203
  %v5373 = vadd.f32 %v5371, %v5372
  %v5375 = vcombine.high %v5373, %v5373
  %v5377 = vunpack.c.l.s4 1966171168
  %v5378 = vunpack.c.0.s8 %v5377
  %v5379 = vlaneseq
  %v5380 = vshrl.u32 %v5379, 7
  %v5381 = vsub.s32 %v5378, %v5380
  %v5382 = vrot.slane %v5373, %v5381
  %v5384 = vunpack.c.l.s4 1966171168
  %v5385 = vunpack.c.0.s8 %v5384
  %v5386 = vlaneseq
  %v5387 = vshrl.u32 %v5386, 7
  %v5388 = vsub.s32 %v5385, %v5387
  %v5389 = vrot.slane %v5375, %v5388
  %v5390 = vcombine.high %v5382, %v5382
  %v5391 = vcombine.high %v5389, %v5389
  %v5393 = vunpack.c.l.s4 1966171168
  %v5394 = vunpack.c.0.s8 %v5393
  %v5395 = vlaneseq
  %v5396 = vshrl.u32 %v5395, 7
  %v5397 = vsub.s32 %v5394, %v5396
  %v5398 = vrot.slane %v5382, %v5397
  %v5400 = vunpack.c.l.s4 1966171168
  %v5401 = vunpack.c.0.s8 %v5400
  %v5402 = vlaneseq
  %v5403 = vshrl.u32 %v5402, 7
  %v5404 = vsub.s32 %v5401, %v5403
  %v5405 = vrot.slane %v5389, %v5404
  %v5407 = vunpack.c.l.s4 1966171168
  %v5408 = vunpack.c.0.s8 %v5407
  %v5409 = vlaneseq
  %v5410 = vshrl.u32 %v5409, 7
  %v5411 = vsub.s32 %v5408, %v5410
  %v5412 = vrot.slane %v5390, %v5411
  %v5414 = vunpack.c.l.s4 1966171168
  %v5415 = vunpack.c.0.s8 %v5414
  %v5416 = vlaneseq
  %v5417 = vshrl.u32 %v5416, 7
  %v5418 = vsub.s32 %v5415, %v5417
  %v5419 = vrot.slane %v5391, %v5418
  %v5420 = vcombine.high %v5398, %v5398
  %v5421 = vcombine.high %v5405, %v5405
  %v5422 = vcombine.high %v5412, %v5412
  %v5423 = vcombine.high %v5419, %v5419
  %5432 = vst [vmem:[#allocation3 + $0x6] sm:$0x1] %v5398
  %5433 = vst [vmem:[#allocation3 + $0xe] sm:$0x1] %v5412
  %5434 = vst [vmem:[#allocation3 + $0x16] sm:$0x1] %v5420
  %5435 = vst [vmem:[#allocation3 + $0x1e] sm:$0x1] %v5422
  %5436 = vst [vmem:[#allocation3 + $0x26] sm:$0x1] %v5405
  %5437 = vst [vmem:[#allocation3 + $0x2e] sm:$0x1] %v5419
  %5438 = vst [vmem:[#allocation3 + $0x36] sm:$0x1] %v5421
  %5439 = vst [vmem:[#allocation3 + $0x3e] sm:$0x1] %v5423
  %v5440 = vpack.c.bf16 %v5373, %v5373
  %5441 = vmatprep.subr.bf16.mxu0 %v4225
  %5442 = vmatpush1.bf16.msra.mxu0 %v4224
  %5443 = vmatprep.subr.bf16.mxu0 %v4222
  %5444 = vmatpush1.bf16.msra.mxu0 %v4221
  %5445 = vmatprep.subr.bf16.mxu0 %v4219
  %5446 = vmatpush1.bf16.msra.mxu0 %v4218
  %5447 = vmatprep.subr.bf16.mxu0 %v4216
  %5448 = vmatpush1.bf16.msra.mxu0 %v4215
  %5449 = vmatprep.subr.bf16.mxu0 %v4213
  %5450 = vmatpush1.bf16.msra.mxu0 %v4212
  %5451 = vmatprep.subr.bf16.mxu0 %v4210
  %5452 = vmatpush1.bf16.msra.mxu0 %v4209
  %5453 = vmatprep.subr.bf16.mxu0 %v4207
  %5454 = vmatpush1.bf16.msra.mxu0 %v4206
  %5455 = vmatprep.subr.bf16.mxu0 %v4204
  %5456 = vmatpush1.bf16.msra.mxu0 %v4203
  %5457 = vmatprep.subr.bf16.mxu0 0
  %5458 = vmatpush2.bf16.msra.mxu0 0
  %5459 = vmatprep.subr.bf16.mxu0 0
  %5460 = vmatpush2.bf16.msra.mxu0 0
  %5461 = vmatprep.subr.bf16.mxu0 0
  %5462 = vmatpush2.bf16.msra.mxu0 0
  %5463 = vmatprep.subr.bf16.mxu0 0
  %5464 = vmatpush2.bf16.msra.mxu0 0
  %5465 = vmatprep.subr.bf16.mxu0 0
  %5466 = vmatpush2.bf16.msra.mxu0 0
  %5467 = vmatprep.subr.bf16.mxu0 0
  %5468 = vmatpush2.bf16.msra.mxu0 0
  %5469 = vmatprep.subr.bf16.mxu0 0
  %5470 = vmatpush2.bf16.msra.mxu0 0
  %5471 = vmatprep.subr.bf16.mxu0 0
  %5472 = vmatpush2.bf16.msra.mxu0 0
  %5473 = vmatprep.mubr.bf16.mxu0 0
  %5474 = vmatmul.mubr.bf16.gmra.mxu0 %v5440
  %v5475 = vpop.f32.mrf.mxu0
  %v5476 = vadd.f32 0.0, %v5475
  %v5477 = vpop.f32.mrf.mxu0
  %v5478 = vadd.f32 0.0, %v5477
  %v5479 = vpop.f32.mrf.mxu0
  %v5480 = vpop.f32.mrf.mxu0
  %5481 = vdwg.mxu0
  %5482 = vmatprep.subr.bf16.mxu0 0
  %5483 = vmatpush1.bf16.msra.mxu0 %v4226
  %5484 = vmatprep.subr.bf16.mxu0 0
  %5485 = vmatpush1.bf16.msra.mxu0 %v4223
  %5486 = vmatprep.subr.bf16.mxu0 0
  %5487 = vmatpush1.bf16.msra.mxu0 %v4220
  %5488 = vmatprep.subr.bf16.mxu0 0
  %5489 = vmatpush1.bf16.msra.mxu0 %v4217
  %5490 = vmatprep.subr.bf16.mxu0 0
  %5491 = vmatpush1.bf16.msra.mxu0 %v4214
  %5492 = vmatprep.subr.bf16.mxu0 0
  %5493 = vmatpush1.bf16.msra.mxu0 %v4211
  %5494 = vmatprep.subr.bf16.mxu0 0
  %5495 = vmatpush1.bf16.msra.mxu0 %v4208
  %5496 = vmatprep.subr.bf16.mxu0 0
  %5497 = vmatpush1.bf16.msra.mxu0 %v4205
  %5498 = vmatprep.subr.bf16.mxu0 0
  %5499 = vmatpush2.bf16.msra.mxu0 0
  %5500 = vmatprep.subr.bf16.mxu0 0
  %5501 = vmatpush2.bf16.msra.mxu0 0
  %5502 = vmatprep.subr.bf16.mxu0 0
  %5503 = vmatpush2.bf16.msra.mxu0 0
  %5504 = vmatprep.subr.bf16.mxu0 0
  %5505 = vmatpush2.bf16.msra.mxu0 0
  %5506 = vmatprep.subr.bf16.mxu0 0
  %5507 = vmatpush2.bf16.msra.mxu0 0
  %5508 = vmatprep.subr.bf16.mxu0 0
  %5509 = vmatpush2.bf16.msra.mxu0 0
  %5510 = vmatprep.subr.bf16.mxu0 0
  %5511 = vmatpush2.bf16.msra.mxu0 0
  %5512 = vmatprep.subr.bf16.mxu0 0
  %5513 = vmatpush2.bf16.msra.mxu0 0
  %5514 = vmatprep.mubr.bf16.mxu0 0
  %5515 = vmatmul.mubr.bf16.gmra.mxu0 %v5440
  %v5516 = vpop.f32.mrf.mxu0
  %v5517 = vadd.f32 0.0, %v5516
  %v5518 = vpop.f32.mrf.mxu0
  %v5519 = vpop.f32.mrf.mxu0
  %v5520 = vpop.f32.mrf.mxu0
  %5521 = vdwg.mxu0
  %v5522 = vadd.f32 %v4077, %v5476
  %v5523 = vadd.f32 %v4079, %v5478
  %v5524 = vxor.u32 %v5522, 2147483648
  %v5525 = vxor.u32 %v5523, 2147483648
  %v5526 = vmul.f32 %v5524, 1.442695
  %v5527 = vpow.pop %v5526
  %v5528 = vmul.f32 %v5525, 1.442695
  %v5529 = vpow.pop %v5528
  %v5530 = vadd.f32 %v5527, 1.0
  %v5531 = vadd.f32 %v5529, 1.0
  %v5532 = vrcp.pop %v5530
  %v5533 = vmul.f32 1.0, %v5532
  %v5534 = vrcp.pop %v5531
  %v5535 = vmul.f32 1.0, %v5534
  %v5536 = vadd.f32 %v5517, %v405
  %v5537 = vmul.f32 %v5533, %v5536
  %v5538 = vadd.f32 %v4118, %v5537
  %v5539 = vtanh.pop %v5538
  %v5540 = vsub.f32 1.0, %v5535
  %v5541 = vmul.f32 %v5540, %v5539
  %v5542 = vmul.f32 %v5535, %v5373
  %v5543 = vadd.f32 %v5541, %v5542
  %v5545 = vcombine.high %v5543, %v5543
  %v5547 = vunpack.c.l.s4 1966171168
  %v5548 = vunpack.c.0.s8 %v5547
  %v5549 = vlaneseq
  %v5550 = vshrl.u32 %v5549, 7
  %v5551 = vsub.s32 %v5548, %v5550
  %v5552 = vrot.slane %v5543, %v5551
  %v5554 = vunpack.c.l.s4 1966171168
  %v5555 = vunpack.c.0.s8 %v5554
  %v5556 = vlaneseq
  %v5557 = vshrl.u32 %v5556, 7
  %v5558 = vsub.s32 %v5555, %v5557
  %v5559 = vrot.slane %v5545, %v5558
  %v5560 = vcombine.high %v5552, %v5552
  %v5561 = vcombine.high %v5559, %v5559
  %v5563 = vunpack.c.l.s4 1966171168
  %v5564 = vunpack.c.0.s8 %v5563
  %v5565 = vlaneseq
  %v5566 = vshrl.u32 %v5565, 7
  %v5567 = vsub.s32 %v5564, %v5566
  %v5568 = vrot.slane %v5552, %v5567
  %v5570 = vunpack.c.l.s4 1966171168
  %v5571 = vunpack.c.0.s8 %v5570
  %v5572 = vlaneseq
  %v5573 = vshrl.u32 %v5572, 7
  %v5574 = vsub.s32 %v5571, %v5573
  %v5575 = vrot.slane %v5559, %v5574
  %v5577 = vunpack.c.l.s4 1966171168
  %v5578 = vunpack.c.0.s8 %v5577
  %v5579 = vlaneseq
  %v5580 = vshrl.u32 %v5579, 7
  %v5581 = vsub.s32 %v5578, %v5580
  %v5582 = vrot.slane %v5560, %v5581
  %v5584 = vunpack.c.l.s4 1966171168
  %v5585 = vunpack.c.0.s8 %v5584
  %v5586 = vlaneseq
  %v5587 = vshrl.u32 %v5586, 7
  %v5588 = vsub.s32 %v5585, %v5587
  %v5589 = vrot.slane %v5561, %v5588
  %v5590 = vcombine.high %v5568, %v5568
  %v5591 = vcombine.high %v5575, %v5575
  %v5592 = vcombine.high %v5582, %v5582
  %v5593 = vcombine.high %v5589, %v5589
  %5602 = vst [vmem:[#allocation3 + $0x7] sm:$0x1] %v5568
  %5603 = vst [vmem:[#allocation3 + $0xf] sm:$0x1] %v5582
  %5604 = vst [vmem:[#allocation3 + $0x17] sm:$0x1] %v5590
  %5605 = vst [vmem:[#allocation3 + $0x1f] sm:$0x1] %v5592
  %5606 = vst [vmem:[#allocation3 + $0x27] sm:$0x1] %v5575
  %5607 = vst [vmem:[#allocation3 + $0x2f] sm:$0x1] %v5589
  %5608 = vst [vmem:[#allocation3 + $0x37] sm:$0x1] %v5591
  %5609 = vst [vmem:[#allocation3 + $0x3f] sm:$0x1] %v5593
  %v5610 = vld [vmem:[#allocation3] sm:$0xff]
  %v5611 = vld [vmem:[#allocation3 + $0x8] sm:$0xff]
  %v5612 = vld [vmem:[#allocation3 + $0x10] sm:$0xff]
  %v5613 = vld [vmem:[#allocation3 + $0x18] sm:$0xff]
  %v5614 = vld [vmem:[#allocation3 + $0x20] sm:$0xff]
  %v5615 = vld [vmem:[#allocation3 + $0x28] sm:$0xff]
  %v5616 = vld [vmem:[#allocation3 + $0x30] sm:$0xff]
  %v5617 = vld [vmem:[#allocation3 + $0x38] sm:$0xff]
  %v5618 = vpack.c.bf16 %v5611, %v5610
  %v5619 = vpack.c.bf16 %v5613, %v5612
  %v5620 = vpack.c.bf16 %v5615, %v5614
  %v5621 = vpack.c.bf16 %v5617, %v5616
  %v5622 = vld [vmem:[%s11] sm:$0xf]
  %v5623 = vld [vmem:[%s11 + $0x4] sm:$0xf]
  %v5624 = vld [vmem:[%s11 + $0x8] sm:$0xf]
  %v5625 = vld [vmem:[%s11 + $0xc] sm:$0xf]
  %v5626 = vld [vmem:[%s11 + $0x10] sm:$0xf]
  %v5627 = vld [vmem:[%s11 + $0x14] sm:$0xf]
  %v5628 = vld [vmem:[%s11 + $0x18] sm:$0xf]
  %v5629 = vld [vmem:[%s11 + $0x1c] sm:$0xf]
  %v5630 = vld [vmem:[%s11 + $0x20] sm:$0xf]
  %v5631 = vld [vmem:[%s11 + $0x24] sm:$0xf]
  %v5632 = vld [vmem:[%s11 + $0x28] sm:$0xf]
  %v5633 = vld [vmem:[%s11 + $0x2c] sm:$0xf]
  %v5634 = vld [vmem:[%s11 + $0x30] sm:$0xf]
  %v5635 = vld [vmem:[%s11 + $0x34] sm:$0xf]
  %v5636 = vld [vmem:[%s11 + $0x38] sm:$0xf]
  %v5637 = vld [vmem:[%s11 + $0x3c] sm:$0xf]
  %v5638 = vld [vmem:[%s12] sm:$0x1]
  %v5640 = vlaneseq
  %v5641 = vshrl.u32 %v5640, 7
  %v5642 = vsub.s32 0, %v5641
  %v5643 = vrot.slane %v5638, %v5642
  %v5661 = vunpack.c.l.b16 %v5622
  %v5662 = vunpack.c.l.b16 %v5623
  %v5663 = vunpack.c.l.b16 %v5624
  %v5664 = vunpack.c.l.b16 %v5625
  %v5665 = vunpack.c.l.b16 %v5626
  %v5666 = vunpack.c.l.b16 %v5627
  %v5667 = vunpack.c.l.b16 %v5628
  %v5668 = vunpack.c.l.b16 %v5629
  %v5669 = vunpack.c.l.b16 %v5630
  %v5670 = vunpack.c.l.b16 %v5631
  %v5671 = vunpack.c.l.b16 %v5632
  %v5672 = vunpack.c.l.b16 %v5633
  %v5673 = vunpack.c.l.b16 %v5634
  %v5674 = vunpack.c.l.b16 %v5635
  %v5675 = vunpack.c.l.b16 %v5636
  %v5676 = vunpack.c.l.b16 %v5637
  %v5677 = vpack.c.b16 %v5662, %v5661
  %v5678 = vpack.c.b16 %v5664, %v5663
  %v5679 = vpack.c.b16 %v5666, %v5665
  %v5680 = vpack.c.b16 %v5668, %v5667
  %v5681 = vpack.c.b16 %v5670, %v5669
  %v5682 = vpack.c.b16 %v5672, %v5671
  %v5683 = vpack.c.b16 %v5674, %v5673
  %v5684 = vpack.c.b16 %v5676, %v5675
  %5693 = vmatprep.subr.bf16.mxu0 0
  %5694 = vmatpush1.bf16.msra.mxu0 %v5684
  %5695 = vmatprep.subr.bf16.mxu0 0
  %5696 = vmatpush1.bf16.msra.mxu0 %v5683
  %5697 = vmatprep.subr.bf16.mxu0 0
  %5698 = vmatpush1.bf16.msra.mxu0 %v5682
  %5699 = vmatprep.subr.bf16.mxu0 0
  %5700 = vmatpush1.bf16.msra.mxu0 %v5681
  %5701 = vmatprep.subr.bf16.mxu0 0
  %5702 = vmatpush1.bf16.msra.mxu0 %v5680
  %5703 = vmatprep.subr.bf16.mxu0 0
  %5704 = vmatpush1.bf16.msra.mxu0 %v5679
  %5705 = vmatprep.subr.bf16.mxu0 0
  %5706 = vmatpush1.bf16.msra.mxu0 %v5678
  %5707 = vmatprep.subr.bf16.mxu0 0
  %5708 = vmatpush1.bf16.msra.mxu0 %v5677
  %5709 = vmatprep.subr.bf16.mxu0 0
  %5710 = vmatpush2.bf16.msra.mxu0 0
  %5711 = vmatprep.subr.bf16.mxu0 0
  %5712 = vmatpush2.bf16.msra.mxu0 0
  %5713 = vmatprep.subr.bf16.mxu0 0
  %5714 = vmatpush2.bf16.msra.mxu0 0
  %5715 = vmatprep.subr.bf16.mxu0 0
  %5716 = vmatpush2.bf16.msra.mxu0 0
  %5717 = vmatprep.subr.bf16.mxu0 0
  %5718 = vmatpush2.bf16.msra.mxu0 0
  %5719 = vmatprep.subr.bf16.mxu0 0
  %5720 = vmatpush2.bf16.msra.mxu0 0
  %5721 = vmatprep.subr.bf16.mxu0 0
  %5722 = vmatpush2.bf16.msra.mxu0 0
  %5723 = vmatprep.subr.bf16.mxu0 0
  %5724 = vmatpush2.bf16.msra.mxu0 0
  %5725 = vmatprep.mubr.bf16.mxu0 0
  %5726 = vmatmul.mubr.bf16.gmra.mxu0 %v5618
  %v5727 = vpop.f32.mrf.mxu0
  %v5728 = vadd.f32 %v5643, %v5727
  %v5729 = vpop.f32.mrf.mxu0
  %v5730 = vpop.f32.mrf.mxu0
  %v5731 = vadd.f32 %v5643, %v5730
  %v5732 = vpop.f32.mrf.mxu0
  %5733 = vmatprep.mubr.bf16.mxu0 0
  %5734 = vmatmul.mubr.bf16.gmra.mxu0 %v5619
  %v5735 = vpop.f32.mrf.mxu0
  %v5736 = vadd.f32 %v5643, %v5735
  %v5737 = vpop.f32.mrf.mxu0
  %v5738 = vpop.f32.mrf.mxu0
  %v5739 = vadd.f32 %v5643, %v5738
  %v5740 = vpop.f32.mrf.mxu0
  %5741 = vmatprep.mubr.bf16.mxu0 0
  %5742 = vmatmul.mubr.bf16.gmra.mxu0 %v5620
  %v5743 = vpop.f32.mrf.mxu0
  %v5744 = vadd.f32 %v5643, %v5743
  %v5745 = vpop.f32.mrf.mxu0
  %v5746 = vpop.f32.mrf.mxu0
  %v5747 = vadd.f32 %v5643, %v5746
  %v5748 = vpop.f32.mrf.mxu0
  %5749 = vmatprep.mubr.bf16.mxu0 0
  %5750 = vmatmul.mubr.bf16.gmra.mxu0 %v5621
  %v5751 = vpop.f32.mrf.mxu0
  %v5752 = vadd.f32 %v5643, %v5751
  %v5753 = vpop.f32.mrf.mxu0
  %v5754 = vpop.f32.mrf.mxu0
  %v5755 = vadd.f32 %v5643, %v5754
  %v5756 = vpop.f32.mrf.mxu0
  %5757 = vdwg.mxu0
  %5758 = vst.msk [vmem:[%s13] sm:$0xff] %vm154, %v5728
  %5759 = vst.msk [vmem:[%s13 + $0x8] sm:$0xff] %vm154, %v5731
  %5760 = vst.msk [vmem:[%s13 + $0x10] sm:$0xff] %vm154, %v5736
  %5761 = vst.msk [vmem:[%s13 + $0x18] sm:$0xff] %vm154, %v5739
  %5762 = vst.msk [vmem:[%s13 + $0x20] sm:$0xff] %vm154, %v5744
  %5763 = vst.msk [vmem:[%s13 + $0x28] sm:$0xff] %vm154, %v5747
  %5764 = vst.msk [vmem:[%s13 + $0x30] sm:$0xff] %vm154, %v5752
  %5765 = vst.msk [vmem:[%s13 + $0x38] sm:$0xff] %vm154, %v5755
  // Predicated region
  $region54: #{sequence_autoencoder_forward.1} parent=0 // pred_check
    _
  $region55: #{sequence_autoencoder_forward.1} parent=0 // pred_check_branch
    %5767 = sbr.rel (0) target = $region57
  $region56: #{sequence_autoencoder_forward.1} parent=0 // pred_region
    _
  $region57: #{sequence_autoencoder_forward.1} parent=0 // pred_fallthru
    _
  // Predicated region
  $region58: #{sequence_autoencoder_forward.1} parent=0 // pred_check
    _
  $region59: #{sequence_autoencoder_forward.1} parent=0 // pred_check_branch
    %5769 = sbr.rel (0) target = $region61
  $region60: #{sequence_autoencoder_forward.1} parent=0 // pred_region
    _
  $region61: #{sequence_autoencoder_forward.1} parent=0 // pred_fallthru
    _

</llo_original>
